<compile_context>
chip_gen: v5e
topology: v5e:2x2
jax: 0.10.0
libtpu: 0.0.40
codegen_flags: <defaults>
</compile_context>

<pallas_src>
import functools
import math

import jax
import jax.numpy as jnp
from jax.experimental import pallas as pl
from jax.experimental.pallas import tpu as pltpu

# ----------------------------- configuration -------------------------------------
IMG_CH = 3
IMG_SIZE = 16
PATCH = 4
IN_CH = 32               # backbone num_features
OUT_CH = IN_CH // 2      # MEFARG.out_channels for a transformer backbone
NUM_CLASSES = 4
BN_EPS = 1e-5
APPROX_RECIP = True      # EUP approximate reciprocal for softmax denominators


def _recip(x):
    return pl.reciprocal(x, approx=APPROX_RECIP)


# =================================================================================
# The single fused MEFARG kernel (one grid step == one batch element).
# =================================================================================
def _mefarg_kernel(tok_ref,
                   emb_w, emb_b, cls_w, cls_b,
                   fam_wq, fam_bq, fam_wkv, fam_bkv,
                   arm_wqkv, arm_bqkv,
                   proj_w, proj_b, gem_s, gem_t,
                   g1_w, g1_we, g1_es, g1_et, g1_vs, g1_vt,
                   g2_w, g2_we, g2_es, g2_et, g2_vs, g2_vt,
                   sc_ref, efc_w, efc_b,
                   cl_ref, cle_ref, *, n, scale):
    f32 = jnp.float32
    C = emb_w.shape[1]
    Ch = fam_wq.shape[1]
    D = tok_ref.shape[1]
    n2 = n * n

    # --- backbone stub + global_linear (pre-folded at init): x = relu(tok @ W + b)
    tok = tok_ref[0]                                                    # (D, patch_dim)
    x = jnp.maximum(jnp.dot(tok, emb_w[...], preferred_element_type=f32)
                    + emb_b[...], 0.0)                                  # (D, C)

    # --- per-class LinearBlocks: one packed (C, n*C) matmul + ReLU ---------------
    fu = jnp.maximum(jnp.dot(x, cls_w[...], preferred_element_type=f32)
                     + cls_b[...], 0.0)                                 # (D, n*C)
    # class-major stacking (n*D, C): rows [i*D + d] = class i, token d
    fu_cls = jnp.concatenate([fu[:, i * C:(i + 1) * C] for i in range(n)], axis=0)
    f_v = jnp.mean(fu_cls.reshape(n, D, C), axis=1)                     # (n, C)

    # --- GEM / FAM: per-class queries against the shared global keys/values -----
    q = jnp.dot(fu_cls, fam_wq[...], preferred_element_type=f32) + fam_bq[...]  # (n*D, Ch)
    kv = jnp.dot(x, fam_wkv[...], preferred_element_type=f32) + fam_bkv[...]    # (D, Ch+C)
    k = kv[:, :Ch]
    v = kv[:, Ch:]
    s = jnp.dot(q, k.T, preferred_element_type=f32) * scale                     # (n*D, D)
    s = s - jnp.max(s, axis=-1, keepdims=True)
    ps = jnp.exp(s)
    ps = ps * _recip(jnp.sum(ps, axis=-1, keepdims=True))
    feat = jnp.dot(ps, v, preferred_element_type=f32)                           # (n*D, C)

    # --- GEM / ARM block-gram: pair (i, j) -> query feat[j], key/value feat[i] ---
    qkv = jnp.dot(feat, arm_wqkv[...], preferred_element_type=f32) + arm_bqkv[...]
    q2 = qkv[:, :Ch]                                                    # (n*D, Ch)
    k2 = qkv[:, Ch:2 * Ch]                                              # (n*D, Ch)
    v2 = qkv[:, 2 * Ch:]                                                # (n*D, C)
    g_full = jnp.dot(q2, k2.T, preferred_element_type=f32) * scale      # (n*D, n*D)
    arm_rows = []
    for i in range(n):                              # n tiny & static -> unrolled
        si = g_full[:, i * D:(i + 1) * D]                               # keys of class i
        si = si - jnp.max(si, axis=-1, keepdims=True)
        pi = jnp.exp(si)
        pi = pi * _recip(jnp.sum(pi, axis=-1, keepdims=True))
        arm_rows.append(jnp.dot(pi, v2[i * D:(i + 1) * D],
                                preferred_element_type=f32))            # (n*D, C)
    feat_arm = jnp.concatenate(arm_rows, axis=0)                        # (n2*D, C), (i, j, d)

    # --- edge projection; BN2d folded onto the D-mean (affine commutes) ----------
    edge = jnp.dot(feat_arm, proj_w[...], preferred_element_type=f32) + proj_b[...]
    f_e = jnp.mean(edge.reshape(n2, D, C), axis=1)                      # (n2, C)
    f_e = f_e * gem_s[...] + gem_t[...]

    # --- GNN layers: packed A|B|V|U weight, incidence ops as broadcasts/sums -----
    def gnn_layer(xn, ed, w_ref, we_ref, es_ref, et_ref, vs_ref, vt_ref):
        proj = jnp.dot(xn, w_ref[...], preferred_element_type=f32)      # (n, 4C)
        vix = proj[:, :C]            # A(x)
        vjx = proj[:, C:2 * C]       # B(x)
        ujx = proj[:, 2 * C:3 * C]   # V(x)
        uix = proj[:, 3 * C:]        # U(x)
        elin = jnp.dot(ed, we_ref[...], preferred_element_type=f32)     # (n2, C)
        # edge update: edge += relu(bn_e(end@A(x) + start@B(x) + E(edge)))
        m = (jnp.broadcast_to(vix[:, None, :], (n, n, C)).reshape(n2, C)
             + jnp.broadcast_to(vjx[None, :, :], (n, n, C)).reshape(n2, C)
             + elin)
        ed_new = ed + jnp.maximum(m * es_ref[...] + et_ref[...], 0.0)
        # neighbour softmax over j (sigmoid output bounded -> no max subtraction)
        pe = jnp.exp(jax.nn.sigmoid(ed_new)).reshape(n, n, C)
        e_soft = pe * _recip(jnp.sum(pe, axis=1, keepdims=True))
        # node update: x = relu(res + bn_v(U(x) + end^T @ (e * start@V(x)) / n))
        agg = jnp.sum(e_soft * jnp.broadcast_to(ujx[None, :, :], (n, n, C)),
                      axis=1) * (1.0 / n)                               # (n, C)
        xn_new = jnp.maximum(xn + (uix + agg) * vs_ref[...] + vt_ref[...], 0.0)
        return xn_new, ed_new

    f_v, f_e = gnn_layer(f_v, f_e, g1_w, g1_we, g1_es, g1_et, g1_vs, g1_vt)
    f_v, f_e = gnn_layer(f_v, f_e, g2_w, g2_we, g2_es, g2_et, g2_vs, g2_vt)

    # --- epilogue: cosine logits + edge_fc (written straight from VMEM) ----------
    scp = jnp.maximum(sc_ref[...], 0.0)
    scn = scp * jax.lax.rsqrt(jnp.sum(scp * scp, axis=-1, keepdims=True) + 1e-24)
    fvn = f_v * jax.lax.rsqrt(jnp.sum(f_v * f_v, axis=-1, keepdims=True) + 1e-24)
    cl_ref[...] = jnp.sum(fvn * scn, axis=-1).reshape(1, 1, n)
    cle = jnp.dot(f_e, efc_w[...], preferred_element_type=f32) + efc_b[...]
    cle_ref[...] = cle.reshape(1, n2, 4).astype(cle_ref.dtype)


def mefarg_fused_call(p, tokens):
    B, D, pd = tokens.shape
    n = NUM_CLASSES
    n2 = n * n
    Ch = OUT_CH // 2
    scale = Ch ** -0.5

    weights = [
        p["emb_w"], p["emb_b"],
        p["class_w"], p["class_b"],
        p["fam_wq"], p["fam_bq"], p["fam_wkv"], p["fam_bkv"],
        p["arm_wqkv"], p["arm_bqkv"],
        p["proj_w"], p["proj_b"], p["gem_s"], p["gem_t"],
        p["g1_w"], p["g1_we"], p["g1_es"], p["g1_et"], p["g1_vs"], p["g1_vt"],
        p["g2_w"], p["g2_we"], p["g2_es"], p["g2_et"], p["g2_vs"], p["g2_vt"],
        p["sc"], p["efc_w"], p["efc_b"],
    ]

    def rep(a):
        return pl.BlockSpec(a.shape, lambda b, _nd=a.ndim: (0,) * _nd)

    cl3, cle = pl.pallas_call(
        functools.partial(_mefarg_kernel, n=n, scale=scale),
        out_shape=(jax.ShapeDtypeStruct((B, 1, n), jnp.float32),
                   jax.ShapeDtypeStruct((B, n2, 4), jnp.float32)),
        grid=(B,),
        in_specs=[pl.BlockSpec((1, D, pd), lambda b: (b, 0, 0))]
                 + [rep(w) for w in weights],
        out_specs=(pl.BlockSpec((1, 1, n), lambda b: (b, 0, 0)),
                   pl.BlockSpec((1, n2, 4), lambda b: (b, 0, 0))),
        compiler_params=pltpu.CompilerParams(dimension_semantics=("parallel",)),
    )(tokens, *weights)
    return cl3[:, 0, :], cle


# =================================================================================
# Parameter setup (plain JAX, init time only)
# =================================================================================
def init_params(key):
    ks = iter(jax.random.split(key, 64))

    def nrm(shape, s):
        return s * jax.random.normal(next(ks), shape, jnp.float32)

    def xavier(shape):
        bound = math.sqrt(6.0 / (shape[0] + shape[1]))
        return jax.random.uniform(next(ks), shape, jnp.float32, -bound, bound)

    bn_scale = 1.0 / math.sqrt(1.0 + BN_EPS)   # eval BN: gamma=1, beta=0, mean=0, var=1
    C, Ch, n = OUT_CH, OUT_CH // 2, NUM_CLASSES
    n2 = n * n
    patch_dim = IMG_CH * PATCH * PATCH

    # backbone stub (patch embed) folded with global_linear (fc + eval-BN + ReLU)
    patch_w = nrm((patch_dim, IN_CH), math.sqrt(2.0 / patch_dim))
    patch_b = jnp.zeros((IN_CH,), jnp.float32)
    gl_w = nrm((IN_CH, C), math.sqrt(2.0 / IN_CH)) * bn_scale
    gl_b = jnp.zeros((C,), jnp.float32)
    emb_w = patch_w @ gl_w
    emb_b = (patch_b @ gl_w + gl_b).reshape(1, C)

    # per-class LinearBlocks packed into one (C, n*C) weight (fc + folded eval-BN)
    class_w = jnp.concatenate(
        [nrm((C, C), math.sqrt(2.0 / C)) * bn_scale for _ in range(n)], axis=1)
    class_b = jnp.zeros((1, n * C), jnp.float32)

    # GEM cross-attention projections (k|v packed for FAM, q|k|v packed for ARM)
    def qkv():
        wq = nrm((C, Ch), math.sqrt(2.0 / Ch))
        wk = nrm((C, Ch), math.sqrt(2.0 / Ch))
        wv = nrm((C, C), math.sqrt(2.0 / C))
        return wq, wk, wv

    fq, fk, fv = qkv()
    aq, ak, av = qkv()

    # GNN: A|B|V|U packed per layer, E separate; eval-BN as lane-dense constants
    def gnn_layer_params():
        wcat = jnp.concatenate([nrm((C, C), math.sqrt(2.0 / C)) for _ in range(4)],
                               axis=1)                                  # [A|B|V|U]
        we = nrm((C, C), math.sqrt(2.0 / C))
        return wcat, we

    g1_w, g1_we = gnn_layer_params()
    g2_w, g2_we = gnn_layer_params()

    def bn_consts(rows):
        return (jnp.full((rows, C), bn_scale, jnp.float32),
                jnp.zeros((rows, C), jnp.float32))

    g1_es, g1_et = bn_consts(n2)
    g1_vs, g1_vt = bn_consts(n)
    g2_es, g2_et = bn_consts(n2)
    g2_vs, g2_vt = bn_consts(n)
    gem_s, gem_t = bn_consts(n2)

    return dict(
        emb_w=emb_w, emb_b=emb_b,
        class_w=class_w, class_b=class_b,
        fam_wq=fq, fam_bq=jnp.zeros((1, Ch), jnp.float32),
        fam_wkv=jnp.concatenate([fk, fv], axis=1),
        fam_bkv=jnp.zeros((1, Ch + C), jnp.float32),
        arm_wqkv=jnp.concatenate([aq, ak, av], axis=1),
        arm_bqkv=jnp.zeros((1, Ch + Ch + C), jnp.float32),
        proj_w=nrm((C, C), math.sqrt(2.0 / C)),
        proj_b=jnp.zeros((1, C), jnp.float32),
        gem_s=gem_s, gem_t=gem_t,
        g1_w=g1_w, g1_we=g1_we, g1_es=g1_es, g1_et=g1_et, g1_vs=g1_vs, g1_vt=g1_vt,
        g2_w=g2_w, g2_we=g2_we, g2_es=g2_es, g2_et=g2_et, g2_vs=g2_vs, g2_vt=g2_vt,
        sc=xavier((n, C)),
        efc_w=xavier((C, 4)), efc_b=jnp.zeros((1, 4), jnp.float32),
    )


# =================================================================================
# Forward: patchify in plain-JAX glue, then ONE fused Pallas kernel.
# =================================================================================
def mefarg_forward(params, img):
    # img: (B, C, H, W) NCHW, like the PyTorch module input.
    B, Ci, H, W = img.shape
    P = PATCH
    x = img.reshape(B, Ci, H // P, P, W // P, P)
    x = x.transpose(0, 2, 4, 1, 3, 5).reshape(B, (H // P) * (W // P), Ci * P * P)
    return mefarg_fused_call(params, x)


if __name__ == "__main__":
    key = jax.random.PRNGKey(0)
    kp, kx = jax.random.split(key)
    params = init_params(kp)
    img = jax.random.normal(kx, (2, IMG_CH, IMG_SIZE, IMG_SIZE), jnp.float32)   # NCHW

    cl, cl_edge = jax.jit(mefarg_forward)(params, img)
    jax.block_until_ready((cl, cl_edge))

    assert cl.shape == (2, NUM_CLASSES), cl.shape
    assert cl_edge.shape == (2, NUM_CLASSES * NUM_CLASSES, 4), cl_edge.shape
    assert bool(jnp.all(jnp.isfinite(cl))) and bool(jnp.all(jnp.isfinite(cl_edge)))
    print("KERNEL_OK")
</pallas_src>

<mosaic_0001>
module attributes {stable_mosaic.version = 11 : i64} {
  func.func @_mefarg_kernel(%arg0: i32, %arg1: memref<1x16x48xf32, #tpu.memory_space<vmem>>, %arg2: memref<48x16xf32, #tpu.memory_space<vmem>>, %arg3: memref<1x16xf32, #tpu.memory_space<vmem>>, %arg4: memref<16x64xf32, #tpu.memory_space<vmem>>, %arg5: memref<1x64xf32, #tpu.memory_space<vmem>>, %arg6: memref<16x8xf32, #tpu.memory_space<vmem>>, %arg7: memref<1x8xf32, #tpu.memory_space<vmem>>, %arg8: memref<16x24xf32, #tpu.memory_space<vmem>>, %arg9: memref<1x24xf32, #tpu.memory_space<vmem>>, %arg10: memref<16x32xf32, #tpu.memory_space<vmem>>, %arg11: memref<1x32xf32, #tpu.memory_space<vmem>>, %arg12: memref<16x16xf32, #tpu.memory_space<vmem>>, %arg13: memref<1x16xf32, #tpu.memory_space<vmem>>, %arg14: memref<16x16xf32, #tpu.memory_space<vmem>>, %arg15: memref<16x16xf32, #tpu.memory_space<vmem>>, %arg16: memref<16x64xf32, #tpu.memory_space<vmem>>, %arg17: memref<16x16xf32, #tpu.memory_space<vmem>>, %arg18: memref<16x16xf32, #tpu.memory_space<vmem>>, %arg19: memref<16x16xf32, #tpu.memory_space<vmem>>, %arg20: memref<4x16xf32, #tpu.memory_space<vmem>>, %arg21: memref<4x16xf32, #tpu.memory_space<vmem>>, %arg22: memref<16x64xf32, #tpu.memory_space<vmem>>, %arg23: memref<16x16xf32, #tpu.memory_space<vmem>>, %arg24: memref<16x16xf32, #tpu.memory_space<vmem>>, %arg25: memref<16x16xf32, #tpu.memory_space<vmem>>, %arg26: memref<4x16xf32, #tpu.memory_space<vmem>>, %arg27: memref<4x16xf32, #tpu.memory_space<vmem>>, %arg28: memref<4x16xf32, #tpu.memory_space<vmem>>, %arg29: memref<16x4xf32, #tpu.memory_space<vmem>>, %arg30: memref<1x4xf32, #tpu.memory_space<vmem>>, %arg31: memref<1x1x4xf32, #tpu.memory_space<vmem>>, %arg32: memref<1x16x4xf32, #tpu.memory_space<vmem>>) attributes {dimension_semantics = [#tpu.dimension_semantics<parallel>], iteration_bounds = array<i64: 2>, scalar_prefetch = 0 : i64, scratch_operands = 0 : i64, tpu.core_type = #tpu.core_type<tc>, window_params = [{transform_indices = @transform_0, window_bounds = array<i64: 1, 16, 48>}, {pipeline_mode = #tpu.pipeline_mode<synchronous>, transform_indices = @transform_1, window_bounds = array<i64: 48, 16>}, {pipeline_mode = #tpu.pipeline_mode<synchronous>, transform_indices = @transform_2, window_bounds = array<i64: 1, 16>}, {pipeline_mode = #tpu.pipeline_mode<synchronous>, transform_indices = @transform_3, window_bounds = array<i64: 16, 64>}, {pipeline_mode = #tpu.pipeline_mode<synchronous>, transform_indices = @transform_4, window_bounds = array<i64: 1, 64>}, {pipeline_mode = #tpu.pipeline_mode<synchronous>, transform_indices = @transform_5, window_bounds = array<i64: 16, 8>}, {pipeline_mode = #tpu.pipeline_mode<synchronous>, transform_indices = @transform_6, window_bounds = array<i64: 1, 8>}, {pipeline_mode = #tpu.pipeline_mode<synchronous>, transform_indices = @transform_7, window_bounds = array<i64: 16, 24>}, {pipeline_mode = #tpu.pipeline_mode<synchronous>, transform_indices = @transform_8, window_bounds = array<i64: 1, 24>}, {pipeline_mode = #tpu.pipeline_mode<synchronous>, transform_indices = @transform_9, window_bounds = array<i64: 16, 32>}, {pipeline_mode = #tpu.pipeline_mode<synchronous>, transform_indices = @transform_10, window_bounds = array<i64: 1, 32>}, {pipeline_mode = #tpu.pipeline_mode<synchronous>, transform_indices = @transform_11, window_bounds = array<i64: 16, 16>}, {pipeline_mode = #tpu.pipeline_mode<synchronous>, transform_indices = @transform_12, window_bounds = array<i64: 1, 16>}, {pipeline_mode = #tpu.pipeline_mode<synchronous>, transform_indices = @transform_13, window_bounds = array<i64: 16, 16>}, {pipeline_mode = #tpu.pipeline_mode<synchronous>, transform_indices = @transform_14, window_bounds = array<i64: 16, 16>}, {pipeline_mode = #tpu.pipeline_mode<synchronous>, transform_indices = @transform_15, window_bounds = array<i64: 16, 64>}, {pipeline_mode = #tpu.pipeline_mode<synchronous>, transform_indices = @transform_16, window_bounds = array<i64: 16, 16>}, {pipeline_mode = #tpu.pipeline_mode<synchronous>, transform_indices = @transform_17, window_bounds = array<i64: 16, 16>}, {pipeline_mode = #tpu.pipeline_mode<synchronous>, transform_indices = @transform_18, window_bounds = array<i64: 16, 16>}, {pipeline_mode = #tpu.pipeline_mode<synchronous>, transform_indices = @transform_19, window_bounds = array<i64: 4, 16>}, {pipeline_mode = #tpu.pipeline_mode<synchronous>, transform_indices = @transform_20, window_bounds = array<i64: 4, 16>}, {pipeline_mode = #tpu.pipeline_mode<synchronous>, transform_indices = @transform_21, window_bounds = array<i64: 16, 64>}, {pipeline_mode = #tpu.pipeline_mode<synchronous>, transform_indices = @transform_22, window_bounds = array<i64: 16, 16>}, {pipeline_mode = #tpu.pipeline_mode<synchronous>, transform_indices = @transform_23, window_bounds = array<i64: 16, 16>}, {pipeline_mode = #tpu.pipeline_mode<synchronous>, transform_indices = @transform_24, window_bounds = array<i64: 16, 16>}, {pipeline_mode = #tpu.pipeline_mode<synchronous>, transform_indices = @transform_25, window_bounds = array<i64: 4, 16>}, {pipeline_mode = #tpu.pipeline_mode<synchronous>, transform_indices = @transform_26, window_bounds = array<i64: 4, 16>}, {pipeline_mode = #tpu.pipeline_mode<synchronous>, transform_indices = @transform_27, window_bounds = array<i64: 4, 16>}, {pipeline_mode = #tpu.pipeline_mode<synchronous>, transform_indices = @transform_28, window_bounds = array<i64: 16, 4>}, {pipeline_mode = #tpu.pipeline_mode<synchronous>, transform_indices = @transform_29, window_bounds = array<i64: 1, 4>}, {transform_indices = @transform_30, window_bounds = array<i64: 1, 1, 4>}, {transform_indices = @transform_31, window_bounds = array<i64: 1, 16, 4>}]} {
    %c0 = arith.constant 0 : index
    %c0_0 = arith.constant 0 : index
    %c0_1 = arith.constant 0 : index
    %0 = vector.load %arg1[%c0, %c0_0, %c0_1] : memref<1x16x48xf32, #tpu.memory_space<vmem>>, vector<1x16x48xf32>
    %1 = vector.shape_cast %0 : vector<1x16x48xf32> to vector<16x48xf32>
    %c0_2 = arith.constant 0 : index
    %c0_3 = arith.constant 0 : index
    %2 = vector.load %arg2[%c0_2, %c0_3] : memref<48x16xf32, #tpu.memory_space<vmem>>, vector<48x16xf32>
    %cst = arith.constant dense<0.000000e+00> : vector<16x16xf32>
    %3 = tpu.matmul %1, %2, %cst {dimension_numbers = #tpu.dot_dimension_numbers<[1], [0], [0], [1], [0, 0, 1, 1], [], []>} : vector<16x48xf32>, vector<48x16xf32>, vector<16x16xf32> -> vector<16x16xf32>
    %c0_4 = arith.constant 0 : index
    %c0_5 = arith.constant 0 : index
    %4 = vector.load %arg3[%c0_4, %c0_5] : memref<1x16xf32, #tpu.memory_space<vmem>>, vector<1x16xf32>
    %5 = vector.broadcast %4 : vector<1x16xf32> to vector<16x16xf32>
    %6 = arith.addf %3, %5 : vector<16x16xf32>
    %cst_6 = arith.constant 0.000000e+00 : f32
    %7 = vector.broadcast %cst_6 : f32 to vector<16x16xf32>
    %8 = arith.maximumf %6, %7 : vector<16x16xf32>
    %c0_7 = arith.constant 0 : index
    %c0_8 = arith.constant 0 : index
    %9 = vector.load %arg4[%c0_7, %c0_8] : memref<16x64xf32, #tpu.memory_space<vmem>>, vector<16x64xf32>
    %cst_9 = arith.constant dense<0.000000e+00> : vector<16x64xf32>
    %10 = tpu.matmul %8, %9, %cst_9 {dimension_numbers = #tpu.dot_dimension_numbers<[1], [0], [0], [1], [0, 0, 1, 1], [], []>} : vector<16x16xf32>, vector<16x64xf32>, vector<16x64xf32> -> vector<16x64xf32>
    %c0_10 = arith.constant 0 : index
    %c0_11 = arith.constant 0 : index
    %11 = vector.load %arg5[%c0_10, %c0_11] : memref<1x64xf32, #tpu.memory_space<vmem>>, vector<1x64xf32>
    %12 = vector.broadcast %11 : vector<1x64xf32> to vector<16x64xf32>
    %13 = arith.addf %10, %12 : vector<16x64xf32>
    %cst_12 = arith.constant 0.000000e+00 : f32
    %14 = vector.broadcast %cst_12 : f32 to vector<16x64xf32>
    %15 = arith.maximumf %13, %14 : vector<16x64xf32>
    %16 = vector.extract_strided_slice %15 {offsets = [0, 0], sizes = [16, 16], strides = [1, 1]} : vector<16x64xf32> to vector<16x16xf32>
    %17 = vector.extract_strided_slice %15 {offsets = [0, 16], sizes = [16, 16], strides = [1, 1]} : vector<16x64xf32> to vector<16x16xf32>
    %18 = vector.extract_strided_slice %15 {offsets = [0, 32], sizes = [16, 16], strides = [1, 1]} : vector<16x64xf32> to vector<16x16xf32>
    %19 = vector.extract_strided_slice %15 {offsets = [0, 48], sizes = [16, 16], strides = [1, 1]} : vector<16x64xf32> to vector<16x16xf32>
    %20 = tpu.concatenate %16, %17, %18, %19 in 0 : vector<16x16xf32>, vector<16x16xf32>, vector<16x16xf32>, vector<16x16xf32> -> vector<64x16xf32>
    %21 = vector.shape_cast %20 : vector<64x16xf32> to vector<4x16x16xf32>
    %cst_13 = arith.constant dense<0.000000e+00> : vector<4x16xf32>
    %22 = vector.multi_reduction <add>, %21, %cst_13 [1] : vector<4x16x16xf32> to vector<4x16xf32>
    %cst_14 = arith.constant 1.600000e+01 : f32
    %23 = vector.broadcast %cst_14 : f32 to vector<4x16xf32>
    %24 = arith.divf %22, %23 : vector<4x16xf32>
    %c0_15 = arith.constant 0 : index
    %c0_16 = arith.constant 0 : index
    %25 = vector.load %arg6[%c0_15, %c0_16] : memref<16x8xf32, #tpu.memory_space<vmem>>, vector<16x8xf32>
    %cst_17 = arith.constant dense<0.000000e+00> : vector<64x8xf32>
    %26 = tpu.matmul %20, %25, %cst_17 {dimension_numbers = #tpu.dot_dimension_numbers<[1], [0], [0], [1], [0, 0, 1, 1], [], []>} : vector<64x16xf32>, vector<16x8xf32>, vector<64x8xf32> -> vector<64x8xf32>
    %c0_18 = arith.constant 0 : index
    %c0_19 = arith.constant 0 : index
    %27 = vector.load %arg7[%c0_18, %c0_19] : memref<1x8xf32, #tpu.memory_space<vmem>>, vector<1x8xf32>
    %28 = vector.broadcast %27 : vector<1x8xf32> to vector<64x8xf32>
    %29 = arith.addf %26, %28 : vector<64x8xf32>
    %c0_20 = arith.constant 0 : index
    %c0_21 = arith.constant 0 : index
    %30 = vector.load %arg8[%c0_20, %c0_21] : memref<16x24xf32, #tpu.memory_space<vmem>>, vector<16x24xf32>
    %cst_22 = arith.constant dense<0.000000e+00> : vector<16x24xf32>
    %31 = tpu.matmul %8, %30, %cst_22 {dimension_numbers = #tpu.dot_dimension_numbers<[1], [0], [0], [1], [0, 0, 1, 1], [], []>} : vector<16x16xf32>, vector<16x24xf32>, vector<16x24xf32> -> vector<16x24xf32>
    %c0_23 = arith.constant 0 : index
    %c0_24 = arith.constant 0 : index
    %32 = vector.load %arg9[%c0_23, %c0_24] : memref<1x24xf32, #tpu.memory_space<vmem>>, vector<1x24xf32>
    %33 = vector.broadcast %32 : vector<1x24xf32> to vector<16x24xf32>
    %34 = arith.addf %31, %33 : vector<16x24xf32>
    %35 = vector.extract_strided_slice %34 {offsets = [0, 0], sizes = [16, 8], strides = [1, 1]} : vector<16x24xf32> to vector<16x8xf32>
    %36 = vector.extract_strided_slice %34 {offsets = [0, 8], sizes = [16, 16], strides = [1, 1]} : vector<16x24xf32> to vector<16x16xf32>
    %37 = tpu.transpose %35, [1, 0] : vector<16x8xf32> -> vector<8x16xf32>
    %cst_25 = arith.constant dense<0.000000e+00> : vector<64x16xf32>
    %38 = tpu.matmul %29, %37, %cst_25 {dimension_numbers = #tpu.dot_dimension_numbers<[1], [0], [0], [1], [0, 0, 1, 1], [], []>} : vector<64x8xf32>, vector<8x16xf32>, vector<64x16xf32> -> vector<64x16xf32>
    %cst_26 = arith.constant 0.353553385 : f32
    %39 = vector.broadcast %cst_26 : f32 to vector<64x16xf32>
    %40 = arith.mulf %38, %39 : vector<64x16xf32>
    %cst_27 = arith.constant dense<0xFF800000> : vector<64xf32>
    %41 = vector.multi_reduction <maximumf>, %40, %cst_27 [1] : vector<64x16xf32> to vector<64xf32>
    %42 = vector.shape_cast %41 : vector<64xf32> to vector<64x1xf32>
    %43 = vector.broadcast %42 : vector<64x1xf32> to vector<64x16xf32>
    %44 = arith.subf %40, %43 : vector<64x16xf32>
    %45 = math.exp %44 : vector<64x16xf32>
    %cst_28 = arith.constant dense<0.000000e+00> : vector<64xf32>
    %46 = vector.multi_reduction <add>, %45, %cst_28 [1] : vector<64x16xf32> to vector<64xf32>
    %47 = vector.shape_cast %46 : vector<64xf32> to vector<64x1xf32>
    %48 = tpu.reciprocal %47 {approx = true} : vector<64x1xf32> -> vector<64x1xf32>
    %49 = vector.broadcast %48 : vector<64x1xf32> to vector<64x16xf32>
    %50 = arith.mulf %45, %49 : vector<64x16xf32>
    %cst_29 = arith.constant dense<0.000000e+00> : vector<64x16xf32>
    %51 = tpu.matmul %50, %36, %cst_29 {dimension_numbers = #tpu.dot_dimension_numbers<[1], [0], [0], [1], [0, 0, 1, 1], [], []>} : vector<64x16xf32>, vector<16x16xf32>, vector<64x16xf32> -> vector<64x16xf32>
    %c0_30 = arith.constant 0 : index
    %c0_31 = arith.constant 0 : index
    %52 = vector.load %arg10[%c0_30, %c0_31] : memref<16x32xf32, #tpu.memory_space<vmem>>, vector<16x32xf32>
    %cst_32 = arith.constant dense<0.000000e+00> : vector<64x32xf32>
    %53 = tpu.matmul %51, %52, %cst_32 {dimension_numbers = #tpu.dot_dimension_numbers<[1], [0], [0], [1], [0, 0, 1, 1], [], []>} : vector<64x16xf32>, vector<16x32xf32>, vector<64x32xf32> -> vector<64x32xf32>
    %c0_33 = arith.constant 0 : index
    %c0_34 = arith.constant 0 : index
    %54 = vector.load %arg11[%c0_33, %c0_34] : memref<1x32xf32, #tpu.memory_space<vmem>>, vector<1x32xf32>
    %55 = vector.broadcast %54 : vector<1x32xf32> to vector<64x32xf32>
    %56 = arith.addf %53, %55 : vector<64x32xf32>
    %57 = vector.extract_strided_slice %56 {offsets = [0, 0], sizes = [64, 8], strides = [1, 1]} : vector<64x32xf32> to vector<64x8xf32>
    %58 = vector.extract_strided_slice %56 {offsets = [0, 8], sizes = [64, 8], strides = [1, 1]} : vector<64x32xf32> to vector<64x8xf32>
    %59 = vector.extract_strided_slice %56 {offsets = [0, 16], sizes = [64, 16], strides = [1, 1]} : vector<64x32xf32> to vector<64x16xf32>
    %60 = tpu.transpose %58, [1, 0] : vector<64x8xf32> -> vector<8x64xf32>
    %cst_35 = arith.constant dense<0.000000e+00> : vector<64x64xf32>
    %61 = tpu.matmul %57, %60, %cst_35 {dimension_numbers = #tpu.dot_dimension_numbers<[1], [0], [0], [1], [0, 0, 1, 1], [], []>} : vector<64x8xf32>, vector<8x64xf32>, vector<64x64xf32> -> vector<64x64xf32>
    %cst_36 = arith.constant 0.353553385 : f32
    %62 = vector.broadcast %cst_36 : f32 to vector<64x64xf32>
    %63 = arith.mulf %61, %62 : vector<64x64xf32>
    %64 = vector.extract_strided_slice %63 {offsets = [0, 0], sizes = [64, 16], strides = [1, 1]} : vector<64x64xf32> to vector<64x16xf32>
    %cst_37 = arith.constant dense<0xFF800000> : vector<64xf32>
    %65 = vector.multi_reduction <maximumf>, %64, %cst_37 [1] : vector<64x16xf32> to vector<64xf32>
    %66 = vector.shape_cast %65 : vector<64xf32> to vector<64x1xf32>
    %67 = vector.broadcast %66 : vector<64x1xf32> to vector<64x16xf32>
    %68 = arith.subf %64, %67 : vector<64x16xf32>
    %69 = math.exp %68 : vector<64x16xf32>
    %cst_38 = arith.constant dense<0.000000e+00> : vector<64xf32>
    %70 = vector.multi_reduction <add>, %69, %cst_38 [1] : vector<64x16xf32> to vector<64xf32>
    %71 = vector.shape_cast %70 : vector<64xf32> to vector<64x1xf32>
    %72 = tpu.reciprocal %71 {approx = true} : vector<64x1xf32> -> vector<64x1xf32>
    %73 = vector.broadcast %72 : vector<64x1xf32> to vector<64x16xf32>
    %74 = arith.mulf %69, %73 : vector<64x16xf32>
    %75 = vector.extract_strided_slice %59 {offsets = [0, 0], sizes = [16, 16], strides = [1, 1]} : vector<64x16xf32> to vector<16x16xf32>
    %cst_39 = arith.constant dense<0.000000e+00> : vector<64x16xf32>
    %76 = tpu.matmul %74, %75, %cst_39 {dimension_numbers = #tpu.dot_dimension_numbers<[1], [0], [0], [1], [0, 0, 1, 1], [], []>} : vector<64x16xf32>, vector<16x16xf32>, vector<64x16xf32> -> vector<64x16xf32>
    %77 = vector.extract_strided_slice %63 {offsets = [0, 16], sizes = [64, 16], strides = [1, 1]} : vector<64x64xf32> to vector<64x16xf32>
    %cst_40 = arith.constant dense<0xFF800000> : vector<64xf32>
    %78 = vector.multi_reduction <maximumf>, %77, %cst_40 [1] : vector<64x16xf32> to vector<64xf32>
    %79 = vector.shape_cast %78 : vector<64xf32> to vector<64x1xf32>
    %80 = vector.broadcast %79 : vector<64x1xf32> to vector<64x16xf32>
    %81 = arith.subf %77, %80 : vector<64x16xf32>
    %82 = math.exp %81 : vector<64x16xf32>
    %cst_41 = arith.constant dense<0.000000e+00> : vector<64xf32>
    %83 = vector.multi_reduction <add>, %82, %cst_41 [1] : vector<64x16xf32> to vector<64xf32>
    %84 = vector.shape_cast %83 : vector<64xf32> to vector<64x1xf32>
    %85 = tpu.reciprocal %84 {approx = true} : vector<64x1xf32> -> vector<64x1xf32>
    %86 = vector.broadcast %85 : vector<64x1xf32> to vector<64x16xf32>
    %87 = arith.mulf %82, %86 : vector<64x16xf32>
    %88 = vector.extract_strided_slice %59 {offsets = [16, 0], sizes = [16, 16], strides = [1, 1]} : vector<64x16xf32> to vector<16x16xf32>
    %cst_42 = arith.constant dense<0.000000e+00> : vector<64x16xf32>
    %89 = tpu.matmul %87, %88, %cst_42 {dimension_numbers = #tpu.dot_dimension_numbers<[1], [0], [0], [1], [0, 0, 1, 1], [], []>} : vector<64x16xf32>, vector<16x16xf32>, vector<64x16xf32> -> vector<64x16xf32>
    %90 = vector.extract_strided_slice %63 {offsets = [0, 32], sizes = [64, 16], strides = [1, 1]} : vector<64x64xf32> to vector<64x16xf32>
    %cst_43 = arith.constant dense<0xFF800000> : vector<64xf32>
    %91 = vector.multi_reduction <maximumf>, %90, %cst_43 [1] : vector<64x16xf32> to vector<64xf32>
    %92 = vector.shape_cast %91 : vector<64xf32> to vector<64x1xf32>
    %93 = vector.broadcast %92 : vector<64x1xf32> to vector<64x16xf32>
    %94 = arith.subf %90, %93 : vector<64x16xf32>
    %95 = math.exp %94 : vector<64x16xf32>
    %cst_44 = arith.constant dense<0.000000e+00> : vector<64xf32>
    %96 = vector.multi_reduction <add>, %95, %cst_44 [1] : vector<64x16xf32> to vector<64xf32>
    %97 = vector.shape_cast %96 : vector<64xf32> to vector<64x1xf32>
    %98 = tpu.reciprocal %97 {approx = true} : vector<64x1xf32> -> vector<64x1xf32>
    %99 = vector.broadcast %98 : vector<64x1xf32> to vector<64x16xf32>
    %100 = arith.mulf %95, %99 : vector<64x16xf32>
    %101 = vector.extract_strided_slice %59 {offsets = [32, 0], sizes = [16, 16], strides = [1, 1]} : vector<64x16xf32> to vector<16x16xf32>
    %cst_45 = arith.constant dense<0.000000e+00> : vector<64x16xf32>
    %102 = tpu.matmul %100, %101, %cst_45 {dimension_numbers = #tpu.dot_dimension_numbers<[1], [0], [0], [1], [0, 0, 1, 1], [], []>} : vector<64x16xf32>, vector<16x16xf32>, vector<64x16xf32> -> vector<64x16xf32>
    %103 = vector.extract_strided_slice %63 {offsets = [0, 48], sizes = [64, 16], strides = [1, 1]} : vector<64x64xf32> to vector<64x16xf32>
    %cst_46 = arith.constant dense<0xFF800000> : vector<64xf32>
    %104 = vector.multi_reduction <maximumf>, %103, %cst_46 [1] : vector<64x16xf32> to vector<64xf32>
    %105 = vector.shape_cast %104 : vector<64xf32> to vector<64x1xf32>
    %106 = vector.broadcast %105 : vector<64x1xf32> to vector<64x16xf32>
    %107 = arith.subf %103, %106 : vector<64x16xf32>
    %108 = math.exp %107 : vector<64x16xf32>
    %cst_47 = arith.constant dense<0.000000e+00> : vector<64xf32>
    %109 = vector.multi_reduction <add>, %108, %cst_47 [1] : vector<64x16xf32> to vector<64xf32>
    %110 = vector.shape_cast %109 : vector<64xf32> to vector<64x1xf32>
    %111 = tpu.reciprocal %110 {approx = true} : vector<64x1xf32> -> vector<64x1xf32>
    %112 = vector.broadcast %111 : vector<64x1xf32> to vector<64x16xf32>
    %113 = arith.mulf %108, %112 : vector<64x16xf32>
    %114 = vector.extract_strided_slice %59 {offsets = [48, 0], sizes = [16, 16], strides = [1, 1]} : vector<64x16xf32> to vector<16x16xf32>
    %cst_48 = arith.constant dense<0.000000e+00> : vector<64x16xf32>
    %115 = tpu.matmul %113, %114, %cst_48 {dimension_numbers = #tpu.dot_dimension_numbers<[1], [0], [0], [1], [0, 0, 1, 1], [], []>} : vector<64x16xf32>, vector<16x16xf32>, vector<64x16xf32> -> vector<64x16xf32>
    %116 = tpu.concatenate %76, %89, %102, %115 in 0 : vector<64x16xf32>, vector<64x16xf32>, vector<64x16xf32>, vector<64x16xf32> -> vector<256x16xf32>
    %c0_49 = arith.constant 0 : index
    %c0_50 = arith.constant 0 : index
    %117 = vector.load %arg12[%c0_49, %c0_50] : memref<16x16xf32, #tpu.memory_space<vmem>>, vector<16x16xf32>
    %cst_51 = arith.constant dense<0.000000e+00> : vector<256x16xf32>
    %118 = tpu.matmul %116, %117, %cst_51 {dimension_numbers = #tpu.dot_dimension_numbers<[1], [0], [0], [1], [0, 0, 1, 1], [], []>} : vector<256x16xf32>, vector<16x16xf32>, vector<256x16xf32> -> vector<256x16xf32>
    %c0_52 = arith.constant 0 : index
    %c0_53 = arith.constant 0 : index
    %119 = vector.load %arg13[%c0_52, %c0_53] : memref<1x16xf32, #tpu.memory_space<vmem>>, vector<1x16xf32>
    %120 = vector.broadcast %119 : vector<1x16xf32> to vector<256x16xf32>
    %121 = arith.addf %118, %120 : vector<256x16xf32>
    %122 = vector.shape_cast %121 : vector<256x16xf32> to vector<16x16x16xf32>
    %cst_54 = arith.constant dense<0.000000e+00> : vector<16x16xf32>
    %123 = vector.multi_reduction <add>, %122, %cst_54 [1] : vector<16x16x16xf32> to vector<16x16xf32>
    %cst_55 = arith.constant 1.600000e+01 : f32
    %124 = vector.broadcast %cst_55 : f32 to vector<16x16xf32>
    %125 = arith.divf %123, %124 : vector<16x16xf32>
    %c0_56 = arith.constant 0 : index
    %c0_57 = arith.constant 0 : index
    %126 = vector.load %arg14[%c0_56, %c0_57] : memref<16x16xf32, #tpu.memory_space<vmem>>, vector<16x16xf32>
    %127 = arith.mulf %125, %126 : vector<16x16xf32>
    %c0_58 = arith.constant 0 : index
    %c0_59 = arith.constant 0 : index
    %128 = vector.load %arg15[%c0_58, %c0_59] : memref<16x16xf32, #tpu.memory_space<vmem>>, vector<16x16xf32>
    %129 = arith.addf %127, %128 : vector<16x16xf32>
    %c0_60 = arith.constant 0 : index
    %c0_61 = arith.constant 0 : index
    %130 = vector.load %arg16[%c0_60, %c0_61] : memref<16x64xf32, #tpu.memory_space<vmem>>, vector<16x64xf32>
    %cst_62 = arith.constant dense<0.000000e+00> : vector<4x64xf32>
    %131 = tpu.matmul %24, %130, %cst_62 {dimension_numbers = #tpu.dot_dimension_numbers<[1], [0], [0], [1], [0, 0, 1, 1], [], []>} : vector<4x16xf32>, vector<16x64xf32>, vector<4x64xf32> -> vector<4x64xf32>
    %132 = vector.extract_strided_slice %131 {offsets = [0, 0], sizes = [4, 16], strides = [1, 1]} : vector<4x64xf32> to vector<4x16xf32>
    %133 = vector.extract_strided_slice %131 {offsets = [0, 16], sizes = [4, 16], strides = [1, 1]} : vector<4x64xf32> to vector<4x16xf32>
    %134 = vector.extract_strided_slice %131 {offsets = [0, 32], sizes = [4, 16], strides = [1, 1]} : vector<4x64xf32> to vector<4x16xf32>
    %135 = vector.extract_strided_slice %131 {offsets = [0, 48], sizes = [4, 16], strides = [1, 1]} : vector<4x64xf32> to vector<4x16xf32>
    %c0_63 = arith.constant 0 : index
    %c0_64 = arith.constant 0 : index
    %136 = vector.load %arg17[%c0_63, %c0_64] : memref<16x16xf32, #tpu.memory_space<vmem>>, vector<16x16xf32>
    %cst_65 = arith.constant dense<0.000000e+00> : vector<16x16xf32>
    %137 = tpu.matmul %129, %136, %cst_65 {dimension_numbers = #tpu.dot_dimension_numbers<[1], [0], [0], [1], [0, 0, 1, 1], [], []>} : vector<16x16xf32>, vector<16x16xf32>, vector<16x16xf32> -> vector<16x16xf32>
    %138 = vector.shape_cast %132 : vector<4x16xf32> to vector<4x1x16xf32>
    %139 = vector.shape_cast %138 : vector<4x1x16xf32> to vector<4x1x16xf32>
    %140 = vector.broadcast %139 : vector<4x1x16xf32> to vector<4x4x16xf32>
    %141 = vector.shape_cast %140 : vector<4x4x16xf32> to vector<16x16xf32>
    %142 = vector.shape_cast %133 : vector<4x16xf32> to vector<1x4x16xf32>
    %143 = vector.shape_cast %142 : vector<1x4x16xf32> to vector<1x4x16xf32>
    %144 = vector.broadcast %143 : vector<1x4x16xf32> to vector<4x4x16xf32>
    %145 = vector.shape_cast %144 : vector<4x4x16xf32> to vector<16x16xf32>
    %146 = arith.addf %141, %145 : vector<16x16xf32>
    %147 = arith.addf %146, %137 : vector<16x16xf32>
    %c0_66 = arith.constant 0 : index
    %c0_67 = arith.constant 0 : index
    %148 = vector.load %arg18[%c0_66, %c0_67] : memref<16x16xf32, #tpu.memory_space<vmem>>, vector<16x16xf32>
    %149 = arith.mulf %147, %148 : vector<16x16xf32>
    %c0_68 = arith.constant 0 : index
    %c0_69 = arith.constant 0 : index
    %150 = vector.load %arg19[%c0_68, %c0_69] : memref<16x16xf32, #tpu.memory_space<vmem>>, vector<16x16xf32>
    %151 = arith.addf %149, %150 : vector<16x16xf32>
    %cst_70 = arith.constant 0.000000e+00 : f32
    %152 = vector.broadcast %cst_70 : f32 to vector<16x16xf32>
    %153 = arith.maximumf %151, %152 : vector<16x16xf32>
    %154 = arith.addf %129, %153 : vector<16x16xf32>
    %155 = arith.negf %154 : vector<16x16xf32>
    %156 = math.exp %155 : vector<16x16xf32>
    %cst_71 = arith.constant 1.000000e+00 : f32
    %157 = vector.broadcast %cst_71 : f32 to vector<16x16xf32>
    %158 = arith.addf %157, %156 : vector<16x16xf32>
    %159 = arith.divf %157, %158 : vector<16x16xf32>
    %160 = math.exp %159 : vector<16x16xf32>
    %161 = vector.shape_cast %160 : vector<16x16xf32> to vector<4x4x16xf32>
    %cst_72 = arith.constant dense<0.000000e+00> : vector<4x16xf32>
    %162 = vector.multi_reduction <add>, %161, %cst_72 [1] : vector<4x4x16xf32> to vector<4x16xf32>
    %163 = vector.shape_cast %162 : vector<4x16xf32> to vector<4x1x16xf32>
    %164 = tpu.reciprocal %163 {approx = true} : vector<4x1x16xf32> -> vector<4x1x16xf32>
    %165 = vector.broadcast %164 : vector<4x1x16xf32> to vector<4x4x16xf32>
    %166 = arith.mulf %161, %165 : vector<4x4x16xf32>
    %167 = vector.shape_cast %134 : vector<4x16xf32> to vector<1x4x16xf32>
    %168 = vector.shape_cast %167 : vector<1x4x16xf32> to vector<1x4x16xf32>
    %169 = vector.broadcast %168 : vector<1x4x16xf32> to vector<4x4x16xf32>
    %170 = arith.mulf %166, %169 : vector<4x4x16xf32>
    %cst_73 = arith.constant dense<0.000000e+00> : vector<4x16xf32>
    %171 = vector.multi_reduction <add>, %170, %cst_73 [1] : vector<4x4x16xf32> to vector<4x16xf32>
    %cst_74 = arith.constant 2.500000e-01 : f32
    %172 = vector.broadcast %cst_74 : f32 to vector<4x16xf32>
    %173 = arith.mulf %171, %172 : vector<4x16xf32>
    %174 = arith.addf %135, %173 : vector<4x16xf32>
    %c0_75 = arith.constant 0 : index
    %c0_76 = arith.constant 0 : index
    %175 = vector.load %arg20[%c0_75, %c0_76] : memref<4x16xf32, #tpu.memory_space<vmem>>, vector<4x16xf32>
    %176 = arith.mulf %174, %175 : vector<4x16xf32>
    %177 = arith.addf %24, %176 : vector<4x16xf32>
    %c0_77 = arith.constant 0 : index
    %c0_78 = arith.constant 0 : index
    %178 = vector.load %arg21[%c0_77, %c0_78] : memref<4x16xf32, #tpu.memory_space<vmem>>, vector<4x16xf32>
    %179 = arith.addf %177, %178 : vector<4x16xf32>
    %cst_79 = arith.constant 0.000000e+00 : f32
    %180 = vector.broadcast %cst_79 : f32 to vector<4x16xf32>
    %181 = arith.maximumf %179, %180 : vector<4x16xf32>
    %c0_80 = arith.constant 0 : index
    %c0_81 = arith.constant 0 : index
    %182 = vector.load %arg22[%c0_80, %c0_81] : memref<16x64xf32, #tpu.memory_space<vmem>>, vector<16x64xf32>
    %cst_82 = arith.constant dense<0.000000e+00> : vector<4x64xf32>
    %183 = tpu.matmul %181, %182, %cst_82 {dimension_numbers = #tpu.dot_dimension_numbers<[1], [0], [0], [1], [0, 0, 1, 1], [], []>} : vector<4x16xf32>, vector<16x64xf32>, vector<4x64xf32> -> vector<4x64xf32>
    %184 = vector.extract_strided_slice %183 {offsets = [0, 0], sizes = [4, 16], strides = [1, 1]} : vector<4x64xf32> to vector<4x16xf32>
    %185 = vector.extract_strided_slice %183 {offsets = [0, 16], sizes = [4, 16], strides = [1, 1]} : vector<4x64xf32> to vector<4x16xf32>
    %186 = vector.extract_strided_slice %183 {offsets = [0, 32], sizes = [4, 16], strides = [1, 1]} : vector<4x64xf32> to vector<4x16xf32>
    %187 = vector.extract_strided_slice %183 {offsets = [0, 48], sizes = [4, 16], strides = [1, 1]} : vector<4x64xf32> to vector<4x16xf32>
    %c0_83 = arith.constant 0 : index
    %c0_84 = arith.constant 0 : index
    %188 = vector.load %arg23[%c0_83, %c0_84] : memref<16x16xf32, #tpu.memory_space<vmem>>, vector<16x16xf32>
    %cst_85 = arith.constant dense<0.000000e+00> : vector<16x16xf32>
    %189 = tpu.matmul %154, %188, %cst_85 {dimension_numbers = #tpu.dot_dimension_numbers<[1], [0], [0], [1], [0, 0, 1, 1], [], []>} : vector<16x16xf32>, vector<16x16xf32>, vector<16x16xf32> -> vector<16x16xf32>
    %190 = vector.shape_cast %184 : vector<4x16xf32> to vector<4x1x16xf32>
    %191 = vector.shape_cast %190 : vector<4x1x16xf32> to vector<4x1x16xf32>
    %192 = vector.broadcast %191 : vector<4x1x16xf32> to vector<4x4x16xf32>
    %193 = vector.shape_cast %192 : vector<4x4x16xf32> to vector<16x16xf32>
    %194 = vector.shape_cast %185 : vector<4x16xf32> to vector<1x4x16xf32>
    %195 = vector.shape_cast %194 : vector<1x4x16xf32> to vector<1x4x16xf32>
    %196 = vector.broadcast %195 : vector<1x4x16xf32> to vector<4x4x16xf32>
    %197 = vector.shape_cast %196 : vector<4x4x16xf32> to vector<16x16xf32>
    %198 = arith.addf %193, %197 : vector<16x16xf32>
    %199 = arith.addf %198, %189 : vector<16x16xf32>
    %c0_86 = arith.constant 0 : index
    %c0_87 = arith.constant 0 : index
    %200 = vector.load %arg24[%c0_86, %c0_87] : memref<16x16xf32, #tpu.memory_space<vmem>>, vector<16x16xf32>
    %201 = arith.mulf %199, %200 : vector<16x16xf32>
    %c0_88 = arith.constant 0 : index
    %c0_89 = arith.constant 0 : index
    %202 = vector.load %arg25[%c0_88, %c0_89] : memref<16x16xf32, #tpu.memory_space<vmem>>, vector<16x16xf32>
    %203 = arith.addf %201, %202 : vector<16x16xf32>
    %cst_90 = arith.constant 0.000000e+00 : f32
    %204 = vector.broadcast %cst_90 : f32 to vector<16x16xf32>
    %205 = arith.maximumf %203, %204 : vector<16x16xf32>
    %206 = arith.addf %154, %205 : vector<16x16xf32>
    %207 = arith.negf %206 : vector<16x16xf32>
    %208 = math.exp %207 : vector<16x16xf32>
    %cst_91 = arith.constant 1.000000e+00 : f32
    %209 = vector.broadcast %cst_91 : f32 to vector<16x16xf32>
    %210 = arith.addf %209, %208 : vector<16x16xf32>
    %211 = arith.divf %209, %210 : vector<16x16xf32>
    %212 = math.exp %211 : vector<16x16xf32>
    %213 = vector.shape_cast %212 : vector<16x16xf32> to vector<4x4x16xf32>
    %cst_92 = arith.constant dense<0.000000e+00> : vector<4x16xf32>
    %214 = vector.multi_reduction <add>, %213, %cst_92 [1] : vector<4x4x16xf32> to vector<4x16xf32>
    %215 = vector.shape_cast %214 : vector<4x16xf32> to vector<4x1x16xf32>
    %216 = tpu.reciprocal %215 {approx = true} : vector<4x1x16xf32> -> vector<4x1x16xf32>
    %217 = vector.broadcast %216 : vector<4x1x16xf32> to vector<4x4x16xf32>
    %218 = arith.mulf %213, %217 : vector<4x4x16xf32>
    %219 = vector.shape_cast %186 : vector<4x16xf32> to vector<1x4x16xf32>
    %220 = vector.shape_cast %219 : vector<1x4x16xf32> to vector<1x4x16xf32>
    %221 = vector.broadcast %220 : vector<1x4x16xf32> to vector<4x4x16xf32>
    %222 = arith.mulf %218, %221 : vector<4x4x16xf32>
    %cst_93 = arith.constant dense<0.000000e+00> : vector<4x16xf32>
    %223 = vector.multi_reduction <add>, %222, %cst_93 [1] : vector<4x4x16xf32> to vector<4x16xf32>
    %cst_94 = arith.constant 2.500000e-01 : f32
    %224 = vector.broadcast %cst_94 : f32 to vector<4x16xf32>
    %225 = arith.mulf %223, %224 : vector<4x16xf32>
    %226 = arith.addf %187, %225 : vector<4x16xf32>
    %c0_95 = arith.constant 0 : index
    %c0_96 = arith.constant 0 : index
    %227 = vector.load %arg26[%c0_95, %c0_96] : memref<4x16xf32, #tpu.memory_space<vmem>>, vector<4x16xf32>
    %228 = arith.mulf %226, %227 : vector<4x16xf32>
    %229 = arith.addf %181, %228 : vector<4x16xf32>
    %c0_97 = arith.constant 0 : index
    %c0_98 = arith.constant 0 : index
    %230 = vector.load %arg27[%c0_97, %c0_98] : memref<4x16xf32, #tpu.memory_space<vmem>>, vector<4x16xf32>
    %231 = arith.addf %229, %230 : vector<4x16xf32>
    %cst_99 = arith.constant 0.000000e+00 : f32
    %232 = vector.broadcast %cst_99 : f32 to vector<4x16xf32>
    %233 = arith.maximumf %231, %232 : vector<4x16xf32>
    %c0_100 = arith.constant 0 : index
    %c0_101 = arith.constant 0 : index
    %234 = vector.load %arg28[%c0_100, %c0_101] : memref<4x16xf32, #tpu.memory_space<vmem>>, vector<4x16xf32>
    %cst_102 = arith.constant 0.000000e+00 : f32
    %235 = vector.broadcast %cst_102 : f32 to vector<4x16xf32>
    %236 = arith.maximumf %234, %235 : vector<4x16xf32>
    %237 = arith.mulf %236, %236 : vector<4x16xf32>
    %cst_103 = arith.constant dense<0.000000e+00> : vector<4xf32>
    %238 = vector.multi_reduction <add>, %237, %cst_103 [1] : vector<4x16xf32> to vector<4xf32>
    %239 = vector.shape_cast %238 : vector<4xf32> to vector<4x1xf32>
    %cst_104 = arith.constant 1.000000e-24 : f32
    %240 = vector.broadcast %cst_104 : f32 to vector<4x1xf32>
    %241 = arith.addf %239, %240 : vector<4x1xf32>
    %242 = math.rsqrt %241 : vector<4x1xf32>
    %243 = vector.broadcast %242 : vector<4x1xf32> to vector<4x16xf32>
    %244 = arith.mulf %236, %243 : vector<4x16xf32>
    %245 = arith.mulf %233, %233 : vector<4x16xf32>
    %cst_105 = arith.constant dense<0.000000e+00> : vector<4xf32>
    %246 = vector.multi_reduction <add>, %245, %cst_105 [1] : vector<4x16xf32> to vector<4xf32>
    %247 = vector.shape_cast %246 : vector<4xf32> to vector<4x1xf32>
    %cst_106 = arith.constant 1.000000e-24 : f32
    %248 = vector.broadcast %cst_106 : f32 to vector<4x1xf32>
    %249 = arith.addf %247, %248 : vector<4x1xf32>
    %250 = math.rsqrt %249 : vector<4x1xf32>
    %251 = vector.broadcast %250 : vector<4x1xf32> to vector<4x16xf32>
    %252 = arith.mulf %233, %251 : vector<4x16xf32>
    %253 = arith.mulf %252, %244 : vector<4x16xf32>
    %cst_107 = arith.constant dense<0.000000e+00> : vector<4xf32>
    %254 = vector.multi_reduction <add>, %253, %cst_107 [1] : vector<4x16xf32> to vector<4xf32>
    %255 = vector.shape_cast %254 : vector<4xf32> to vector<1x1x4xf32>
    %c0_108 = arith.constant 0 : index
    %c0_109 = arith.constant 0 : index
    %c0_110 = arith.constant 0 : index
    %256 = vector.load %arg31[%c0_108, %c0_109, %c0_110] : memref<1x1x4xf32, #tpu.memory_space<vmem>>, vector<1x1x4xf32>
    tpu.vector_store %arg31[%c0_108, %c0_109, %c0_110], %255 {strides = array<i32>} : memref<1x1x4xf32, #tpu.memory_space<vmem>>, vector<1x1x4xf32>,
    %c0_111 = arith.constant 0 : index
    %c0_112 = arith.constant 0 : index
    %257 = vector.load %arg29[%c0_111, %c0_112] : memref<16x4xf32, #tpu.memory_space<vmem>>, vector<16x4xf32>
    %cst_113 = arith.constant dense<0.000000e+00> : vector<16x4xf32>
    %258 = tpu.matmul %206, %257, %cst_113 {dimension_numbers = #tpu.dot_dimension_numbers<[1], [0], [0], [1], [0, 0, 1, 1], [], []>} : vector<16x16xf32>, vector<16x4xf32>, vector<16x4xf32> -> vector<16x4xf32>
    %c0_114 = arith.constant 0 : index
    %c0_115 = arith.constant 0 : index
    %259 = vector.load %arg30[%c0_114, %c0_115] : memref<1x4xf32, #tpu.memory_space<vmem>>, vector<1x4xf32>
    %260 = vector.broadcast %259 : vector<1x4xf32> to vector<16x4xf32>
    %261 = arith.addf %258, %260 : vector<16x4xf32>
    %262 = vector.shape_cast %261 : vector<16x4xf32> to vector<1x16x4xf32>
    %c0_116 = arith.constant 0 : index
    %c0_117 = arith.constant 0 : index
    %c0_118 = arith.constant 0 : index
    %263 = vector.load %arg32[%c0_116, %c0_117, %c0_118] : memref<1x16x4xf32, #tpu.memory_space<vmem>>, vector<1x16x4xf32>
    tpu.vector_store %arg32[%c0_116, %c0_117, %c0_118], %262 {strides = array<i32>} : memref<1x16x4xf32, #tpu.memory_space<vmem>>, vector<1x16x4xf32>,
    return
  }
  func.func @transform_0(%arg0: i32) -> (i32, i32, i32) {
    %c0_i32 = arith.constant 0 : i32
    %c0_i32_0 = arith.constant 0 : i32
    %c0_i32_1 = arith.constant 0 : i32
    return %arg0, %c0_i32, %c0_i32_0 : i32, i32, i32
  }
  func.func @transform_1(%arg0: i32) -> (i32, i32) {
    %c0_i32 = arith.constant 0 : i32
    %c0_i32_0 = arith.constant 0 : i32
    %c0_i32_1 = arith.constant 0 : i32
    return %c0_i32, %c0_i32_0 : i32, i32
  }
  func.func @transform_2(%arg0: i32) -> (i32, i32) {
    %c0_i32 = arith.constant 0 : i32
    %c0_i32_0 = arith.constant 0 : i32
    %c0_i32_1 = arith.constant 0 : i32
    return %c0_i32, %c0_i32_0 : i32, i32
  }
  func.func @transform_3(%arg0: i32) -> (i32, i32) {
    %c0_i32 = arith.constant 0 : i32
    %c0_i32_0 = arith.constant 0 : i32
    %c0_i32_1 = arith.constant 0 : i32
    return %c0_i32, %c0_i32_0 : i32, i32
  }
  func.func @transform_4(%arg0: i32) -> (i32, i32) {
    %c0_i32 = arith.constant 0 : i32
    %c0_i32_0 = arith.constant 0 : i32
    %c0_i32_1 = arith.constant 0 : i32
    return %c0_i32, %c0_i32_0 : i32, i32
  }
  func.func @transform_5(%arg0: i32) -> (i32, i32) {
    %c0_i32 = arith.constant 0 : i32
    %c0_i32_0 = arith.constant 0 : i32
    %c0_i32_1 = arith.constant 0 : i32
    return %c0_i32, %c0_i32_0 : i32, i32
  }
  func.func @transform_6(%arg0: i32) -> (i32, i32) {
    %c0_i32 = arith.constant 0 : i32
    %c0_i32_0 = arith.constant 0 : i32
    %c0_i32_1 = arith.constant 0 : i32
    return %c0_i32, %c0_i32_0 : i32, i32
  }
  func.func @transform_7(%arg0: i32) -> (i32, i32) {
    %c0_i32 = arith.constant 0 : i32
    %c0_i32_0 = arith.constant 0 : i32
    %c0_i32_1 = arith.constant 0 : i32
    return %c0_i32, %c0_i32_0 : i32, i32
  }
  func.func @transform_8(%arg0: i32) -> (i32, i32) {
    %c0_i32 = arith.constant 0 : i32
    %c0_i32_0 = arith.constant 0 : i32
    %c0_i32_1 = arith.constant 0 : i32
    return %c0_i32, %c0_i32_0 : i32, i32
  }
  func.func @transform_9(%arg0: i32) -> (i32, i32) {
    %c0_i32 = arith.constant 0 : i32
    %c0_i32_0 = arith.constant 0 : i32
    %c0_i32_1 = arith.constant 0 : i32
    return %c0_i32, %c0_i32_0 : i32, i32
  }
  func.func @transform_10(%arg0: i32) -> (i32, i32) {
    %c0_i32 = arith.constant 0 : i32
    %c0_i32_0 = arith.constant 0 : i32
    %c0_i32_1 = arith.constant 0 : i32
    return %c0_i32, %c0_i32_0 : i32, i32
  }
  func.func @transform_11(%arg0: i32) -> (i32, i32) {
    %c0_i32 = arith.constant 0 : i32
    %c0_i32_0 = arith.constant 0 : i32
    %c0_i32_1 = arith.constant 0 : i32
    return %c0_i32, %c0_i32_0 : i32, i32
  }
  func.func @transform_12(%arg0: i32) -> (i32, i32) {
    %c0_i32 = arith.constant 0 : i32
    %c0_i32_0 = arith.constant 0 : i32
    %c0_i32_1 = arith.constant 0 : i32
    return %c0_i32, %c0_i32_0 : i32, i32
  }
  func.func @transform_13(%arg0: i32) -> (i32, i32) {
    %c0_i32 = arith.constant 0 : i32
    %c0_i32_0 = arith.constant 0 : i32
    %c0_i32_1 = arith.constant 0 : i32
    return %c0_i32, %c0_i32_0 : i32, i32
  }
  func.func @transform_14(%arg0: i32) -> (i32, i32) {
    %c0_i32 = arith.constant 0 : i32
    %c0_i32_0 = arith.constant 0 : i32
    %c0_i32_1 = arith.constant 0 : i32
    return %c0_i32, %c0_i32_0 : i32, i32
  }
  func.func @transform_15(%arg0: i32) -> (i32, i32) {
    %c0_i32 = arith.constant 0 : i32
    %c0_i32_0 = arith.constant 0 : i32
    %c0_i32_1 = arith.constant 0 : i32
    return %c0_i32, %c0_i32_0 : i32, i32
  }
  func.func @transform_16(%arg0: i32) -> (i32, i32) {
    %c0_i32 = arith.constant 0 : i32
    %c0_i32_0 = arith.constant 0 : i32
    %c0_i32_1 = arith.constant 0 : i32
    return %c0_i32, %c0_i32_0 : i32, i32
  }
  func.func @transform_17(%arg0: i32) -> (i32, i32) {
    %c0_i32 = arith.constant 0 : i32
    %c0_i32_0 = arith.constant 0 : i32
    %c0_i32_1 = arith.constant 0 : i32
    return %c0_i32, %c0_i32_0 : i32, i32
  }
  func.func @transform_18(%arg0: i32) -> (i32, i32) {
    %c0_i32 = arith.constant 0 : i32
    %c0_i32_0 = arith.constant 0 : i32
    %c0_i32_1 = arith.constant 0 : i32
    return %c0_i32, %c0_i32_0 : i32, i32
  }
  func.func @transform_19(%arg0: i32) -> (i32, i32) {
    %c0_i32 = arith.constant 0 : i32
    %c0_i32_0 = arith.constant 0 : i32
    %c0_i32_1 = arith.constant 0 : i32
    return %c0_i32, %c0_i32_0 : i32, i32
  }
  func.func @transform_20(%arg0: i32) -> (i32, i32) {
    %c0_i32 = arith.constant 0 : i32
    %c0_i32_0 = arith.constant 0 : i32
    %c0_i32_1 = arith.constant 0 : i32
    return %c0_i32, %c0_i32_0 : i32, i32
  }
  func.func @transform_21(%arg0: i32) -> (i32, i32) {
    %c0_i32 = arith.constant 0 : i32
    %c0_i32_0 = arith.constant 0 : i32
    %c0_i32_1 = arith.constant 0 : i32
    return %c0_i32, %c0_i32_0 : i32, i32
  }
  func.func @transform_22(%arg0: i32) -> (i32, i32) {
    %c0_i32 = arith.constant 0 : i32
    %c0_i32_0 = arith.constant 0 : i32
    %c0_i32_1 = arith.constant 0 : i32
    return %c0_i32, %c0_i32_0 : i32, i32
  }
  func.func @transform_23(%arg0: i32) -> (i32, i32) {
    %c0_i32 = arith.constant 0 : i32
    %c0_i32_0 = arith.constant 0 : i32
    %c0_i32_1 = arith.constant 0 : i32
    return %c0_i32, %c0_i32_0 : i32, i32
  }
  func.func @transform_24(%arg0: i32) -> (i32, i32) {
    %c0_i32 = arith.constant 0 : i32
    %c0_i32_0 = arith.constant 0 : i32
    %c0_i32_1 = arith.constant 0 : i32
    return %c0_i32, %c0_i32_0 : i32, i32
  }
  func.func @transform_25(%arg0: i32) -> (i32, i32) {
    %c0_i32 = arith.constant 0 : i32
    %c0_i32_0 = arith.constant 0 : i32
    %c0_i32_1 = arith.constant 0 : i32
    return %c0_i32, %c0_i32_0 : i32, i32
  }
  func.func @transform_26(%arg0: i32) -> (i32, i32) {
    %c0_i32 = arith.constant 0 : i32
    %c0_i32_0 = arith.constant 0 : i32
    %c0_i32_1 = arith.constant 0 : i32
    return %c0_i32, %c0_i32_0 : i32, i32
  }
  func.func @transform_27(%arg0: i32) -> (i32, i32) {
    %c0_i32 = arith.constant 0 : i32
    %c0_i32_0 = arith.constant 0 : i32
    %c0_i32_1 = arith.constant 0 : i32
    return %c0_i32, %c0_i32_0 : i32, i32
  }
  func.func @transform_28(%arg0: i32) -> (i32, i32) {
    %c0_i32 = arith.constant 0 : i32
    %c0_i32_0 = arith.constant 0 : i32
    %c0_i32_1 = arith.constant 0 : i32
    return %c0_i32, %c0_i32_0 : i32, i32
  }
  func.func @transform_29(%arg0: i32) -> (i32, i32) {
    %c0_i32 = arith.constant 0 : i32
    %c0_i32_0 = arith.constant 0 : i32
    %c0_i32_1 = arith.constant 0 : i32
    return %c0_i32, %c0_i32_0 : i32, i32
  }
  func.func @transform_30(%arg0: i32) -> (i32, i32, i32) {
    %c0_i32 = arith.constant 0 : i32
    %c0_i32_0 = arith.constant 0 : i32
    %c0_i32_1 = arith.constant 0 : i32
    return %arg0, %c0_i32, %c0_i32_0 : i32, i32, i32
  }
  func.func @transform_31(%arg0: i32) -> (i32, i32, i32) {
    %c0_i32 = arith.constant 0 : i32
    %c0_i32_0 = arith.constant 0 : i32
    %c0_i32_1 = arith.constant 0 : i32
    return %arg0, %c0_i32, %c0_i32_0 : i32, i32, i32
  }
}

</mosaic_0001>

<llo_original>
// kernel: mefarg_forward.1
$region0: #{mefarg_forward.1}
  #allocation0 [shape = 'u32[]', space=smem, size = 0x4, offset = 0x4, fixed_abs, tag = 'smem constant byte address 0x4 - core index']
  #allocation1 [shape = 'u32[72,128]{1,0:T(1,128)}', space=vmem, size = 0x9000, scoped, tag = 'internal scratch']
  %s0 = inlined_call_operand.smem [shape: u32[32], index: -1, kind: input, shape index: {}]
  %s1 = sld [smem:[%s0]]
  %s2 = scalar_lea.smem %s0, 1
  %s3 = sld [smem:[%s2]]
  %s4 = scalar_lea.smem %s0, 2
  %s5 = sld [smem:[%s4]]
  %s6 = scalar_lea.smem %s0, 3
  %s7 = sld [smem:[%s6]]
  %s8 = scalar_lea.smem %s0, 4
  %s9 = sld [smem:[%s8]]
  %s10 = scalar_lea.smem %s0, 5
  %s11 = sld [smem:[%s10]]
  %s12 = scalar_lea.smem %s0, 6
  %s13 = sld [smem:[%s12]]
  %s14 = scalar_lea.smem %s0, 7
  %s15 = sld [smem:[%s14]]
  %s16 = scalar_lea.smem %s0, 8
  %s17 = sld [smem:[%s16]]
  %s18 = scalar_lea.smem %s0, 9
  %s19 = sld [smem:[%s18]]
  %s20 = scalar_lea.smem %s0, 10
  %s21 = sld [smem:[%s20]]
  %s22 = scalar_lea.smem %s0, 11
  %s23 = sld [smem:[%s22]]
  %s24 = scalar_lea.smem %s0, 12
  %s25 = sld [smem:[%s24]]
  %s26 = scalar_lea.smem %s0, 13
  %s27 = sld [smem:[%s26]]
  %s28 = scalar_lea.smem %s0, 14
  %s29 = sld [smem:[%s28]]
  %s30 = scalar_lea.smem %s0, 15
  %s31 = sld [smem:[%s30]]
  %s32 = scalar_lea.smem %s0, 16
  %s33 = sld [smem:[%s32]]
  %s34 = scalar_lea.smem %s0, 17
  %s35 = sld [smem:[%s34]]
  %s36 = scalar_lea.smem %s0, 18
  %s37 = sld [smem:[%s36]]
  %s38 = scalar_lea.smem %s0, 19
  %s39 = sld [smem:[%s38]]
  %s40 = scalar_lea.smem %s0, 20
  %s41 = sld [smem:[%s40]]
  %s42 = scalar_lea.smem %s0, 21
  %s43 = sld [smem:[%s42]]
  %s44 = scalar_lea.smem %s0, 22
  %s45 = sld [smem:[%s44]]
  %s46 = scalar_lea.smem %s0, 23
  %s47 = sld [smem:[%s46]]
  %s48 = scalar_lea.smem %s0, 24
  %s49 = sld [smem:[%s48]]
  %s50 = scalar_lea.smem %s0, 25
  %s51 = sld [smem:[%s50]]
  %s52 = scalar_lea.smem %s0, 26
  %s53 = sld [smem:[%s52]]
  %s54 = scalar_lea.smem %s0, 27
  %s55 = sld [smem:[%s54]]
  %s56 = scalar_lea.smem %s0, 28
  %s57 = sld [smem:[%s56]]
  %s58 = scalar_lea.smem %s0, 29
  %s59 = sld [smem:[%s58]]
  %s60 = scalar_lea.smem %s0, 30
  %s61 = sld [smem:[%s60]]
  %s62 = scalar_lea.smem %s0, 31
  %s63 = sld [smem:[%s62]]
  %64 = xla_tuple %s61, %s63
  %s65 = sld [smem:[#allocation0]]
  $region161: #{mefarg_forward.1} parent=0
    _
  %s67 = ssub.s32 1, %s65
  %s68 = scalar_select 0, %s67, %s65
  $region1: #{mefarg_forward.1} parent=0
    #allocation2 [shape = 'u8[1024]{0}', space=vmem, size = 0x400, scoped, tag = 'output window, operand 0']
    #allocation3 [shape = 's32[2]{0}', space=sflag, size = 0x8, scoped, tag = 'scoped memory for mefarg_forward.1']
    %69 = vsyncpa [#allocation3], 0
    %s70 = scalar_lea.sflag [#allocation3], 1
    %71 = vsyncpa %s70, 0
    loop: start=0, step=1, limit=4
    $region2: #{mefarg_forward.1} parent=1 // loop_pre_header
      _
    $region3: #{mefarg_forward.1} parent=1 // loop_header
      %s73 = sphi 0, %s77
      %p74 = scmp.ge.s32.totalorder %s73, 4
      %s83 = sphi 0, %s85
      %s86 = sphi 0, %s83
      %s87 = sphi 0, %s86
      %s103 = sphi 0, %s87
      %s107 = sphi 0, %s107
      %s109 = sphi 0, %s107
      %s110 = sphi 0, %s109
      %s124 = sphi 0, %s110
      %s128 = sphi 0, %s128
      %s130 = sphi 0, %s128
      %s131 = sphi 0, %s130
      %s145 = sphi 0, %s131
      %s149 = sphi 0, %s149
      %s151 = sphi 0, %s149
      %s152 = sphi 0, %s151
      %s166 = sphi 0, %s152
      %s170 = sphi 0, %s170
      %s172 = sphi 0, %s170
      %s173 = sphi 0, %s172
      %s187 = sphi 0, %s173
      %s191 = sphi 0, %s191
      %s193 = sphi 0, %s191
      %s194 = sphi 0, %s193
      %s208 = sphi 0, %s194
      %s212 = sphi 0, %s212
      %s214 = sphi 0, %s212
      %s215 = sphi 0, %s214
      %s229 = sphi 0, %s215
      %s233 = sphi 0, %s233
      %s235 = sphi 0, %s233
      %s236 = sphi 0, %s235
      %s250 = sphi 0, %s236
      %s254 = sphi 0, %s254
      %s256 = sphi 0, %s254
      %s257 = sphi 0, %s256
      %s271 = sphi 0, %s257
      %s275 = sphi 0, %s275
      %s277 = sphi 0, %s275
      %s278 = sphi 0, %s277
      %s292 = sphi 0, %s278
      %s296 = sphi 0, %s296
      %s298 = sphi 0, %s296
      %s299 = sphi 0, %s298
      %s313 = sphi 0, %s299
      %s317 = sphi 0, %s317
      %s319 = sphi 0, %s317
      %s320 = sphi 0, %s319
      %s334 = sphi 0, %s320
      %s338 = sphi 0, %s338
      %s340 = sphi 0, %s338
      %s341 = sphi 0, %s340
      %s355 = sphi 0, %s341
      %s359 = sphi 0, %s359
      %s361 = sphi 0, %s359
      %s362 = sphi 0, %s361
      %s376 = sphi 0, %s362
      %s380 = sphi 0, %s380
      %s382 = sphi 0, %s380
      %s383 = sphi 0, %s382
      %s397 = sphi 0, %s383
      %s401 = sphi 0, %s401
      %s403 = sphi 0, %s401
      %s404 = sphi 0, %s403
      %s418 = sphi 0, %s404
      %s422 = sphi 0, %s422
      %s424 = sphi 0, %s422
      %s425 = sphi 0, %s424
      %s439 = sphi 0, %s425
      %s443 = sphi 0, %s443
      %s445 = sphi 0, %s443
      %s446 = sphi 0, %s445
      %s460 = sphi 0, %s446
      %s464 = sphi 0, %s464
      %s466 = sphi 0, %s464
      %s467 = sphi 0, %s466
      %s481 = sphi 0, %s467
      %s485 = sphi 0, %s485
      %s487 = sphi 0, %s485
      %s488 = sphi 0, %s487
      %s502 = sphi 0, %s488
      %s506 = sphi 0, %s506
      %s508 = sphi 0, %s506
      %s509 = sphi 0, %s508
      %s523 = sphi 0, %s509
      %s527 = sphi 0, %s527
      %s529 = sphi 0, %s527
      %s530 = sphi 0, %s529
      %s544 = sphi 0, %s530
      %s548 = sphi 0, %s548
      %s550 = sphi 0, %s548
      %s551 = sphi 0, %s550
      %s565 = sphi 0, %s551
      %s569 = sphi 0, %s569
      %s571 = sphi 0, %s569
      %s572 = sphi 0, %s571
      %s586 = sphi 0, %s572
      %s590 = sphi 0, %s590
      %s592 = sphi 0, %s590
      %s593 = sphi 0, %s592
      %s607 = sphi 0, %s593
      %s611 = sphi 0, %s611
      %s613 = sphi 0, %s611
      %s614 = sphi 0, %s613
      %s628 = sphi 0, %s614
      %s632 = sphi 0, %s632
      %s634 = sphi 0, %s632
      %s635 = sphi 0, %s634
      %s649 = sphi 0, %s635
      %s653 = sphi 0, %s653
      %s655 = sphi 0, %s653
      %s656 = sphi 0, %s655
      %s670 = sphi 0, %s656
      %s674 = sphi 0, %s674
      %s676 = sphi 0, %s674
      %s677 = sphi 0, %s676
      %s691 = sphi 0, %s677
      %s695 = sphi 0, %s695
      %s697 = sphi 0, %s695
      %s698 = sphi 0, %s697
      %s712 = sphi 0, %s698
      %s718 = sphi 0, %s720
      %s721 = sphi 0, %s718
      %s722 = sphi 0, %s721
      %s738 = sphi 0, %s722
      %s744 = sphi 0, %s746
      %s747 = sphi 0, %s744
      %s748 = sphi 0, %s747
      %s764 = sphi 0, %s748
    $region4: #{mefarg_forward.1} parent=1 // loop_header_branch
      %76 = sbr.rel (%p74) target = $region8
    $region5: #{mefarg_forward.1} parent=1 // loop_body
      %s78 = ssub.s32 %s73, 1
      %s79 = ssub.s32 %s73, 2
      %s80 = sadd.s32 %s73, 1
      %s81 = ssub.s32 %s73, %s80
      %p82 = scmp.eq.s32.totalorder %s81, 0
      %s84 = sadd.s32 %s83, 1
      %s85 = scalar_select %p82, %s83, %s84
      %p88 = pneg %p82
      %p89 = scmp.eq.s32.totalorder %s73, 1
      %p90 = por %p88, %p89
      %p91 = scmp.ne.s32.totalorder %s83, %s86
      %p92 = scmp.eq.s32.totalorder %s73, 0
      %p93 = por %p91, %p92
      %p94 = scmp.ne.s32.totalorder %s83, %s86
      %p95 = scmp.eq.s32.totalorder %s78, 1
      %p96 = por %p94, %p95
      %p97 = scmp.ne.s32.totalorder %s86, %s87
      %p98 = scmp.eq.s32.totalorder %s78, 0
      %p99 = por %p97, %p98
      %p100 = scmp.ne.s32.totalorder %s86, %s87
      %p101 = scmp.eq.s32.totalorder %s79, 1
      %p102 = por %p100, %p101
      %p104 = scmp.ne.s32.totalorder %s87, %s103
      %p105 = scmp.eq.s32.totalorder %s79, 0
      %p106 = por %p104, %p105
      %s108 = sadd.s32 %s107, 1
      %p111 = scmp.eq.s32.totalorder %s73, 1
      %p112 = scmp.ne.s32.totalorder %s107, %s109
      %p113 = scmp.eq.s32.totalorder %s73, 0
      %p114 = por %p112, %p113
      %p115 = scmp.ne.s32.totalorder %s107, %s109
      %p116 = scmp.eq.s32.totalorder %s78, 1
      %p117 = por %p115, %p116
      %p118 = scmp.ne.s32.totalorder %s109, %s110
      %p119 = scmp.eq.s32.totalorder %s78, 0
      %p120 = por %p118, %p119
      %p121 = scmp.ne.s32.totalorder %s109, %s110
      %p122 = scmp.eq.s32.totalorder %s79, 1
      %p123 = por %p121, %p122
      %p125 = scmp.ne.s32.totalorder %s110, %s124
      %p126 = scmp.eq.s32.totalorder %s79, 0
      %p127 = por %p125, %p126
      %s129 = sadd.s32 %s128, 1
      %p132 = scmp.eq.s32.totalorder %s73, 1
      %p133 = scmp.ne.s32.totalorder %s128, %s130
      %p134 = scmp.eq.s32.totalorder %s73, 0
      %p135 = por %p133, %p134
      %p136 = scmp.ne.s32.totalorder %s128, %s130
      %p137 = scmp.eq.s32.totalorder %s78, 1
      %p138 = por %p136, %p137
      %p139 = scmp.ne.s32.totalorder %s130, %s131
      %p140 = scmp.eq.s32.totalorder %s78, 0
      %p141 = por %p139, %p140
      %p142 = scmp.ne.s32.totalorder %s130, %s131
      %p143 = scmp.eq.s32.totalorder %s79, 1
      %p144 = por %p142, %p143
      %p146 = scmp.ne.s32.totalorder %s131, %s145
      %p147 = scmp.eq.s32.totalorder %s79, 0
      %p148 = por %p146, %p147
      %s150 = sadd.s32 %s149, 1
      %p153 = scmp.eq.s32.totalorder %s73, 1
      %p154 = scmp.ne.s32.totalorder %s149, %s151
      %p155 = scmp.eq.s32.totalorder %s73, 0
      %p156 = por %p154, %p155
      %p157 = scmp.ne.s32.totalorder %s149, %s151
      %p158 = scmp.eq.s32.totalorder %s78, 1
      %p159 = por %p157, %p158
      %p160 = scmp.ne.s32.totalorder %s151, %s152
      %p161 = scmp.eq.s32.totalorder %s78, 0
      %p162 = por %p160, %p161
      %p163 = scmp.ne.s32.totalorder %s151, %s152
      %p164 = scmp.eq.s32.totalorder %s79, 1
      %p165 = por %p163, %p164
      %p167 = scmp.ne.s32.totalorder %s152, %s166
      %p168 = scmp.eq.s32.totalorder %s79, 0
      %p169 = por %p167, %p168
      %s171 = sadd.s32 %s170, 1
      %p174 = scmp.eq.s32.totalorder %s73, 1
      %p175 = scmp.ne.s32.totalorder %s170, %s172
      %p176 = scmp.eq.s32.totalorder %s73, 0
      %p177 = por %p175, %p176
      %p178 = scmp.ne.s32.totalorder %s170, %s172
      %p179 = scmp.eq.s32.totalorder %s78, 1
      %p180 = por %p178, %p179
      %p181 = scmp.ne.s32.totalorder %s172, %s173
      %p182 = scmp.eq.s32.totalorder %s78, 0
      %p183 = por %p181, %p182
      %p184 = scmp.ne.s32.totalorder %s172, %s173
      %p185 = scmp.eq.s32.totalorder %s79, 1
      %p186 = por %p184, %p185
      %p188 = scmp.ne.s32.totalorder %s173, %s187
      %p189 = scmp.eq.s32.totalorder %s79, 0
      %p190 = por %p188, %p189
      %s192 = sadd.s32 %s191, 1
      %p195 = scmp.eq.s32.totalorder %s73, 1
      %p196 = scmp.ne.s32.totalorder %s191, %s193
      %p197 = scmp.eq.s32.totalorder %s73, 0
      %p198 = por %p196, %p197
      %p199 = scmp.ne.s32.totalorder %s191, %s193
      %p200 = scmp.eq.s32.totalorder %s78, 1
      %p201 = por %p199, %p200
      %p202 = scmp.ne.s32.totalorder %s193, %s194
      %p203 = scmp.eq.s32.totalorder %s78, 0
      %p204 = por %p202, %p203
      %p205 = scmp.ne.s32.totalorder %s193, %s194
      %p206 = scmp.eq.s32.totalorder %s79, 1
      %p207 = por %p205, %p206
      %p209 = scmp.ne.s32.totalorder %s194, %s208
      %p210 = scmp.eq.s32.totalorder %s79, 0
      %p211 = por %p209, %p210
      %s213 = sadd.s32 %s212, 1
      %p216 = scmp.eq.s32.totalorder %s73, 1
      %p217 = scmp.ne.s32.totalorder %s212, %s214
      %p218 = scmp.eq.s32.totalorder %s73, 0
      %p219 = por %p217, %p218
      %p220 = scmp.ne.s32.totalorder %s212, %s214
      %p221 = scmp.eq.s32.totalorder %s78, 1
      %p222 = por %p220, %p221
      %p223 = scmp.ne.s32.totalorder %s214, %s215
      %p224 = scmp.eq.s32.totalorder %s78, 0
      %p225 = por %p223, %p224
      %p226 = scmp.ne.s32.totalorder %s214, %s215
      %p227 = scmp.eq.s32.totalorder %s79, 1
      %p228 = por %p226, %p227
      %p230 = scmp.ne.s32.totalorder %s215, %s229
      %p231 = scmp.eq.s32.totalorder %s79, 0
      %p232 = por %p230, %p231
      %s234 = sadd.s32 %s233, 1
      %p237 = scmp.eq.s32.totalorder %s73, 1
      %p238 = scmp.ne.s32.totalorder %s233, %s235
      %p239 = scmp.eq.s32.totalorder %s73, 0
      %p240 = por %p238, %p239
      %p241 = scmp.ne.s32.totalorder %s233, %s235
      %p242 = scmp.eq.s32.totalorder %s78, 1
      %p243 = por %p241, %p242
      %p244 = scmp.ne.s32.totalorder %s235, %s236
      %p245 = scmp.eq.s32.totalorder %s78, 0
      %p246 = por %p244, %p245
      %p247 = scmp.ne.s32.totalorder %s235, %s236
      %p248 = scmp.eq.s32.totalorder %s79, 1
      %p249 = por %p247, %p248
      %p251 = scmp.ne.s32.totalorder %s236, %s250
      %p252 = scmp.eq.s32.totalorder %s79, 0
      %p253 = por %p251, %p252
      %s255 = sadd.s32 %s254, 1
      %p258 = scmp.eq.s32.totalorder %s73, 1
      %p259 = scmp.ne.s32.totalorder %s254, %s256
      %p260 = scmp.eq.s32.totalorder %s73, 0
      %p261 = por %p259, %p260
      %p262 = scmp.ne.s32.totalorder %s254, %s256
      %p263 = scmp.eq.s32.totalorder %s78, 1
      %p264 = por %p262, %p263
      %p265 = scmp.ne.s32.totalorder %s256, %s257
      %p266 = scmp.eq.s32.totalorder %s78, 0
      %p267 = por %p265, %p266
      %p268 = scmp.ne.s32.totalorder %s256, %s257
      %p269 = scmp.eq.s32.totalorder %s79, 1
      %p270 = por %p268, %p269
      %p272 = scmp.ne.s32.totalorder %s257, %s271
      %p273 = scmp.eq.s32.totalorder %s79, 0
      %p274 = por %p272, %p273
      %s276 = sadd.s32 %s275, 1
      %p279 = scmp.eq.s32.totalorder %s73, 1
      %p280 = scmp.ne.s32.totalorder %s275, %s277
      %p281 = scmp.eq.s32.totalorder %s73, 0
      %p282 = por %p280, %p281
      %p283 = scmp.ne.s32.totalorder %s275, %s277
      %p284 = scmp.eq.s32.totalorder %s78, 1
      %p285 = por %p283, %p284
      %p286 = scmp.ne.s32.totalorder %s277, %s278
      %p287 = scmp.eq.s32.totalorder %s78, 0
      %p288 = por %p286, %p287
      %p289 = scmp.ne.s32.totalorder %s277, %s278
      %p290 = scmp.eq.s32.totalorder %s79, 1
      %p291 = por %p289, %p290
      %p293 = scmp.ne.s32.totalorder %s278, %s292
      %p294 = scmp.eq.s32.totalorder %s79, 0
      %p295 = por %p293, %p294
      %s297 = sadd.s32 %s296, 1
      %p300 = scmp.eq.s32.totalorder %s73, 1
      %p301 = scmp.ne.s32.totalorder %s296, %s298
      %p302 = scmp.eq.s32.totalorder %s73, 0
      %p303 = por %p301, %p302
      %p304 = scmp.ne.s32.totalorder %s296, %s298
      %p305 = scmp.eq.s32.totalorder %s78, 1
      %p306 = por %p304, %p305
      %p307 = scmp.ne.s32.totalorder %s298, %s299
      %p308 = scmp.eq.s32.totalorder %s78, 0
      %p309 = por %p307, %p308
      %p310 = scmp.ne.s32.totalorder %s298, %s299
      %p311 = scmp.eq.s32.totalorder %s79, 1
      %p312 = por %p310, %p311
      %p314 = scmp.ne.s32.totalorder %s299, %s313
      %p315 = scmp.eq.s32.totalorder %s79, 0
      %p316 = por %p314, %p315
      %s318 = sadd.s32 %s317, 1
      %p321 = scmp.eq.s32.totalorder %s73, 1
      %p322 = scmp.ne.s32.totalorder %s317, %s319
      %p323 = scmp.eq.s32.totalorder %s73, 0
      %p324 = por %p322, %p323
      %p325 = scmp.ne.s32.totalorder %s317, %s319
      %p326 = scmp.eq.s32.totalorder %s78, 1
      %p327 = por %p325, %p326
      %p328 = scmp.ne.s32.totalorder %s319, %s320
      %p329 = scmp.eq.s32.totalorder %s78, 0
      %p330 = por %p328, %p329
      %p331 = scmp.ne.s32.totalorder %s319, %s320
      %p332 = scmp.eq.s32.totalorder %s79, 1
      %p333 = por %p331, %p332
      %p335 = scmp.ne.s32.totalorder %s320, %s334
      %p336 = scmp.eq.s32.totalorder %s79, 0
      %p337 = por %p335, %p336
      %s339 = sadd.s32 %s338, 1
      %p342 = scmp.eq.s32.totalorder %s73, 1
      %p343 = scmp.ne.s32.totalorder %s338, %s340
      %p344 = scmp.eq.s32.totalorder %s73, 0
      %p345 = por %p343, %p344
      %p346 = scmp.ne.s32.totalorder %s338, %s340
      %p347 = scmp.eq.s32.totalorder %s78, 1
      %p348 = por %p346, %p347
      %p349 = scmp.ne.s32.totalorder %s340, %s341
      %p350 = scmp.eq.s32.totalorder %s78, 0
      %p351 = por %p349, %p350
      %p352 = scmp.ne.s32.totalorder %s340, %s341
      %p353 = scmp.eq.s32.totalorder %s79, 1
      %p354 = por %p352, %p353
      %p356 = scmp.ne.s32.totalorder %s341, %s355
      %p357 = scmp.eq.s32.totalorder %s79, 0
      %p358 = por %p356, %p357
      %s360 = sadd.s32 %s359, 1
      %p363 = scmp.eq.s32.totalorder %s73, 1
      %p364 = scmp.ne.s32.totalorder %s359, %s361
      %p365 = scmp.eq.s32.totalorder %s73, 0
      %p366 = por %p364, %p365
      %p367 = scmp.ne.s32.totalorder %s359, %s361
      %p368 = scmp.eq.s32.totalorder %s78, 1
      %p369 = por %p367, %p368
      %p370 = scmp.ne.s32.totalorder %s361, %s362
      %p371 = scmp.eq.s32.totalorder %s78, 0
      %p372 = por %p370, %p371
      %p373 = scmp.ne.s32.totalorder %s361, %s362
      %p374 = scmp.eq.s32.totalorder %s79, 1
      %p375 = por %p373, %p374
      %p377 = scmp.ne.s32.totalorder %s362, %s376
      %p378 = scmp.eq.s32.totalorder %s79, 0
      %p379 = por %p377, %p378
      %s381 = sadd.s32 %s380, 1
      %p384 = scmp.eq.s32.totalorder %s73, 1
      %p385 = scmp.ne.s32.totalorder %s380, %s382
      %p386 = scmp.eq.s32.totalorder %s73, 0
      %p387 = por %p385, %p386
      %p388 = scmp.ne.s32.totalorder %s380, %s382
      %p389 = scmp.eq.s32.totalorder %s78, 1
      %p390 = por %p388, %p389
      %p391 = scmp.ne.s32.totalorder %s382, %s383
      %p392 = scmp.eq.s32.totalorder %s78, 0
      %p393 = por %p391, %p392
      %p394 = scmp.ne.s32.totalorder %s382, %s383
      %p395 = scmp.eq.s32.totalorder %s79, 1
      %p396 = por %p394, %p395
      %p398 = scmp.ne.s32.totalorder %s383, %s397
      %p399 = scmp.eq.s32.totalorder %s79, 0
      %p400 = por %p398, %p399
      %s402 = sadd.s32 %s401, 1
      %p405 = scmp.eq.s32.totalorder %s73, 1
      %p406 = scmp.ne.s32.totalorder %s401, %s403
      %p407 = scmp.eq.s32.totalorder %s73, 0
      %p408 = por %p406, %p407
      %p409 = scmp.ne.s32.totalorder %s401, %s403
      %p410 = scmp.eq.s32.totalorder %s78, 1
      %p411 = por %p409, %p410
      %p412 = scmp.ne.s32.totalorder %s403, %s404
      %p413 = scmp.eq.s32.totalorder %s78, 0
      %p414 = por %p412, %p413
      %p415 = scmp.ne.s32.totalorder %s403, %s404
      %p416 = scmp.eq.s32.totalorder %s79, 1
      %p417 = por %p415, %p416
      %p419 = scmp.ne.s32.totalorder %s404, %s418
      %p420 = scmp.eq.s32.totalorder %s79, 0
      %p421 = por %p419, %p420
      %s423 = sadd.s32 %s422, 1
      %p426 = scmp.eq.s32.totalorder %s73, 1
      %p427 = scmp.ne.s32.totalorder %s422, %s424
      %p428 = scmp.eq.s32.totalorder %s73, 0
      %p429 = por %p427, %p428
      %p430 = scmp.ne.s32.totalorder %s422, %s424
      %p431 = scmp.eq.s32.totalorder %s78, 1
      %p432 = por %p430, %p431
      %p433 = scmp.ne.s32.totalorder %s424, %s425
      %p434 = scmp.eq.s32.totalorder %s78, 0
      %p435 = por %p433, %p434
      %p436 = scmp.ne.s32.totalorder %s424, %s425
      %p437 = scmp.eq.s32.totalorder %s79, 1
      %p438 = por %p436, %p437
      %p440 = scmp.ne.s32.totalorder %s425, %s439
      %p441 = scmp.eq.s32.totalorder %s79, 0
      %p442 = por %p440, %p441
      %s444 = sadd.s32 %s443, 1
      %p447 = scmp.eq.s32.totalorder %s73, 1
      %p448 = scmp.ne.s32.totalorder %s443, %s445
      %p449 = scmp.eq.s32.totalorder %s73, 0
      %p450 = por %p448, %p449
      %p451 = scmp.ne.s32.totalorder %s443, %s445
      %p452 = scmp.eq.s32.totalorder %s78, 1
      %p453 = por %p451, %p452
      %p454 = scmp.ne.s32.totalorder %s445, %s446
      %p455 = scmp.eq.s32.totalorder %s78, 0
      %p456 = por %p454, %p455
      %p457 = scmp.ne.s32.totalorder %s445, %s446
      %p458 = scmp.eq.s32.totalorder %s79, 1
      %p459 = por %p457, %p458
      %p461 = scmp.ne.s32.totalorder %s446, %s460
      %p462 = scmp.eq.s32.totalorder %s79, 0
      %p463 = por %p461, %p462
      %s465 = sadd.s32 %s464, 1
      %p468 = scmp.eq.s32.totalorder %s73, 1
      %p469 = scmp.ne.s32.totalorder %s464, %s466
      %p470 = scmp.eq.s32.totalorder %s73, 0
      %p471 = por %p469, %p470
      %p472 = scmp.ne.s32.totalorder %s464, %s466
      %p473 = scmp.eq.s32.totalorder %s78, 1
      %p474 = por %p472, %p473
      %p475 = scmp.ne.s32.totalorder %s466, %s467
      %p476 = scmp.eq.s32.totalorder %s78, 0
      %p477 = por %p475, %p476
      %p478 = scmp.ne.s32.totalorder %s466, %s467
      %p479 = scmp.eq.s32.totalorder %s79, 1
      %p480 = por %p478, %p479
      %p482 = scmp.ne.s32.totalorder %s467, %s481
      %p483 = scmp.eq.s32.totalorder %s79, 0
      %p484 = por %p482, %p483
      %s486 = sadd.s32 %s485, 1
      %p489 = scmp.eq.s32.totalorder %s73, 1
      %p490 = scmp.ne.s32.totalorder %s485, %s487
      %p491 = scmp.eq.s32.totalorder %s73, 0
      %p492 = por %p490, %p491
      %p493 = scmp.ne.s32.totalorder %s485, %s487
      %p494 = scmp.eq.s32.totalorder %s78, 1
      %p495 = por %p493, %p494
      %p496 = scmp.ne.s32.totalorder %s487, %s488
      %p497 = scmp.eq.s32.totalorder %s78, 0
      %p498 = por %p496, %p497
      %p499 = scmp.ne.s32.totalorder %s487, %s488
      %p500 = scmp.eq.s32.totalorder %s79, 1
      %p501 = por %p499, %p500
      %p503 = scmp.ne.s32.totalorder %s488, %s502
      %p504 = scmp.eq.s32.totalorder %s79, 0
      %p505 = por %p503, %p504
      %s507 = sadd.s32 %s506, 1
      %p510 = scmp.eq.s32.totalorder %s73, 1
      %p511 = scmp.ne.s32.totalorder %s506, %s508
      %p512 = scmp.eq.s32.totalorder %s73, 0
      %p513 = por %p511, %p512
      %p514 = scmp.ne.s32.totalorder %s506, %s508
      %p515 = scmp.eq.s32.totalorder %s78, 1
      %p516 = por %p514, %p515
      %p517 = scmp.ne.s32.totalorder %s508, %s509
      %p518 = scmp.eq.s32.totalorder %s78, 0
      %p519 = por %p517, %p518
      %p520 = scmp.ne.s32.totalorder %s508, %s509
      %p521 = scmp.eq.s32.totalorder %s79, 1
      %p522 = por %p520, %p521
      %p524 = scmp.ne.s32.totalorder %s509, %s523
      %p525 = scmp.eq.s32.totalorder %s79, 0
      %p526 = por %p524, %p525
      %s528 = sadd.s32 %s527, 1
      %p531 = scmp.eq.s32.totalorder %s73, 1
      %p532 = scmp.ne.s32.totalorder %s527, %s529
      %p533 = scmp.eq.s32.totalorder %s73, 0
      %p534 = por %p532, %p533
      %p535 = scmp.ne.s32.totalorder %s527, %s529
      %p536 = scmp.eq.s32.totalorder %s78, 1
      %p537 = por %p535, %p536
      %p538 = scmp.ne.s32.totalorder %s529, %s530
      %p539 = scmp.eq.s32.totalorder %s78, 0
      %p540 = por %p538, %p539
      %p541 = scmp.ne.s32.totalorder %s529, %s530
      %p542 = scmp.eq.s32.totalorder %s79, 1
      %p543 = por %p541, %p542
      %p545 = scmp.ne.s32.totalorder %s530, %s544
      %p546 = scmp.eq.s32.totalorder %s79, 0
      %p547 = por %p545, %p546
      %s549 = sadd.s32 %s548, 1
      %p552 = scmp.eq.s32.totalorder %s73, 1
      %p553 = scmp.ne.s32.totalorder %s548, %s550
      %p554 = scmp.eq.s32.totalorder %s73, 0
      %p555 = por %p553, %p554
      %p556 = scmp.ne.s32.totalorder %s548, %s550
      %p557 = scmp.eq.s32.totalorder %s78, 1
      %p558 = por %p556, %p557
      %p559 = scmp.ne.s32.totalorder %s550, %s551
      %p560 = scmp.eq.s32.totalorder %s78, 0
      %p561 = por %p559, %p560
      %p562 = scmp.ne.s32.totalorder %s550, %s551
      %p563 = scmp.eq.s32.totalorder %s79, 1
      %p564 = por %p562, %p563
      %p566 = scmp.ne.s32.totalorder %s551, %s565
      %p567 = scmp.eq.s32.totalorder %s79, 0
      %p568 = por %p566, %p567
      %s570 = sadd.s32 %s569, 1
      %p573 = scmp.eq.s32.totalorder %s73, 1
      %p574 = scmp.ne.s32.totalorder %s569, %s571
      %p575 = scmp.eq.s32.totalorder %s73, 0
      %p576 = por %p574, %p575
      %p577 = scmp.ne.s32.totalorder %s569, %s571
      %p578 = scmp.eq.s32.totalorder %s78, 1
      %p579 = por %p577, %p578
      %p580 = scmp.ne.s32.totalorder %s571, %s572
      %p581 = scmp.eq.s32.totalorder %s78, 0
      %p582 = por %p580, %p581
      %p583 = scmp.ne.s32.totalorder %s571, %s572
      %p584 = scmp.eq.s32.totalorder %s79, 1
      %p585 = por %p583, %p584
      %p587 = scmp.ne.s32.totalorder %s572, %s586
      %p588 = scmp.eq.s32.totalorder %s79, 0
      %p589 = por %p587, %p588
      %s591 = sadd.s32 %s590, 1
      %p594 = scmp.eq.s32.totalorder %s73, 1
      %p595 = scmp.ne.s32.totalorder %s590, %s592
      %p596 = scmp.eq.s32.totalorder %s73, 0
      %p597 = por %p595, %p596
      %p598 = scmp.ne.s32.totalorder %s590, %s592
      %p599 = scmp.eq.s32.totalorder %s78, 1
      %p600 = por %p598, %p599
      %p601 = scmp.ne.s32.totalorder %s592, %s593
      %p602 = scmp.eq.s32.totalorder %s78, 0
      %p603 = por %p601, %p602
      %p604 = scmp.ne.s32.totalorder %s592, %s593
      %p605 = scmp.eq.s32.totalorder %s79, 1
      %p606 = por %p604, %p605
      %p608 = scmp.ne.s32.totalorder %s593, %s607
      %p609 = scmp.eq.s32.totalorder %s79, 0
      %p610 = por %p608, %p609
      %s612 = sadd.s32 %s611, 1
      %p615 = scmp.eq.s32.totalorder %s73, 1
      %p616 = scmp.ne.s32.totalorder %s611, %s613
      %p617 = scmp.eq.s32.totalorder %s73, 0
      %p618 = por %p616, %p617
      %p619 = scmp.ne.s32.totalorder %s611, %s613
      %p620 = scmp.eq.s32.totalorder %s78, 1
      %p621 = por %p619, %p620
      %p622 = scmp.ne.s32.totalorder %s613, %s614
      %p623 = scmp.eq.s32.totalorder %s78, 0
      %p624 = por %p622, %p623
      %p625 = scmp.ne.s32.totalorder %s613, %s614
      %p626 = scmp.eq.s32.totalorder %s79, 1
      %p627 = por %p625, %p626
      %p629 = scmp.ne.s32.totalorder %s614, %s628
      %p630 = scmp.eq.s32.totalorder %s79, 0
      %p631 = por %p629, %p630
      %s633 = sadd.s32 %s632, 1
      %p636 = scmp.eq.s32.totalorder %s73, 1
      %p637 = scmp.ne.s32.totalorder %s632, %s634
      %p638 = scmp.eq.s32.totalorder %s73, 0
      %p639 = por %p637, %p638
      %p640 = scmp.ne.s32.totalorder %s632, %s634
      %p641 = scmp.eq.s32.totalorder %s78, 1
      %p642 = por %p640, %p641
      %p643 = scmp.ne.s32.totalorder %s634, %s635
      %p644 = scmp.eq.s32.totalorder %s78, 0
      %p645 = por %p643, %p644
      %p646 = scmp.ne.s32.totalorder %s634, %s635
      %p647 = scmp.eq.s32.totalorder %s79, 1
      %p648 = por %p646, %p647
      %p650 = scmp.ne.s32.totalorder %s635, %s649
      %p651 = scmp.eq.s32.totalorder %s79, 0
      %p652 = por %p650, %p651
      %s654 = sadd.s32 %s653, 1
      %p657 = scmp.eq.s32.totalorder %s73, 1
      %p658 = scmp.ne.s32.totalorder %s653, %s655
      %p659 = scmp.eq.s32.totalorder %s73, 0
      %p660 = por %p658, %p659
      %p661 = scmp.ne.s32.totalorder %s653, %s655
      %p662 = scmp.eq.s32.totalorder %s78, 1
      %p663 = por %p661, %p662
      %p664 = scmp.ne.s32.totalorder %s655, %s656
      %p665 = scmp.eq.s32.totalorder %s78, 0
      %p666 = por %p664, %p665
      %p667 = scmp.ne.s32.totalorder %s655, %s656
      %p668 = scmp.eq.s32.totalorder %s79, 1
      %p669 = por %p667, %p668
      %p671 = scmp.ne.s32.totalorder %s656, %s670
      %p672 = scmp.eq.s32.totalorder %s79, 0
      %p673 = por %p671, %p672
      %s675 = sadd.s32 %s674, 1
      %p678 = scmp.eq.s32.totalorder %s73, 1
      %p679 = scmp.ne.s32.totalorder %s674, %s676
      %p680 = scmp.eq.s32.totalorder %s73, 0
      %p681 = por %p679, %p680
      %p682 = scmp.ne.s32.totalorder %s674, %s676
      %p683 = scmp.eq.s32.totalorder %s78, 1
      %p684 = por %p682, %p683
      %p685 = scmp.ne.s32.totalorder %s676, %s677
      %p686 = scmp.eq.s32.totalorder %s78, 0
      %p687 = por %p685, %p686
      %p688 = scmp.ne.s32.totalorder %s676, %s677
      %p689 = scmp.eq.s32.totalorder %s79, 1
      %p690 = por %p688, %p689
      %p692 = scmp.ne.s32.totalorder %s677, %s691
      %p693 = scmp.eq.s32.totalorder %s79, 0
      %p694 = por %p692, %p693
      %s696 = sadd.s32 %s695, 1
      %p699 = scmp.eq.s32.totalorder %s73, 1
      %p700 = scmp.ne.s32.totalorder %s695, %s697
      %p701 = scmp.eq.s32.totalorder %s73, 0
      %p702 = por %p700, %p701
      %p703 = scmp.ne.s32.totalorder %s695, %s697
      %p704 = scmp.eq.s32.totalorder %s78, 1
      %p705 = por %p703, %p704
      %p706 = scmp.ne.s32.totalorder %s697, %s698
      %p707 = scmp.eq.s32.totalorder %s78, 0
      %p708 = por %p706, %p707
      %p709 = scmp.ne.s32.totalorder %s697, %s698
      %p710 = scmp.eq.s32.totalorder %s79, 1
      %p711 = por %p709, %p710
      %p713 = scmp.ne.s32.totalorder %s698, %s712
      %p714 = scmp.eq.s32.totalorder %s79, 0
      %p715 = por %p713, %p714
      %s716 = ssub.s32 %s73, %s80
      %p717 = scmp.eq.s32.totalorder %s716, 0
      %s719 = sadd.s32 %s718, 1
      %s720 = scalar_select %p717, %s718, %s719
      %p723 = pneg %p717
      %p724 = scmp.eq.s32.totalorder %s73, 1
      %p725 = por %p723, %p724
      %p726 = scmp.ne.s32.totalorder %s718, %s721
      %p727 = scmp.eq.s32.totalorder %s73, 0
      %p728 = por %p726, %p727
      %p729 = scmp.ne.s32.totalorder %s718, %s721
      %p730 = scmp.eq.s32.totalorder %s78, 1
      %p731 = por %p729, %p730
      %p732 = scmp.ne.s32.totalorder %s721, %s722
      %p733 = scmp.eq.s32.totalorder %s78, 0
      %p734 = por %p732, %p733
      %p735 = scmp.ne.s32.totalorder %s721, %s722
      %p736 = scmp.eq.s32.totalorder %s79, 1
      %p737 = por %p735, %p736
      %p739 = scmp.ne.s32.totalorder %s722, %s738
      %p740 = scmp.eq.s32.totalorder %s79, 0
      %p741 = por %p739, %p740
      %s742 = ssub.s32 %s73, %s80
      %p743 = scmp.eq.s32.totalorder %s742, 0
      %s745 = sadd.s32 %s744, 1
      %s746 = scalar_select %p743, %s744, %s745
      %p749 = pneg %p743
      %p750 = scmp.eq.s32.totalorder %s73, 1
      %p751 = por %p749, %p750
      %p752 = scmp.ne.s32.totalorder %s744, %s747
      %p753 = scmp.eq.s32.totalorder %s73, 0
      %p754 = por %p752, %p753
      %p755 = scmp.ne.s32.totalorder %s744, %s747
      %p756 = scmp.eq.s32.totalorder %s78, 1
      %p757 = por %p755, %p756
      %p758 = scmp.ne.s32.totalorder %s747, %s748
      %p759 = scmp.eq.s32.totalorder %s78, 0
      %p760 = por %p758, %p759
      %p761 = scmp.ne.s32.totalorder %s747, %s748
      %p762 = scmp.eq.s32.totalorder %s79, 1
      %p763 = por %p761, %p762
      %p765 = scmp.ne.s32.totalorder %s748, %s764
      %p766 = scmp.eq.s32.totalorder %s79, 0
      %p767 = por %p765, %p766
      %p768 = scmp.le.s32.totalorder 1, %s73
      %p769 = scmp.lt.s32.totalorder %s73, 3
      %p770 = pnand %p768, %p769
      %p771 = pneg %p770
      // Predicated region
      $region9: #{mefarg_forward.1} parent=5 // pred_check
        _
      $region10: #{mefarg_forward.1} parent=5 // pred_check_branch
        %773 = sbr.rel (%p770) target = $region12
      $region11: #{mefarg_forward.1} parent=5 // pred_region
        %s774 = ssub.s32 %s73, 1
        // Predicated region
        $region13: #{mefarg_forward.1} parent=11 // pred_check
          %p775 = pneg %p120
        $region14: #{mefarg_forward.1} parent=11 // pred_check_branch
          %777 = sbr.rel (%p775) target = $region16
        $region15: #{mefarg_forward.1} parent=11 // pred_region
          _
        $region16: #{mefarg_forward.1} parent=11 // pred_fallthru
          _
        // Predicated region
        $region17: #{mefarg_forward.1} parent=11 // pred_check
          %p778 = pneg %p141
        $region18: #{mefarg_forward.1} parent=11 // pred_check_branch
          %780 = sbr.rel (%p778) target = $region20
        $region19: #{mefarg_forward.1} parent=11 // pred_region
          _
        $region20: #{mefarg_forward.1} parent=11 // pred_fallthru
          _
        // Predicated region
        $region21: #{mefarg_forward.1} parent=11 // pred_check
          %p781 = pneg %p162
        $region22: #{mefarg_forward.1} parent=11 // pred_check_branch
          %783 = sbr.rel (%p781) target = $region24
        $region23: #{mefarg_forward.1} parent=11 // pred_region
          _
        $region24: #{mefarg_forward.1} parent=11 // pred_fallthru
          _
        // Predicated region
        $region25: #{mefarg_forward.1} parent=11 // pred_check
          %p784 = pneg %p183
        $region26: #{mefarg_forward.1} parent=11 // pred_check_branch
          %786 = sbr.rel (%p784) target = $region28
        $region27: #{mefarg_forward.1} parent=11 // pred_region
          _
        $region28: #{mefarg_forward.1} parent=11 // pred_fallthru
          _
        // Predicated region
        $region29: #{mefarg_forward.1} parent=11 // pred_check
          %p787 = pneg %p204
        $region30: #{mefarg_forward.1} parent=11 // pred_check_branch
          %789 = sbr.rel (%p787) target = $region32
        $region31: #{mefarg_forward.1} parent=11 // pred_region
          _
        $region32: #{mefarg_forward.1} parent=11 // pred_fallthru
          _
        // Predicated region
        $region33: #{mefarg_forward.1} parent=11 // pred_check
          %p790 = pneg %p225
        $region34: #{mefarg_forward.1} parent=11 // pred_check_branch
          %792 = sbr.rel (%p790) target = $region36
        $region35: #{mefarg_forward.1} parent=11 // pred_region
          _
        $region36: #{mefarg_forward.1} parent=11 // pred_fallthru
          _
        // Predicated region
        $region37: #{mefarg_forward.1} parent=11 // pred_check
          %p793 = pneg %p246
        $region38: #{mefarg_forward.1} parent=11 // pred_check_branch
          %795 = sbr.rel (%p793) target = $region40
        $region39: #{mefarg_forward.1} parent=11 // pred_region
          _
        $region40: #{mefarg_forward.1} parent=11 // pred_fallthru
          _
        // Predicated region
        $region41: #{mefarg_forward.1} parent=11 // pred_check
          %p796 = pneg %p267
        $region42: #{mefarg_forward.1} parent=11 // pred_check_branch
          %798 = sbr.rel (%p796) target = $region44
        $region43: #{mefarg_forward.1} parent=11 // pred_region
          _
        $region44: #{mefarg_forward.1} parent=11 // pred_fallthru
          _
        // Predicated region
        $region45: #{mefarg_forward.1} parent=11 // pred_check
          %p799 = pneg %p288
        $region46: #{mefarg_forward.1} parent=11 // pred_check_branch
          %801 = sbr.rel (%p799) target = $region48
        $region47: #{mefarg_forward.1} parent=11 // pred_region
          _
        $region48: #{mefarg_forward.1} parent=11 // pred_fallthru
          _
        // Predicated region
        $region49: #{mefarg_forward.1} parent=11 // pred_check
          %p802 = pneg %p309
        $region50: #{mefarg_forward.1} parent=11 // pred_check_branch
          %804 = sbr.rel (%p802) target = $region52
        $region51: #{mefarg_forward.1} parent=11 // pred_region
          _
        $region52: #{mefarg_forward.1} parent=11 // pred_fallthru
          _
        // Predicated region
        $region53: #{mefarg_forward.1} parent=11 // pred_check
          %p805 = pneg %p330
        $region54: #{mefarg_forward.1} parent=11 // pred_check_branch
          %807 = sbr.rel (%p805) target = $region56
        $region55: #{mefarg_forward.1} parent=11 // pred_region
          _
        $region56: #{mefarg_forward.1} parent=11 // pred_fallthru
          _
        // Predicated region
        $region57: #{mefarg_forward.1} parent=11 // pred_check
          %p808 = pneg %p351
        $region58: #{mefarg_forward.1} parent=11 // pred_check_branch
          %810 = sbr.rel (%p808) target = $region60
        $region59: #{mefarg_forward.1} parent=11 // pred_region
          _
        $region60: #{mefarg_forward.1} parent=11 // pred_fallthru
          _
        // Predicated region
        $region61: #{mefarg_forward.1} parent=11 // pred_check
          %p811 = pneg %p372
        $region62: #{mefarg_forward.1} parent=11 // pred_check_branch
          %813 = sbr.rel (%p811) target = $region64
        $region63: #{mefarg_forward.1} parent=11 // pred_region
          _
        $region64: #{mefarg_forward.1} parent=11 // pred_fallthru
          _
        // Predicated region
        $region65: #{mefarg_forward.1} parent=11 // pred_check
          %p814 = pneg %p393
        $region66: #{mefarg_forward.1} parent=11 // pred_check_branch
          %816 = sbr.rel (%p814) target = $region68
        $region67: #{mefarg_forward.1} parent=11 // pred_region
          _
        $region68: #{mefarg_forward.1} parent=11 // pred_fallthru
          _
        // Predicated region
        $region69: #{mefarg_forward.1} parent=11 // pred_check
          %p817 = pneg %p414
        $region70: #{mefarg_forward.1} parent=11 // pred_check_branch
          %819 = sbr.rel (%p817) target = $region72
        $region71: #{mefarg_forward.1} parent=11 // pred_region
          _
        $region72: #{mefarg_forward.1} parent=11 // pred_fallthru
          _
        // Predicated region
        $region73: #{mefarg_forward.1} parent=11 // pred_check
          %p820 = pneg %p435
        $region74: #{mefarg_forward.1} parent=11 // pred_check_branch
          %822 = sbr.rel (%p820) target = $region76
        $region75: #{mefarg_forward.1} parent=11 // pred_region
          _
        $region76: #{mefarg_forward.1} parent=11 // pred_fallthru
          _
        // Predicated region
        $region77: #{mefarg_forward.1} parent=11 // pred_check
          %p823 = pneg %p456
        $region78: #{mefarg_forward.1} parent=11 // pred_check_branch
          %825 = sbr.rel (%p823) target = $region80
        $region79: #{mefarg_forward.1} parent=11 // pred_region
          _
        $region80: #{mefarg_forward.1} parent=11 // pred_fallthru
          _
        // Predicated region
        $region81: #{mefarg_forward.1} parent=11 // pred_check
          %p826 = pneg %p477
        $region82: #{mefarg_forward.1} parent=11 // pred_check_branch
          %828 = sbr.rel (%p826) target = $region84
        $region83: #{mefarg_forward.1} parent=11 // pred_region
          _
        $region84: #{mefarg_forward.1} parent=11 // pred_fallthru
          _
        // Predicated region
        $region85: #{mefarg_forward.1} parent=11 // pred_check
          %p829 = pneg %p498
        $region86: #{mefarg_forward.1} parent=11 // pred_check_branch
          %831 = sbr.rel (%p829) target = $region88
        $region87: #{mefarg_forward.1} parent=11 // pred_region
          _
        $region88: #{mefarg_forward.1} parent=11 // pred_fallthru
          _
        // Predicated region
        $region89: #{mefarg_forward.1} parent=11 // pred_check
          %p832 = pneg %p519
        $region90: #{mefarg_forward.1} parent=11 // pred_check_branch
          %834 = sbr.rel (%p832) target = $region92
        $region91: #{mefarg_forward.1} parent=11 // pred_region
          _
        $region92: #{mefarg_forward.1} parent=11 // pred_fallthru
          _
        // Predicated region
        $region93: #{mefarg_forward.1} parent=11 // pred_check
          %p835 = pneg %p540
        $region94: #{mefarg_forward.1} parent=11 // pred_check_branch
          %837 = sbr.rel (%p835) target = $region96
        $region95: #{mefarg_forward.1} parent=11 // pred_region
          _
        $region96: #{mefarg_forward.1} parent=11 // pred_fallthru
          _
        // Predicated region
        $region97: #{mefarg_forward.1} parent=11 // pred_check
          %p838 = pneg %p561
        $region98: #{mefarg_forward.1} parent=11 // pred_check_branch
          %840 = sbr.rel (%p838) target = $region100
        $region99: #{mefarg_forward.1} parent=11 // pred_region
          _
        $region100: #{mefarg_forward.1} parent=11 // pred_fallthru
          _
        // Predicated region
        $region101: #{mefarg_forward.1} parent=11 // pred_check
          %p841 = pneg %p582
        $region102: #{mefarg_forward.1} parent=11 // pred_check_branch
          %843 = sbr.rel (%p841) target = $region104
        $region103: #{mefarg_forward.1} parent=11 // pred_region
          _
        $region104: #{mefarg_forward.1} parent=11 // pred_fallthru
          _
        // Predicated region
        $region105: #{mefarg_forward.1} parent=11 // pred_check
          %p844 = pneg %p603
        $region106: #{mefarg_forward.1} parent=11 // pred_check_branch
          %846 = sbr.rel (%p844) target = $region108
        $region107: #{mefarg_forward.1} parent=11 // pred_region
          _
        $region108: #{mefarg_forward.1} parent=11 // pred_fallthru
          _
        // Predicated region
        $region109: #{mefarg_forward.1} parent=11 // pred_check
          %p847 = pneg %p624
        $region110: #{mefarg_forward.1} parent=11 // pred_check_branch
          %849 = sbr.rel (%p847) target = $region112
        $region111: #{mefarg_forward.1} parent=11 // pred_region
          _
        $region112: #{mefarg_forward.1} parent=11 // pred_fallthru
          _
        // Predicated region
        $region113: #{mefarg_forward.1} parent=11 // pred_check
          %p850 = pneg %p645
        $region114: #{mefarg_forward.1} parent=11 // pred_check_branch
          %852 = sbr.rel (%p850) target = $region116
        $region115: #{mefarg_forward.1} parent=11 // pred_region
          _
        $region116: #{mefarg_forward.1} parent=11 // pred_fallthru
          _
        // Predicated region
        $region117: #{mefarg_forward.1} parent=11 // pred_check
          %p853 = pneg %p666
        $region118: #{mefarg_forward.1} parent=11 // pred_check_branch
          %855 = sbr.rel (%p853) target = $region120
        $region119: #{mefarg_forward.1} parent=11 // pred_region
          _
        $region120: #{mefarg_forward.1} parent=11 // pred_fallthru
          _
        // Predicated region
        $region121: #{mefarg_forward.1} parent=11 // pred_check
          %p856 = pneg %p687
        $region122: #{mefarg_forward.1} parent=11 // pred_check_branch
          %858 = sbr.rel (%p856) target = $region124
        $region123: #{mefarg_forward.1} parent=11 // pred_region
          _
        $region124: #{mefarg_forward.1} parent=11 // pred_fallthru
          _
        // Predicated region
        $region125: #{mefarg_forward.1} parent=11 // pred_check
          %p859 = pneg %p708
        $region126: #{mefarg_forward.1} parent=11 // pred_check_branch
          %861 = sbr.rel (%p859) target = $region128
        $region127: #{mefarg_forward.1} parent=11 // pred_region
          _
        $region128: #{mefarg_forward.1} parent=11 // pred_fallthru
          _
      $region12: #{mefarg_forward.1} parent=5 // pred_fallthru
        _
      %p862 = scmp.lt.s32.totalorder %s73, 2
      // Predicated region
      $region129: #{mefarg_forward.1} parent=5 // pred_check
        %p863 = pneg %p862
      $region130: #{mefarg_forward.1} parent=5 // pred_check_branch
        %865 = sbr.rel (%p863) target = $region132
      $region131: #{mefarg_forward.1} parent=5 // pred_region
        // Predicated region
        $region133: #{mefarg_forward.1} parent=131 // pred_check
          %p866 = pneg %p93
        $region134: #{mefarg_forward.1} parent=131 // pred_check_branch
          %868 = sbr.rel (%p866) target = $region136
        $region135: #{mefarg_forward.1} parent=131 // pred_region
          %p869 = scmp.lt.s32.totalorder %s73, 1
          %s870 = scalar_select %p869, %s73, 1
          %s871 = smul.addr %s870, 2
          %s872 = smul.addr %s871, 8
          %s873 = scalar_lea.vmem %s1, %s872
        $region136: #{mefarg_forward.1} parent=131 // pred_fallthru
          _
      $region132: #{mefarg_forward.1} parent=5 // pred_fallthru
        _
      %p874 = scmp.le.s32.totalorder 1, %s73
      %p875 = scmp.lt.s32.totalorder %s73, 3
      %p876 = pnand %p874, %p875
      %p877 = pneg %p876
      // Predicated region
      $region137: #{mefarg_forward.1} parent=5 // pred_check
        _
      $region138: #{mefarg_forward.1} parent=5 // pred_check_branch
        %879 = sbr.rel (%p876) target = $region140
      $region139: #{mefarg_forward.1} parent=5 // pred_region
        %s880 = ssub.s32 %s73, 1
        %p881 = scmp.lt.s32.totalorder %s78, 1
        %s882 = scalar_select %p881, %s78, 1
        %s883 = smul.addr %s882, 2
        %s884 = smul.addr %s883, 8
        %s885 = scalar_lea.vmem %s1, %s884
        %p886 = pneg %p99
        %p887 = pneg %p96
        %p888 = pneg %p120
        %p889 = pneg %p117
        %p890 = pneg %p141
        %p891 = pneg %p138
        %p892 = pneg %p162
        %p893 = pneg %p159
        %p894 = pneg %p183
        %p895 = pneg %p180
        %p896 = pneg %p204
        %p897 = pneg %p201
        %p898 = pneg %p225
        %p899 = pneg %p222
        %p900 = pneg %p246
        %p901 = pneg %p243
        %p902 = pneg %p267
        %p903 = pneg %p264
        %p904 = pneg %p288
        %p905 = pneg %p285
        %p906 = pneg %p309
        %p907 = pneg %p306
        %p908 = pneg %p330
        %p909 = pneg %p327
        %p910 = pneg %p351
        %p911 = pneg %p348
        %p912 = pneg %p372
        %p913 = pneg %p369
        %p914 = pneg %p393
        %p915 = pneg %p390
        %p916 = pneg %p414
        %p917 = pneg %p411
        %p918 = pneg %p435
        %p919 = pneg %p432
        %p920 = pneg %p456
        %p921 = pneg %p453
        %p922 = pneg %p477
        %p923 = pneg %p474
        %p924 = pneg %p498
        %p925 = pneg %p495
        %p926 = pneg %p519
        %p927 = pneg %p516
        %p928 = pneg %p540
        %p929 = pneg %p537
        %p930 = pneg %p561
        %p931 = pneg %p558
        %p932 = pneg %p582
        %p933 = pneg %p579
        %p934 = pneg %p603
        %p935 = pneg %p600
        %p936 = pneg %p624
        %p937 = pneg %p621
        %p938 = pneg %p645
        %p939 = pneg %p642
        %p940 = pneg %p666
        %p941 = pneg %p663
        %p942 = pneg %p687
        %p943 = pneg %p684
        %p944 = pneg %p708
        %p945 = pneg %p705
        %p946 = pneg %p734
        %p947 = pneg %p731
        %s948 = sand.u32 %s721, 1
        %s949 = scalar_lea.sflag [#allocation3], %s948
        %s950 = sand.u32 %s721, 1
        %s951 = scalar_lea.vmem [#allocation2], %s950
        %p952 = pneg %p760
        %p953 = pneg %p757
        %p954 = scmp.lt.s32.totalorder %s78, 1
        %s955 = scalar_select %p954, %s78, 1
        %s956 = smul.addr %s955, 2
        %s957 = smul.addr %s956, 8
        %s958 = scalar_lea.vmem %s63, %s957
        %p959 = scmp.lt.s32.totalorder %s78, 1
        %s960 = scalar_select %p959, %s78, 1
        %s961 = smul.addr %s960, 2
        %s962 = smul.addr %s961, 8
        %s963 = scalar_lea.vmem %s1, %s962
        %p964 = scmp.lt.s32.totalorder %s78, 1
        %s965 = scalar_select %p964, %s78, 1
        %s966 = smul.addr %s965, 2
        %s967 = smul.addr %s966, 8
        %s968 = scalar_lea.vmem %s63, %s967
        %v969 = vld [vmem:[%s963] sm:$0xff]
        %v970 = vld [vmem:[%s963 + $0x8] sm:$0xff]
        %v971 = vld [vmem:[%s3] sm:$0xff]
        %v972 = vld [vmem:[%s3 + $0x8] sm:$0xff]
        %v973 = vld [vmem:[%s3 + $0x10] sm:$0xff]
        %v974 = vld [vmem:[%s3 + $0x18] sm:$0xff]
        %v975 = vld [vmem:[%s3 + $0x20] sm:$0xff]
        %v976 = vld [vmem:[%s3 + $0x28] sm:$0xff]
        %v977 = vld [vmem:[%s5] sm:$0x1]
        %v979 = vperm.slane %v977, 0
        %vm981 = vcmask 392192
        %v983 = vsel %vm981, %v969, 0
        %v986 = vsel %vm981, %v970, 0
        %988 = vmatpush.msra.mxu0 0.0
        %989 = vmatpush.msra.mxu0 0.0
        %990 = vmatpush.msra.mxu0 0.0
        %991 = vmatpush.msra.mxu0 0.0
        %992 = vmatpush.msra.mxu0 0.0
        %993 = vmatpush.msra.mxu0 0.0
        %994 = vmatpush.msra.mxu0 0.0
        %995 = vmatpush.msra.mxu0 0.0
        %996 = vmatpush.msra.mxu0 0.0
        %997 = vmatpush.msra.mxu0 0.0
        %998 = vmatpush.msra.mxu0 %v976
        %999 = vmatpush.msra.mxu0 %v975
        %1000 = vmatpush.msra.mxu0 %v974
        %1001 = vmatpush.msra.mxu0 %v973
        %1002 = vmatpush.msra.mxu0 %v972
        %1003 = vmatpush.msra.mxu0 %v971
        %1004 = vmatmul.f32.gmra.mxu0 %v983
        %v1005 = vpop.f32.mrf.mxu0
        %v1006 = vadd.f32 %v979, %v1005
        %1007 = vmatmul.f32.gmra.mxu0 %v986
        %v1008 = vpop.f32.mrf.mxu0
        %v1009 = vadd.f32 %v979, %v1008
        %1010 = vdwg.mxu0
        %v1011 = vmax.f32 %v1006, 0.0
        %v1012 = vmax.f32 %v1009, 0.0
        %v1013 = vld [vmem:[%s7] sm:$0xff]
        %v1014 = vld [vmem:[%s7 + $0x8] sm:$0xff]
        %v1015 = vld [vmem:[%s9] sm:$0x1]
        %v1017 = vperm.slane %v1015, 0
        %vm1019 = vcmask 130048
        %v1021 = vsel %vm1019, %v1011, 0
        %v1024 = vsel %vm1019, %v1012, 0
        %1026 = vmatpush.msra.mxu0 0.0
        %1027 = vmatpush.msra.mxu0 0.0
        %1028 = vmatpush.msra.mxu0 0.0
        %1029 = vmatpush.msra.mxu0 0.0
        %1030 = vmatpush.msra.mxu0 0.0
        %1031 = vmatpush.msra.mxu0 0.0
        %1032 = vmatpush.msra.mxu0 0.0
        %1033 = vmatpush.msra.mxu0 0.0
        %1034 = vmatpush.msra.mxu0 0.0
        %1035 = vmatpush.msra.mxu0 0.0
        %1036 = vmatpush.msra.mxu0 0.0
        %1037 = vmatpush.msra.mxu0 0.0
        %1038 = vmatpush.msra.mxu0 0.0
        %1039 = vmatpush.msra.mxu0 0.0
        %1040 = vmatpush.msra.mxu0 %v1014
        %1041 = vmatpush.msra.mxu0 %v1013
        %1042 = vmatmul.f32.gmra.mxu0 %v1021
        %v1043 = vpop.f32.mrf.mxu0
        %v1044 = vadd.f32 %v1017, %v1043
        %1045 = vmatmul.f32.gmra.mxu0 %v1024
        %v1046 = vpop.f32.mrf.mxu0
        %v1047 = vadd.f32 %v1017, %v1046
        %1048 = vdwg.mxu0
        %v1049 = vmax.f32 %v1044, 0.0
        %v1050 = vmax.f32 %v1047, 0.0
        %1053 = vrot.lane.b32.xlu0 %v1049, 112
        %v1054 = vpop.permute.xlu0 %1053
        %1055 = vrot.lane.b32.xlu0 %v1050, 112
        %v1056 = vpop.permute.xlu0 %1055
        %1059 = vrot.lane.b32.xlu0 %v1049, 96
        %v1060 = vpop.permute.xlu0 %1059
        %1061 = vrot.lane.b32.xlu0 %v1050, 96
        %v1062 = vpop.permute.xlu0 %1061
        %1065 = vrot.lane.b32.xlu0 %v1049, 80
        %v1066 = vpop.permute.xlu0 %1065
        %1067 = vrot.lane.b32.xlu0 %v1050, 80
        %v1068 = vpop.permute.xlu0 %1067
        %v1071 = vsel %vm1019, %v1049, 0.0
        %v1072 = vsel %vm1019, %v1050, 0.0
        %v1073 = vadd.f32 %v1071, %v1072
        %v1074 = vrot.slane %v1073, 4
        %v1075 = vadd.f32 %v1073, %v1074
        %v1076 = vrot.slane %v1075, 2
        %v1077 = vadd.f32 %v1075, %v1076
        %v1078 = vrot.slane %v1077, 1
        %v1079 = vadd.f32 %v1077, %v1078
        %v1080 = vsel %vm1019, %v1054, 0.0
        %v1081 = vsel %vm1019, %v1056, 0.0
        %v1082 = vadd.f32 %v1080, %v1081
        %v1083 = vrot.slane %v1082, 4
        %v1084 = vadd.f32 %v1082, %v1083
        %v1085 = vrot.slane %v1084, 2
        %v1086 = vadd.f32 %v1084, %v1085
        %v1087 = vrot.slane %v1086, 1
        %v1088 = vadd.f32 %v1086, %v1087
        %v1089 = vsel %vm1019, %v1060, 0.0
        %v1090 = vsel %vm1019, %v1062, 0.0
        %v1091 = vadd.f32 %v1089, %v1090
        %v1092 = vrot.slane %v1091, 4
        %v1093 = vadd.f32 %v1091, %v1092
        %v1094 = vrot.slane %v1093, 2
        %v1095 = vadd.f32 %v1093, %v1094
        %v1096 = vrot.slane %v1095, 1
        %v1097 = vadd.f32 %v1095, %v1096
        %v1098 = vsel %vm1019, %v1066, 0.0
        %v1099 = vsel %vm1019, %v1068, 0.0
        %v1100 = vadd.f32 %v1098, %v1099
        %v1101 = vrot.slane %v1100, 4
        %v1102 = vadd.f32 %v1100, %v1101
        %v1103 = vrot.slane %v1102, 2
        %v1104 = vadd.f32 %v1102, %v1103
        %v1105 = vrot.slane %v1104, 1
        %v1106 = vadd.f32 %v1104, %v1105
        %v1107 = vrcp.pop 16.0
        %v1108 = vmul.f32 16.0, %v1107
        %v1109 = vsub.f32 1.0, %v1108
        %v1110 = vmul.f32 %v1107, %v1109
        %v1111 = vadd.f32 %v1107, %v1110
        %vm1112 = vweird.f32 %v1107
        %v1113 = vsel %vm1112, %v1107, %v1111
        %v1114 = vmul.f32 %v1079, %v1113
        %v1115 = vmul.f32 %v1088, %v1113
        %v1116 = vmul.f32 %v1097, %v1113
        %v1117 = vmul.f32 %v1106, %v1113
        %v1118 = vld [vmem:[%s11] sm:$0xff]
        %v1119 = vld [vmem:[%s11 + $0x8] sm:$0xff]
        %v1120 = vld [vmem:[%s13] sm:$0x1]
        %v1122 = vperm.slane %v1120, 0
        %v1124 = vsel %vm1019, %v1049, 0
        %v1126 = vsel %vm1019, %v1050, 0
        %v1128 = vsel %vm1019, %v1054, 0
        %v1130 = vsel %vm1019, %v1056, 0
        %v1132 = vsel %vm1019, %v1060, 0
        %v1134 = vsel %vm1019, %v1062, 0
        %v1136 = vsel %vm1019, %v1066, 0
        %v1138 = vsel %vm1019, %v1068, 0
        %1140 = vmatpush.msra.mxu0 0.0
        %1141 = vmatpush.msra.mxu0 0.0
        %1142 = vmatpush.msra.mxu0 0.0
        %1143 = vmatpush.msra.mxu0 0.0
        %1144 = vmatpush.msra.mxu0 0.0
        %1145 = vmatpush.msra.mxu0 0.0
        %1146 = vmatpush.msra.mxu0 0.0
        %1147 = vmatpush.msra.mxu0 0.0
        %1148 = vmatpush.msra.mxu0 0.0
        %1149 = vmatpush.msra.mxu0 0.0
        %1150 = vmatpush.msra.mxu0 0.0
        %1151 = vmatpush.msra.mxu0 0.0
        %1152 = vmatpush.msra.mxu0 0.0
        %1153 = vmatpush.msra.mxu0 0.0
        %1154 = vmatpush.msra.mxu0 %v1119
        %1155 = vmatpush.msra.mxu0 %v1118
        %1156 = vmatmul.f32.gmra.mxu0 %v1124
        %v1157 = vpop.f32.mrf.mxu0
        %v1158 = vadd.f32 %v1122, %v1157
        %1159 = vmatmul.f32.gmra.mxu0 %v1126
        %v1160 = vpop.f32.mrf.mxu0
        %v1161 = vadd.f32 %v1122, %v1160
        %1162 = vmatmul.f32.gmra.mxu0 %v1128
        %v1163 = vpop.f32.mrf.mxu0
        %v1164 = vadd.f32 %v1122, %v1163
        %1165 = vmatmul.f32.gmra.mxu0 %v1130
        %v1166 = vpop.f32.mrf.mxu0
        %v1167 = vadd.f32 %v1122, %v1166
        %1168 = vmatmul.f32.gmra.mxu0 %v1132
        %v1169 = vpop.f32.mrf.mxu0
        %v1170 = vadd.f32 %v1122, %v1169
        %1171 = vmatmul.f32.gmra.mxu0 %v1134
        %v1172 = vpop.f32.mrf.mxu0
        %v1173 = vadd.f32 %v1122, %v1172
        %1174 = vmatmul.f32.gmra.mxu0 %v1136
        %v1175 = vpop.f32.mrf.mxu0
        %v1176 = vadd.f32 %v1122, %v1175
        %1177 = vmatmul.f32.gmra.mxu0 %v1138
        %v1178 = vpop.f32.mrf.mxu0
        %v1179 = vadd.f32 %v1122, %v1178
        %1180 = vdwg.mxu0
        %v1181 = vld [vmem:[%s15] sm:$0xff]
        %v1182 = vld [vmem:[%s15 + $0x8] sm:$0xff]
        %v1183 = vld [vmem:[%s17] sm:$0x1]
        %v1185 = vperm.slane %v1183, 0
        %1187 = vmatpush.msra.mxu0 0.0
        %1188 = vmatpush.msra.mxu0 0.0
        %1189 = vmatpush.msra.mxu0 0.0
        %1190 = vmatpush.msra.mxu0 0.0
        %1191 = vmatpush.msra.mxu0 0.0
        %1192 = vmatpush.msra.mxu0 0.0
        %1193 = vmatpush.msra.mxu0 0.0
        %1194 = vmatpush.msra.mxu0 0.0
        %1195 = vmatpush.msra.mxu0 0.0
        %1196 = vmatpush.msra.mxu0 0.0
        %1197 = vmatpush.msra.mxu0 0.0
        %1198 = vmatpush.msra.mxu0 0.0
        %1199 = vmatpush.msra.mxu0 0.0
        %1200 = vmatpush.msra.mxu0 0.0
        %1201 = vmatpush.msra.mxu0 %v1182
        %1202 = vmatpush.msra.mxu0 %v1181
        %1203 = vmatmul.f32.gmra.mxu0 %v1021
        %v1204 = vpop.f32.mrf.mxu0
        %v1205 = vadd.f32 %v1185, %v1204
        %1206 = vmatmul.f32.gmra.mxu0 %v1024
        %v1207 = vpop.f32.mrf.mxu0
        %v1208 = vadd.f32 %v1185, %v1207
        %1209 = vdwg.mxu0
        %vm1210 = vcmask 64512
        %v1212 = vsel %vm1210, %v1158, 0
        %v1215 = vsel %vm1210, %v1161, 0
        %v1218 = vsel %vm1210, %v1164, 0
        %v1221 = vsel %vm1210, %v1167, 0
        %v1224 = vsel %vm1210, %v1170, 0
        %v1227 = vsel %vm1210, %v1173, 0
        %v1230 = vsel %vm1210, %v1176, 0
        %v1233 = vsel %vm1210, %v1179, 0
        %v1236 = vsel %vm1210, %v1205, 0
        %v1239 = vsel %vm1210, %v1208, 0
        %1241 = vmatpush.xpose.msra.mxu0 0.0
        %1242 = vmatpush.xpose.msra.mxu0 0.0
        %1243 = vmatpush.xpose.msra.mxu0 0.0
        %1244 = vmatpush.xpose.msra.mxu0 0.0
        %1245 = vmatpush.xpose.msra.mxu0 0.0
        %1246 = vmatpush.xpose.msra.mxu0 0.0
        %1247 = vmatpush.xpose.msra.mxu0 0.0
        %1248 = vmatpush.xpose.msra.mxu0 0.0
        %1249 = vmatpush.xpose.msra.mxu0 0.0
        %1250 = vmatpush.xpose.msra.mxu0 0.0
        %1251 = vmatpush.xpose.msra.mxu0 0.0
        %1252 = vmatpush.xpose.msra.mxu0 0.0
        %1253 = vmatpush.xpose.msra.mxu0 0.0
        %1254 = vmatpush.xpose.msra.mxu0 0.0
        %1255 = vmatpush.xpose.msra.mxu0 %v1239
        %1256 = vmatpush.xpose.msra.mxu0 %v1236
        %1257 = vmatmul.f32.gmra.mxu0 %v1212
        %v1258 = vpop.f32.mrf.mxu0
        %v1259 = vadd.f32 0.0, %v1258
        %1260 = vmatmul.f32.gmra.mxu0 %v1215
        %v1261 = vpop.f32.mrf.mxu0
        %v1262 = vadd.f32 0.0, %v1261
        %1263 = vmatmul.f32.gmra.mxu0 %v1218
        %v1264 = vpop.f32.mrf.mxu0
        %v1265 = vadd.f32 0.0, %v1264
        %1266 = vmatmul.f32.gmra.mxu0 %v1221
        %v1267 = vpop.f32.mrf.mxu0
        %v1268 = vadd.f32 0.0, %v1267
        %1269 = vmatmul.f32.gmra.mxu0 %v1224
        %v1270 = vpop.f32.mrf.mxu0
        %v1271 = vadd.f32 0.0, %v1270
        %1272 = vmatmul.f32.gmra.mxu0 %v1227
        %v1273 = vpop.f32.mrf.mxu0
        %v1274 = vadd.f32 0.0, %v1273
        %1275 = vmatmul.f32.gmra.mxu0 %v1230
        %v1276 = vpop.f32.mrf.mxu0
        %v1277 = vadd.f32 0.0, %v1276
        %1278 = vmatmul.f32.gmra.mxu0 %v1233
        %v1279 = vpop.f32.mrf.mxu0
        %v1280 = vadd.f32 0.0, %v1279
        %1281 = vdwg.mxu0
        %v1282 = vmul.f32 %v1259, 0.35355338
        %v1283 = vmul.f32 %v1262, 0.35355338
        %v1284 = vmul.f32 %v1265, 0.35355338
        %v1285 = vmul.f32 %v1268, 0.35355338
        %v1286 = vmul.f32 %v1271, 0.35355338
        %v1287 = vmul.f32 %v1274, 0.35355338
        %v1288 = vmul.f32 %v1277, 0.35355338
        %v1289 = vmul.f32 %v1280, 0.35355338
        %v1290 = vsel %vm1019, %v1282, -inf
        %1291 = vmax.xlane.f32.xlu0 %v1290
        %v1292 = vpop.xlane.xlu0 %1291
        %v1293 = vsel %vm1019, %v1283, -inf
        %1294 = vmax.xlane.f32.xlu0 %v1293
        %v1295 = vpop.xlane.xlu0 %1294
        %v1296 = vsel %vm1019, %v1284, -inf
        %1297 = vmax.xlane.f32.xlu0 %v1296
        %v1298 = vpop.xlane.xlu0 %1297
        %v1299 = vsel %vm1019, %v1285, -inf
        %1300 = vmax.xlane.f32.xlu0 %v1299
        %v1301 = vpop.xlane.xlu0 %1300
        %v1302 = vsel %vm1019, %v1286, -inf
        %1303 = vmax.xlane.f32.xlu0 %v1302
        %v1304 = vpop.xlane.xlu0 %1303
        %v1305 = vsel %vm1019, %v1287, -inf
        %1306 = vmax.xlane.f32.xlu0 %v1305
        %v1307 = vpop.xlane.xlu0 %1306
        %v1308 = vsel %vm1019, %v1288, -inf
        %1309 = vmax.xlane.f32.xlu0 %v1308
        %v1310 = vpop.xlane.xlu0 %1309
        %v1311 = vsel %vm1019, %v1289, -inf
        %1312 = vmax.xlane.f32.xlu0 %v1311
        %v1313 = vpop.xlane.xlu0 %1312
        %v1314 = vsub.f32 %v1282, %v1292
        %v1315 = vsub.f32 %v1283, %v1295
        %v1316 = vsub.f32 %v1284, %v1298
        %v1317 = vsub.f32 %v1285, %v1301
        %v1318 = vsub.f32 %v1286, %v1304
        %v1319 = vsub.f32 %v1287, %v1307
        %v1320 = vsub.f32 %v1288, %v1310
        %v1321 = vsub.f32 %v1289, %v1313
        %v1322 = vmul.f32 %v1314, 1.442695
        %v1323 = vpow.pop %v1322
        %v1324 = vmul.f32 %v1315, 1.442695
        %v1325 = vpow.pop %v1324
        %v1326 = vmul.f32 %v1316, 1.442695
        %v1327 = vpow.pop %v1326
        %v1328 = vmul.f32 %v1317, 1.442695
        %v1329 = vpow.pop %v1328
        %v1330 = vmul.f32 %v1318, 1.442695
        %v1331 = vpow.pop %v1330
        %v1332 = vmul.f32 %v1319, 1.442695
        %v1333 = vpow.pop %v1332
        %v1334 = vmul.f32 %v1320, 1.442695
        %v1335 = vpow.pop %v1334
        %v1336 = vmul.f32 %v1321, 1.442695
        %v1337 = vpow.pop %v1336
        %v1338 = vsel %vm1019, %v1323, 0.0
        %1339 = vadd.xlane.f32.xlu0 %v1338
        %v1340 = vpop.xlane.xlu0 %1339
        %v1341 = vsel %vm1019, %v1325, 0.0
        %1342 = vadd.xlane.f32.xlu0 %v1341
        %v1343 = vpop.xlane.xlu0 %1342
        %v1344 = vsel %vm1019, %v1327, 0.0
        %1345 = vadd.xlane.f32.xlu0 %v1344
        %v1346 = vpop.xlane.xlu0 %1345
        %v1347 = vsel %vm1019, %v1329, 0.0
        %1348 = vadd.xlane.f32.xlu0 %v1347
        %v1349 = vpop.xlane.xlu0 %1348
        %v1350 = vsel %vm1019, %v1331, 0.0
        %1351 = vadd.xlane.f32.xlu0 %v1350
        %v1352 = vpop.xlane.xlu0 %1351
        %v1353 = vsel %vm1019, %v1333, 0.0
        %1354 = vadd.xlane.f32.xlu0 %v1353
        %v1355 = vpop.xlane.xlu0 %1354
        %v1356 = vsel %vm1019, %v1335, 0.0
        %1357 = vadd.xlane.f32.xlu0 %v1356
        %v1358 = vpop.xlane.xlu0 %1357
        %v1359 = vsel %vm1019, %v1337, 0.0
        %1360 = vadd.xlane.f32.xlu0 %v1359
        %v1361 = vpop.xlane.xlu0 %1360
        %v1362 = vrcp.pop %v1340
        %v1363 = vrcp.pop %v1343
        %v1364 = vrcp.pop %v1346
        %v1365 = vrcp.pop %v1349
        %v1366 = vrcp.pop %v1352
        %v1367 = vrcp.pop %v1355
        %v1368 = vrcp.pop %v1358
        %v1369 = vrcp.pop %v1361
        %v1370 = vmul.f32 %v1323, %v1362
        %v1371 = vmul.f32 %v1325, %v1363
        %v1372 = vmul.f32 %v1327, %v1364
        %v1373 = vmul.f32 %v1329, %v1365
        %v1374 = vmul.f32 %v1331, %v1366
        %v1375 = vmul.f32 %v1333, %v1367
        %v1376 = vmul.f32 %v1335, %v1368
        %v1377 = vmul.f32 %v1337, %v1369
        %1378 = vrot.lane.b32.xlu0 %v1205, 120
        %v1379 = vpop.permute.xlu0 %1378
        %1380 = vrot.lane.b32.xlu0 %v1208, 120
        %v1381 = vpop.permute.xlu0 %1380
        %v1385 = vsel %vm1019, %v1370, 0
        %v1388 = vsel %vm1019, %v1371, 0
        %v1391 = vsel %vm1019, %v1372, 0
        %v1394 = vsel %vm1019, %v1373, 0
        %v1397 = vsel %vm1019, %v1374, 0
        %v1400 = vsel %vm1019, %v1375, 0
        %v1403 = vsel %vm1019, %v1376, 0
        %v1406 = vsel %vm1019, %v1377, 0
        %1408 = vmatpush.msra.mxu0 0.0
        %1409 = vmatpush.msra.mxu0 0.0
        %1410 = vmatpush.msra.mxu0 0.0
        %1411 = vmatpush.msra.mxu0 0.0
        %1412 = vmatpush.msra.mxu0 0.0
        %1413 = vmatpush.msra.mxu0 0.0
        %1414 = vmatpush.msra.mxu0 0.0
        %1415 = vmatpush.msra.mxu0 0.0
        %1416 = vmatpush.msra.mxu0 0.0
        %1417 = vmatpush.msra.mxu0 0.0
        %1418 = vmatpush.msra.mxu0 0.0
        %1419 = vmatpush.msra.mxu0 0.0
        %1420 = vmatpush.msra.mxu0 0.0
        %1421 = vmatpush.msra.mxu0 0.0
        %1422 = vmatpush.msra.mxu0 %v1381
        %1423 = vmatpush.msra.mxu0 %v1379
        %1424 = vmatmul.f32.gmra.mxu0 %v1385
        %v1425 = vpop.f32.mrf.mxu0
        %v1426 = vadd.f32 0.0, %v1425
        %1427 = vmatmul.f32.gmra.mxu0 %v1388
        %v1428 = vpop.f32.mrf.mxu0
        %v1429 = vadd.f32 0.0, %v1428
        %1430 = vmatmul.f32.gmra.mxu0 %v1391
        %v1431 = vpop.f32.mrf.mxu0
        %v1432 = vadd.f32 0.0, %v1431
        %1433 = vmatmul.f32.gmra.mxu0 %v1394
        %v1434 = vpop.f32.mrf.mxu0
        %v1435 = vadd.f32 0.0, %v1434
        %1436 = vmatmul.f32.gmra.mxu0 %v1397
        %v1437 = vpop.f32.mrf.mxu0
        %v1438 = vadd.f32 0.0, %v1437
        %1439 = vmatmul.f32.gmra.mxu0 %v1400
        %v1440 = vpop.f32.mrf.mxu0
        %v1441 = vadd.f32 0.0, %v1440
        %1442 = vmatmul.f32.gmra.mxu0 %v1403
        %v1443 = vpop.f32.mrf.mxu0
        %v1444 = vadd.f32 0.0, %v1443
        %1445 = vmatmul.f32.gmra.mxu0 %v1406
        %v1446 = vpop.f32.mrf.mxu0
        %v1447 = vadd.f32 0.0, %v1446
        %1448 = vdwg.mxu0
        %v1449 = vld [vmem:[%s19] sm:$0xff]
        %v1450 = vld [vmem:[%s19 + $0x8] sm:$0xff]
        %v1451 = vld [vmem:[%s21] sm:$0x1]
        %v1453 = vperm.slane %v1451, 0
        %v1456 = vsel %vm1019, %v1426, 0
        %v1459 = vsel %vm1019, %v1429, 0
        %v1462 = vsel %vm1019, %v1432, 0
        %v1465 = vsel %vm1019, %v1435, 0
        %v1468 = vsel %vm1019, %v1438, 0
        %v1471 = vsel %vm1019, %v1441, 0
        %v1474 = vsel %vm1019, %v1444, 0
        %v1477 = vsel %vm1019, %v1447, 0
        %1479 = vmatpush.msra.mxu0 0.0
        %1480 = vmatpush.msra.mxu0 0.0
        %1481 = vmatpush.msra.mxu0 0.0
        %1482 = vmatpush.msra.mxu0 0.0
        %1483 = vmatpush.msra.mxu0 0.0
        %1484 = vmatpush.msra.mxu0 0.0
        %1485 = vmatpush.msra.mxu0 0.0
        %1486 = vmatpush.msra.mxu0 0.0
        %1487 = vmatpush.msra.mxu0 0.0
        %1488 = vmatpush.msra.mxu0 0.0
        %1489 = vmatpush.msra.mxu0 0.0
        %1490 = vmatpush.msra.mxu0 0.0
        %1491 = vmatpush.msra.mxu0 0.0
        %1492 = vmatpush.msra.mxu0 0.0
        %1493 = vmatpush.msra.mxu0 %v1450
        %1494 = vmatpush.msra.mxu0 %v1449
        %1495 = vmatmul.f32.gmra.mxu0 %v1456
        %v1496 = vpop.f32.mrf.mxu0
        %v1497 = vadd.f32 %v1453, %v1496
        %1498 = vmatmul.f32.gmra.mxu0 %v1459
        %v1499 = vpop.f32.mrf.mxu0
        %v1500 = vadd.f32 %v1453, %v1499
        %1501 = vmatmul.f32.gmra.mxu0 %v1462
        %v1502 = vpop.f32.mrf.mxu0
        %v1503 = vadd.f32 %v1453, %v1502
        %1504 = vmatmul.f32.gmra.mxu0 %v1465
        %v1505 = vpop.f32.mrf.mxu0
        %v1506 = vadd.f32 %v1453, %v1505
        %1507 = vmatmul.f32.gmra.mxu0 %v1468
        %v1508 = vpop.f32.mrf.mxu0
        %v1509 = vadd.f32 %v1453, %v1508
        %1510 = vmatmul.f32.gmra.mxu0 %v1471
        %v1511 = vpop.f32.mrf.mxu0
        %v1512 = vadd.f32 %v1453, %v1511
        %1513 = vmatmul.f32.gmra.mxu0 %v1474
        %v1514 = vpop.f32.mrf.mxu0
        %v1515 = vadd.f32 %v1453, %v1514
        %1516 = vmatmul.f32.gmra.mxu0 %v1477
        %v1517 = vpop.f32.mrf.mxu0
        %v1518 = vadd.f32 %v1453, %v1517
        %1519 = vdwg.mxu0
        %1528 = vrot.lane.b32.xlu0 %v1497, 120
        %v1529 = vpop.permute.xlu0 %1528
        %1530 = vrot.lane.b32.xlu0 %v1500, 120
        %v1531 = vpop.permute.xlu0 %1530
        %1532 = vrot.lane.b32.xlu0 %v1503, 120
        %v1533 = vpop.permute.xlu0 %1532
        %1534 = vrot.lane.b32.xlu0 %v1506, 120
        %v1535 = vpop.permute.xlu0 %1534
        %1536 = vrot.lane.b32.xlu0 %v1509, 120
        %v1537 = vpop.permute.xlu0 %1536
        %1538 = vrot.lane.b32.xlu0 %v1512, 120
        %v1539 = vpop.permute.xlu0 %1538
        %1540 = vrot.lane.b32.xlu0 %v1515, 120
        %v1541 = vpop.permute.xlu0 %1540
        %1542 = vrot.lane.b32.xlu0 %v1518, 120
        %v1543 = vpop.permute.xlu0 %1542
        %v1544 = vsel %vm1210, %v1497, 0
        %v1546 = vsel %vm1210, %v1500, 0
        %v1548 = vsel %vm1210, %v1503, 0
        %v1550 = vsel %vm1210, %v1506, 0
        %v1552 = vsel %vm1210, %v1509, 0
        %v1554 = vsel %vm1210, %v1512, 0
        %v1556 = vsel %vm1210, %v1515, 0
        %v1558 = vsel %vm1210, %v1518, 0
        %v1560 = vsel %vm1210, %v1529, 0
        %v1562 = vsel %vm1210, %v1531, 0
        %v1564 = vsel %vm1210, %v1533, 0
        %v1566 = vsel %vm1210, %v1535, 0
        %v1568 = vsel %vm1210, %v1537, 0
        %v1570 = vsel %vm1210, %v1539, 0
        %v1572 = vsel %vm1210, %v1541, 0
        %v1574 = vsel %vm1210, %v1543, 0
        %1576 = vmatpush.xpose.msra.mxu0 0.0
        %1577 = vmatpush.xpose.msra.mxu0 0.0
        %1578 = vmatpush.xpose.msra.mxu0 0.0
        %1579 = vmatpush.xpose.msra.mxu0 0.0
        %1580 = vmatpush.xpose.msra.mxu0 0.0
        %1581 = vmatpush.xpose.msra.mxu0 0.0
        %1582 = vmatpush.xpose.msra.mxu0 0.0
        %1583 = vmatpush.xpose.msra.mxu0 0.0
        %1584 = vmatpush.xpose.msra.mxu0 %v1574
        %1585 = vmatpush.xpose.msra.mxu0 %v1572
        %1586 = vmatpush.xpose.msra.mxu0 %v1570
        %1587 = vmatpush.xpose.msra.mxu0 %v1568
        %1588 = vmatpush.xpose.msra.mxu0 %v1566
        %1589 = vmatpush.xpose.msra.mxu0 %v1564
        %1590 = vmatpush.xpose.msra.mxu0 %v1562
        %1591 = vmatpush.xpose.msra.mxu0 %v1560
        %1592 = vmatmul.f32.gmra.mxu0 %v1544
        %v1593 = vpop.f32.mrf.mxu0
        %v1594 = vadd.f32 0.0, %v1593
        %1595 = vmatmul.f32.gmra.mxu0 %v1546
        %v1596 = vpop.f32.mrf.mxu0
        %v1597 = vadd.f32 0.0, %v1596
        %1598 = vmatmul.f32.gmra.mxu0 %v1548
        %v1599 = vpop.f32.mrf.mxu0
        %v1600 = vadd.f32 0.0, %v1599
        %1601 = vmatmul.f32.gmra.mxu0 %v1550
        %v1602 = vpop.f32.mrf.mxu0
        %v1603 = vadd.f32 0.0, %v1602
        %1604 = vmatmul.f32.gmra.mxu0 %v1552
        %v1605 = vpop.f32.mrf.mxu0
        %v1606 = vadd.f32 0.0, %v1605
        %1607 = vmatmul.f32.gmra.mxu0 %v1554
        %v1608 = vpop.f32.mrf.mxu0
        %v1609 = vadd.f32 0.0, %v1608
        %1610 = vmatmul.f32.gmra.mxu0 %v1556
        %v1611 = vpop.f32.mrf.mxu0
        %v1612 = vadd.f32 0.0, %v1611
        %1613 = vmatmul.f32.gmra.mxu0 %v1558
        %v1614 = vpop.f32.mrf.mxu0
        %v1615 = vadd.f32 0.0, %v1614
        %1616 = vdwg.mxu0
        %v1617 = vmul.f32 %v1594, 0.35355338
        %v1618 = vmul.f32 %v1597, 0.35355338
        %v1619 = vmul.f32 %v1600, 0.35355338
        %v1620 = vmul.f32 %v1603, 0.35355338
        %v1621 = vmul.f32 %v1606, 0.35355338
        %v1622 = vmul.f32 %v1609, 0.35355338
        %v1623 = vmul.f32 %v1612, 0.35355338
        %v1624 = vmul.f32 %v1615, 0.35355338
        %v1625 = vsel %vm1019, %v1617, -inf
        %1626 = vmax.xlane.f32.xlu0 %v1625
        %v1627 = vpop.xlane.xlu0 %1626
        %v1628 = vsel %vm1019, %v1618, -inf
        %1629 = vmax.xlane.f32.xlu0 %v1628
        %v1630 = vpop.xlane.xlu0 %1629
        %v1631 = vsel %vm1019, %v1619, -inf
        %1632 = vmax.xlane.f32.xlu0 %v1631
        %v1633 = vpop.xlane.xlu0 %1632
        %v1634 = vsel %vm1019, %v1620, -inf
        %1635 = vmax.xlane.f32.xlu0 %v1634
        %v1636 = vpop.xlane.xlu0 %1635
        %v1637 = vsel %vm1019, %v1621, -inf
        %1638 = vmax.xlane.f32.xlu0 %v1637
        %v1639 = vpop.xlane.xlu0 %1638
        %v1640 = vsel %vm1019, %v1622, -inf
        %1641 = vmax.xlane.f32.xlu0 %v1640
        %v1642 = vpop.xlane.xlu0 %1641
        %v1643 = vsel %vm1019, %v1623, -inf
        %1644 = vmax.xlane.f32.xlu0 %v1643
        %v1645 = vpop.xlane.xlu0 %1644
        %v1646 = vsel %vm1019, %v1624, -inf
        %1647 = vmax.xlane.f32.xlu0 %v1646
        %v1648 = vpop.xlane.xlu0 %1647
        %v1649 = vsub.f32 %v1617, %v1627
        %v1650 = vsub.f32 %v1618, %v1630
        %v1651 = vsub.f32 %v1619, %v1633
        %v1652 = vsub.f32 %v1620, %v1636
        %v1653 = vsub.f32 %v1621, %v1639
        %v1654 = vsub.f32 %v1622, %v1642
        %v1655 = vsub.f32 %v1623, %v1645
        %v1656 = vsub.f32 %v1624, %v1648
        %v1657 = vmul.f32 %v1649, 1.442695
        %v1658 = vpow.pop %v1657
        %v1659 = vmul.f32 %v1650, 1.442695
        %v1660 = vpow.pop %v1659
        %v1661 = vmul.f32 %v1651, 1.442695
        %v1662 = vpow.pop %v1661
        %v1663 = vmul.f32 %v1652, 1.442695
        %v1664 = vpow.pop %v1663
        %v1665 = vmul.f32 %v1653, 1.442695
        %v1666 = vpow.pop %v1665
        %v1667 = vmul.f32 %v1654, 1.442695
        %v1668 = vpow.pop %v1667
        %v1669 = vmul.f32 %v1655, 1.442695
        %v1670 = vpow.pop %v1669
        %v1671 = vmul.f32 %v1656, 1.442695
        %v1672 = vpow.pop %v1671
        %v1673 = vsel %vm1019, %v1658, 0.0
        %1674 = vadd.xlane.f32.xlu0 %v1673
        %v1675 = vpop.xlane.xlu0 %1674
        %v1676 = vsel %vm1019, %v1660, 0.0
        %1677 = vadd.xlane.f32.xlu0 %v1676
        %v1678 = vpop.xlane.xlu0 %1677
        %v1679 = vsel %vm1019, %v1662, 0.0
        %1680 = vadd.xlane.f32.xlu0 %v1679
        %v1681 = vpop.xlane.xlu0 %1680
        %v1682 = vsel %vm1019, %v1664, 0.0
        %1683 = vadd.xlane.f32.xlu0 %v1682
        %v1684 = vpop.xlane.xlu0 %1683
        %v1685 = vsel %vm1019, %v1666, 0.0
        %1686 = vadd.xlane.f32.xlu0 %v1685
        %v1687 = vpop.xlane.xlu0 %1686
        %v1688 = vsel %vm1019, %v1668, 0.0
        %1689 = vadd.xlane.f32.xlu0 %v1688
        %v1690 = vpop.xlane.xlu0 %1689
        %v1691 = vsel %vm1019, %v1670, 0.0
        %1692 = vadd.xlane.f32.xlu0 %v1691
        %v1693 = vpop.xlane.xlu0 %1692
        %v1694 = vsel %vm1019, %v1672, 0.0
        %1695 = vadd.xlane.f32.xlu0 %v1694
        %v1696 = vpop.xlane.xlu0 %1695
        %v1697 = vrcp.pop %v1675
        %v1698 = vrcp.pop %v1678
        %v1699 = vrcp.pop %v1681
        %v1700 = vrcp.pop %v1684
        %v1701 = vrcp.pop %v1687
        %v1702 = vrcp.pop %v1690
        %v1703 = vrcp.pop %v1693
        %v1704 = vrcp.pop %v1696
        %v1705 = vmul.f32 %v1658, %v1697
        %v1706 = vmul.f32 %v1660, %v1698
        %v1707 = vmul.f32 %v1662, %v1699
        %v1708 = vmul.f32 %v1664, %v1700
        %v1709 = vmul.f32 %v1666, %v1701
        %v1710 = vmul.f32 %v1668, %v1702
        %v1711 = vmul.f32 %v1670, %v1703
        %v1712 = vmul.f32 %v1672, %v1704
        %1713 = vrot.lane.b32.xlu0 %v1497, 112
        %v1714 = vpop.permute.xlu0 %1713
        %1715 = vrot.lane.b32.xlu0 %v1500, 112
        %v1716 = vpop.permute.xlu0 %1715
        %v1720 = vsel %vm1019, %v1705, 0
        %v1723 = vsel %vm1019, %v1706, 0
        %v1726 = vsel %vm1019, %v1707, 0
        %v1729 = vsel %vm1019, %v1708, 0
        %v1732 = vsel %vm1019, %v1709, 0
        %v1735 = vsel %vm1019, %v1710, 0
        %v1738 = vsel %vm1019, %v1711, 0
        %v1741 = vsel %vm1019, %v1712, 0
        %1743 = vmatpush.msra.mxu0 0.0
        %1744 = vmatpush.msra.mxu0 0.0
        %1745 = vmatpush.msra.mxu0 0.0
        %1746 = vmatpush.msra.mxu0 0.0
        %1747 = vmatpush.msra.mxu0 0.0
        %1748 = vmatpush.msra.mxu0 0.0
        %1749 = vmatpush.msra.mxu0 0.0
        %1750 = vmatpush.msra.mxu0 0.0
        %1751 = vmatpush.msra.mxu0 0.0
        %1752 = vmatpush.msra.mxu0 0.0
        %1753 = vmatpush.msra.mxu0 0.0
        %1754 = vmatpush.msra.mxu0 0.0
        %1755 = vmatpush.msra.mxu0 0.0
        %1756 = vmatpush.msra.mxu0 0.0
        %1757 = vmatpush.msra.mxu0 %v1716
        %1758 = vmatpush.msra.mxu0 %v1714
        %1759 = vmatmul.f32.gmra.mxu0 %v1720
        %v1760 = vpop.f32.mrf.mxu0
        %v1761 = vadd.f32 0.0, %v1760
        %1762 = vmatmul.f32.gmra.mxu0 %v1723
        %v1763 = vpop.f32.mrf.mxu0
        %v1764 = vadd.f32 0.0, %v1763
        %1765 = vmatmul.f32.gmra.mxu0 %v1726
        %v1766 = vpop.f32.mrf.mxu0
        %v1767 = vadd.f32 0.0, %v1766
        %1768 = vmatmul.f32.gmra.mxu0 %v1729
        %v1769 = vpop.f32.mrf.mxu0
        %v1770 = vadd.f32 0.0, %v1769
        %1771 = vmatmul.f32.gmra.mxu0 %v1732
        %v1772 = vpop.f32.mrf.mxu0
        %v1773 = vadd.f32 0.0, %v1772
        %1774 = vmatmul.f32.gmra.mxu0 %v1735
        %v1775 = vpop.f32.mrf.mxu0
        %v1776 = vadd.f32 0.0, %v1775
        %1777 = vmatmul.f32.gmra.mxu0 %v1738
        %v1778 = vpop.f32.mrf.mxu0
        %v1779 = vadd.f32 0.0, %v1778
        %1780 = vmatmul.f32.gmra.mxu0 %v1741
        %v1781 = vpop.f32.mrf.mxu0
        %v1782 = vadd.f32 0.0, %v1781
        %1783 = vdwg.mxu0
        %vm1784 = vcmask 261248
        %v1785 = vsel %vm1784, %v1617, -inf
        %1786 = vmax.xlane.f32.xlu0 %v1785
        %v1787 = vpop.xlane.xlu0 %1786
        %v1788 = vsel %vm1784, %v1618, -inf
        %1789 = vmax.xlane.f32.xlu0 %v1788
        %v1790 = vpop.xlane.xlu0 %1789
        %v1791 = vsel %vm1784, %v1619, -inf
        %1792 = vmax.xlane.f32.xlu0 %v1791
        %v1793 = vpop.xlane.xlu0 %1792
        %v1794 = vsel %vm1784, %v1620, -inf
        %1795 = vmax.xlane.f32.xlu0 %v1794
        %v1796 = vpop.xlane.xlu0 %1795
        %v1797 = vsel %vm1784, %v1621, -inf
        %1798 = vmax.xlane.f32.xlu0 %v1797
        %v1799 = vpop.xlane.xlu0 %1798
        %v1800 = vsel %vm1784, %v1622, -inf
        %1801 = vmax.xlane.f32.xlu0 %v1800
        %v1802 = vpop.xlane.xlu0 %1801
        %v1803 = vsel %vm1784, %v1623, -inf
        %1804 = vmax.xlane.f32.xlu0 %v1803
        %v1805 = vpop.xlane.xlu0 %1804
        %v1806 = vsel %vm1784, %v1624, -inf
        %1807 = vmax.xlane.f32.xlu0 %v1806
        %v1808 = vpop.xlane.xlu0 %1807
        %v1809 = vsub.f32 %v1617, %v1787
        %v1810 = vsub.f32 %v1618, %v1790
        %v1811 = vsub.f32 %v1619, %v1793
        %v1812 = vsub.f32 %v1620, %v1796
        %v1813 = vsub.f32 %v1621, %v1799
        %v1814 = vsub.f32 %v1622, %v1802
        %v1815 = vsub.f32 %v1623, %v1805
        %v1816 = vsub.f32 %v1624, %v1808
        %v1817 = vmul.f32 %v1809, 1.442695
        %v1818 = vpow.pop %v1817
        %v1819 = vmul.f32 %v1810, 1.442695
        %v1820 = vpow.pop %v1819
        %v1821 = vmul.f32 %v1811, 1.442695
        %v1822 = vpow.pop %v1821
        %v1823 = vmul.f32 %v1812, 1.442695
        %v1824 = vpow.pop %v1823
        %v1825 = vmul.f32 %v1813, 1.442695
        %v1826 = vpow.pop %v1825
        %v1827 = vmul.f32 %v1814, 1.442695
        %v1828 = vpow.pop %v1827
        %v1829 = vmul.f32 %v1815, 1.442695
        %v1830 = vpow.pop %v1829
        %v1831 = vmul.f32 %v1816, 1.442695
        %v1832 = vpow.pop %v1831
        %1841 = vrot.lane.b32.xlu0 %v1818, 112
        %v1842 = vpop.permute.xlu0 %1841
        %1843 = vrot.lane.b32.xlu0 %v1820, 112
        %v1844 = vpop.permute.xlu0 %1843
        %1845 = vrot.lane.b32.xlu0 %v1822, 112
        %v1846 = vpop.permute.xlu0 %1845
        %1847 = vrot.lane.b32.xlu0 %v1824, 112
        %v1848 = vpop.permute.xlu0 %1847
        %1849 = vrot.lane.b32.xlu0 %v1826, 112
        %v1850 = vpop.permute.xlu0 %1849
        %1851 = vrot.lane.b32.xlu0 %v1828, 112
        %v1852 = vpop.permute.xlu0 %1851
        %1853 = vrot.lane.b32.xlu0 %v1830, 112
        %v1854 = vpop.permute.xlu0 %1853
        %1855 = vrot.lane.b32.xlu0 %v1832, 112
        %v1856 = vpop.permute.xlu0 %1855
        %v1865 = vsel %vm1019, %v1842, 0.0
        %1866 = vadd.xlane.f32.xlu0 %v1865
        %v1867 = vpop.xlane.xlu0 %1866
        %v1868 = vsel %vm1019, %v1844, 0.0
        %1869 = vadd.xlane.f32.xlu0 %v1868
        %v1870 = vpop.xlane.xlu0 %1869
        %v1871 = vsel %vm1019, %v1846, 0.0
        %1872 = vadd.xlane.f32.xlu0 %v1871
        %v1873 = vpop.xlane.xlu0 %1872
        %v1874 = vsel %vm1019, %v1848, 0.0
        %1875 = vadd.xlane.f32.xlu0 %v1874
        %v1876 = vpop.xlane.xlu0 %1875
        %v1877 = vsel %vm1019, %v1850, 0.0
        %1878 = vadd.xlane.f32.xlu0 %v1877
        %v1879 = vpop.xlane.xlu0 %1878
        %v1880 = vsel %vm1019, %v1852, 0.0
        %1881 = vadd.xlane.f32.xlu0 %v1880
        %v1882 = vpop.xlane.xlu0 %1881
        %v1883 = vsel %vm1019, %v1854, 0.0
        %1884 = vadd.xlane.f32.xlu0 %v1883
        %v1885 = vpop.xlane.xlu0 %1884
        %v1886 = vsel %vm1019, %v1856, 0.0
        %1887 = vadd.xlane.f32.xlu0 %v1886
        %v1888 = vpop.xlane.xlu0 %1887
        %v1889 = vrcp.pop %v1867
        %v1890 = vrcp.pop %v1870
        %v1891 = vrcp.pop %v1873
        %v1892 = vrcp.pop %v1876
        %v1893 = vrcp.pop %v1879
        %v1894 = vrcp.pop %v1882
        %v1895 = vrcp.pop %v1885
        %v1896 = vrcp.pop %v1888
        %v1897 = vmul.f32 %v1818, %v1889
        %v1898 = vmul.f32 %v1820, %v1890
        %v1899 = vmul.f32 %v1822, %v1891
        %v1900 = vmul.f32 %v1824, %v1892
        %v1901 = vmul.f32 %v1826, %v1893
        %v1902 = vmul.f32 %v1828, %v1894
        %v1903 = vmul.f32 %v1830, %v1895
        %v1904 = vmul.f32 %v1832, %v1896
        %1913 = vrot.lane.b32.xlu0 %v1897, 112
        %v1914 = vpop.permute.xlu0 %1913
        %1915 = vrot.lane.b32.xlu0 %v1898, 112
        %v1916 = vpop.permute.xlu0 %1915
        %1917 = vrot.lane.b32.xlu0 %v1899, 112
        %v1918 = vpop.permute.xlu0 %1917
        %1919 = vrot.lane.b32.xlu0 %v1900, 112
        %v1920 = vpop.permute.xlu0 %1919
        %1921 = vrot.lane.b32.xlu0 %v1901, 112
        %v1922 = vpop.permute.xlu0 %1921
        %1923 = vrot.lane.b32.xlu0 %v1902, 112
        %v1924 = vpop.permute.xlu0 %1923
        %1925 = vrot.lane.b32.xlu0 %v1903, 112
        %v1926 = vpop.permute.xlu0 %1925
        %1927 = vrot.lane.b32.xlu0 %v1904, 112
        %v1928 = vpop.permute.xlu0 %1927
        %1929 = vrot.lane.b32.xlu0 %v1503, 112
        %v1930 = vpop.permute.xlu0 %1929
        %1931 = vrot.lane.b32.xlu0 %v1506, 112
        %v1932 = vpop.permute.xlu0 %1931
        %v1935 = vsel %vm1019, %v1914, 0
        %v1937 = vsel %vm1019, %v1916, 0
        %v1939 = vsel %vm1019, %v1918, 0
        %v1941 = vsel %vm1019, %v1920, 0
        %v1943 = vsel %vm1019, %v1922, 0
        %v1945 = vsel %vm1019, %v1924, 0
        %v1947 = vsel %vm1019, %v1926, 0
        %v1949 = vsel %vm1019, %v1928, 0
        %1951 = vmatpush.msra.mxu0 0.0
        %1952 = vmatpush.msra.mxu0 0.0
        %1953 = vmatpush.msra.mxu0 0.0
        %1954 = vmatpush.msra.mxu0 0.0
        %1955 = vmatpush.msra.mxu0 0.0
        %1956 = vmatpush.msra.mxu0 0.0
        %1957 = vmatpush.msra.mxu0 0.0
        %1958 = vmatpush.msra.mxu0 0.0
        %1959 = vmatpush.msra.mxu0 0.0
        %1960 = vmatpush.msra.mxu0 0.0
        %1961 = vmatpush.msra.mxu0 0.0
        %1962 = vmatpush.msra.mxu0 0.0
        %1963 = vmatpush.msra.mxu0 0.0
        %1964 = vmatpush.msra.mxu0 0.0
        %1965 = vmatpush.msra.mxu0 %v1932
        %1966 = vmatpush.msra.mxu0 %v1930
        %1967 = vmatmul.f32.gmra.mxu0 %v1935
        %v1968 = vpop.f32.mrf.mxu0
        %v1969 = vadd.f32 0.0, %v1968
        %1970 = vmatmul.f32.gmra.mxu0 %v1937
        %v1971 = vpop.f32.mrf.mxu0
        %v1972 = vadd.f32 0.0, %v1971
        %1973 = vmatmul.f32.gmra.mxu0 %v1939
        %v1974 = vpop.f32.mrf.mxu0
        %v1975 = vadd.f32 0.0, %v1974
        %1976 = vmatmul.f32.gmra.mxu0 %v1941
        %v1977 = vpop.f32.mrf.mxu0
        %v1978 = vadd.f32 0.0, %v1977
        %1979 = vmatmul.f32.gmra.mxu0 %v1943
        %v1980 = vpop.f32.mrf.mxu0
        %v1981 = vadd.f32 0.0, %v1980
        %1982 = vmatmul.f32.gmra.mxu0 %v1945
        %v1983 = vpop.f32.mrf.mxu0
        %v1984 = vadd.f32 0.0, %v1983
        %1985 = vmatmul.f32.gmra.mxu0 %v1947
        %v1986 = vpop.f32.mrf.mxu0
        %v1987 = vadd.f32 0.0, %v1986
        %1988 = vmatmul.f32.gmra.mxu0 %v1949
        %v1989 = vpop.f32.mrf.mxu0
        %v1990 = vadd.f32 0.0, %v1989
        %1991 = vdwg.mxu0
        %vm1992 = vcmask 392448
        %v1993 = vsel %vm1992, %v1617, -inf
        %1994 = vmax.xlane.f32.xlu0 %v1993
        %v1995 = vpop.xlane.xlu0 %1994
        %v1996 = vsel %vm1992, %v1618, -inf
        %1997 = vmax.xlane.f32.xlu0 %v1996
        %v1998 = vpop.xlane.xlu0 %1997
        %v1999 = vsel %vm1992, %v1619, -inf
        %2000 = vmax.xlane.f32.xlu0 %v1999
        %v2001 = vpop.xlane.xlu0 %2000
        %v2002 = vsel %vm1992, %v1620, -inf
        %2003 = vmax.xlane.f32.xlu0 %v2002
        %v2004 = vpop.xlane.xlu0 %2003
        %v2005 = vsel %vm1992, %v1621, -inf
        %2006 = vmax.xlane.f32.xlu0 %v2005
        %v2007 = vpop.xlane.xlu0 %2006
        %v2008 = vsel %vm1992, %v1622, -inf
        %2009 = vmax.xlane.f32.xlu0 %v2008
        %v2010 = vpop.xlane.xlu0 %2009
        %v2011 = vsel %vm1992, %v1623, -inf
        %2012 = vmax.xlane.f32.xlu0 %v2011
        %v2013 = vpop.xlane.xlu0 %2012
        %v2014 = vsel %vm1992, %v1624, -inf
        %2015 = vmax.xlane.f32.xlu0 %v2014
        %v2016 = vpop.xlane.xlu0 %2015
        %v2017 = vsub.f32 %v1617, %v1995
        %v2018 = vsub.f32 %v1618, %v1998
        %v2019 = vsub.f32 %v1619, %v2001
        %v2020 = vsub.f32 %v1620, %v2004
        %v2021 = vsub.f32 %v1621, %v2007
        %v2022 = vsub.f32 %v1622, %v2010
        %v2023 = vsub.f32 %v1623, %v2013
        %v2024 = vsub.f32 %v1624, %v2016
        %v2025 = vmul.f32 %v2017, 1.442695
        %v2026 = vpow.pop %v2025
        %v2027 = vmul.f32 %v2018, 1.442695
        %v2028 = vpow.pop %v2027
        %v2029 = vmul.f32 %v2019, 1.442695
        %v2030 = vpow.pop %v2029
        %v2031 = vmul.f32 %v2020, 1.442695
        %v2032 = vpow.pop %v2031
        %v2033 = vmul.f32 %v2021, 1.442695
        %v2034 = vpow.pop %v2033
        %v2035 = vmul.f32 %v2022, 1.442695
        %v2036 = vpow.pop %v2035
        %v2037 = vmul.f32 %v2023, 1.442695
        %v2038 = vpow.pop %v2037
        %v2039 = vmul.f32 %v2024, 1.442695
        %v2040 = vpow.pop %v2039
        %2049 = vrot.lane.b32.xlu0 %v2026, 96
        %v2050 = vpop.permute.xlu0 %2049
        %2051 = vrot.lane.b32.xlu0 %v2028, 96
        %v2052 = vpop.permute.xlu0 %2051
        %2053 = vrot.lane.b32.xlu0 %v2030, 96
        %v2054 = vpop.permute.xlu0 %2053
        %2055 = vrot.lane.b32.xlu0 %v2032, 96
        %v2056 = vpop.permute.xlu0 %2055
        %2057 = vrot.lane.b32.xlu0 %v2034, 96
        %v2058 = vpop.permute.xlu0 %2057
        %2059 = vrot.lane.b32.xlu0 %v2036, 96
        %v2060 = vpop.permute.xlu0 %2059
        %2061 = vrot.lane.b32.xlu0 %v2038, 96
        %v2062 = vpop.permute.xlu0 %2061
        %2063 = vrot.lane.b32.xlu0 %v2040, 96
        %v2064 = vpop.permute.xlu0 %2063
        %v2073 = vsel %vm1019, %v2050, 0.0
        %2074 = vadd.xlane.f32.xlu0 %v2073
        %v2075 = vpop.xlane.xlu0 %2074
        %v2076 = vsel %vm1019, %v2052, 0.0
        %2077 = vadd.xlane.f32.xlu0 %v2076
        %v2078 = vpop.xlane.xlu0 %2077
        %v2079 = vsel %vm1019, %v2054, 0.0
        %2080 = vadd.xlane.f32.xlu0 %v2079
        %v2081 = vpop.xlane.xlu0 %2080
        %v2082 = vsel %vm1019, %v2056, 0.0
        %2083 = vadd.xlane.f32.xlu0 %v2082
        %v2084 = vpop.xlane.xlu0 %2083
        %v2085 = vsel %vm1019, %v2058, 0.0
        %2086 = vadd.xlane.f32.xlu0 %v2085
        %v2087 = vpop.xlane.xlu0 %2086
        %v2088 = vsel %vm1019, %v2060, 0.0
        %2089 = vadd.xlane.f32.xlu0 %v2088
        %v2090 = vpop.xlane.xlu0 %2089
        %v2091 = vsel %vm1019, %v2062, 0.0
        %2092 = vadd.xlane.f32.xlu0 %v2091
        %v2093 = vpop.xlane.xlu0 %2092
        %v2094 = vsel %vm1019, %v2064, 0.0
        %2095 = vadd.xlane.f32.xlu0 %v2094
        %v2096 = vpop.xlane.xlu0 %2095
        %v2097 = vrcp.pop %v2075
        %v2098 = vrcp.pop %v2078
        %v2099 = vrcp.pop %v2081
        %v2100 = vrcp.pop %v2084
        %v2101 = vrcp.pop %v2087
        %v2102 = vrcp.pop %v2090
        %v2103 = vrcp.pop %v2093
        %v2104 = vrcp.pop %v2096
        %v2105 = vmul.f32 %v2026, %v2097
        %v2106 = vmul.f32 %v2028, %v2098
        %v2107 = vmul.f32 %v2030, %v2099
        %v2108 = vmul.f32 %v2032, %v2100
        %v2109 = vmul.f32 %v2034, %v2101
        %v2110 = vmul.f32 %v2036, %v2102
        %v2111 = vmul.f32 %v2038, %v2103
        %v2112 = vmul.f32 %v2040, %v2104
        %2121 = vrot.lane.b32.xlu0 %v2105, 96
        %v2122 = vpop.permute.xlu0 %2121
        %2123 = vrot.lane.b32.xlu0 %v2106, 96
        %v2124 = vpop.permute.xlu0 %2123
        %2125 = vrot.lane.b32.xlu0 %v2107, 96
        %v2126 = vpop.permute.xlu0 %2125
        %2127 = vrot.lane.b32.xlu0 %v2108, 96
        %v2128 = vpop.permute.xlu0 %2127
        %2129 = vrot.lane.b32.xlu0 %v2109, 96
        %v2130 = vpop.permute.xlu0 %2129
        %2131 = vrot.lane.b32.xlu0 %v2110, 96
        %v2132 = vpop.permute.xlu0 %2131
        %2133 = vrot.lane.b32.xlu0 %v2111, 96
        %v2134 = vpop.permute.xlu0 %2133
        %2135 = vrot.lane.b32.xlu0 %v2112, 96
        %v2136 = vpop.permute.xlu0 %2135
        %2137 = vrot.lane.b32.xlu0 %v1509, 112
        %v2138 = vpop.permute.xlu0 %2137
        %2139 = vrot.lane.b32.xlu0 %v1512, 112
        %v2140 = vpop.permute.xlu0 %2139
        %v2143 = vsel %vm1019, %v2122, 0
        %v2145 = vsel %vm1019, %v2124, 0
        %v2147 = vsel %vm1019, %v2126, 0
        %v2149 = vsel %vm1019, %v2128, 0
        %v2151 = vsel %vm1019, %v2130, 0
        %v2153 = vsel %vm1019, %v2132, 0
        %v2155 = vsel %vm1019, %v2134, 0
        %v2157 = vsel %vm1019, %v2136, 0
        %2159 = vmatpush.msra.mxu0 0.0
        %2160 = vmatpush.msra.mxu0 0.0
        %2161 = vmatpush.msra.mxu0 0.0
        %2162 = vmatpush.msra.mxu0 0.0
        %2163 = vmatpush.msra.mxu0 0.0
        %2164 = vmatpush.msra.mxu0 0.0
        %2165 = vmatpush.msra.mxu0 0.0
        %2166 = vmatpush.msra.mxu0 0.0
        %2167 = vmatpush.msra.mxu0 0.0
        %2168 = vmatpush.msra.mxu0 0.0
        %2169 = vmatpush.msra.mxu0 0.0
        %2170 = vmatpush.msra.mxu0 0.0
        %2171 = vmatpush.msra.mxu0 0.0
        %2172 = vmatpush.msra.mxu0 0.0
        %2173 = vmatpush.msra.mxu0 %v2140
        %2174 = vmatpush.msra.mxu0 %v2138
        %2175 = vmatmul.f32.gmra.mxu0 %v2143
        %v2176 = vpop.f32.mrf.mxu0
        %v2177 = vadd.f32 0.0, %v2176
        %2178 = vmatmul.f32.gmra.mxu0 %v2145
        %v2179 = vpop.f32.mrf.mxu0
        %v2180 = vadd.f32 0.0, %v2179
        %2181 = vmatmul.f32.gmra.mxu0 %v2147
        %v2182 = vpop.f32.mrf.mxu0
        %v2183 = vadd.f32 0.0, %v2182
        %2184 = vmatmul.f32.gmra.mxu0 %v2149
        %v2185 = vpop.f32.mrf.mxu0
        %v2186 = vadd.f32 0.0, %v2185
        %2187 = vmatmul.f32.gmra.mxu0 %v2151
        %v2188 = vpop.f32.mrf.mxu0
        %v2189 = vadd.f32 0.0, %v2188
        %2190 = vmatmul.f32.gmra.mxu0 %v2153
        %v2191 = vpop.f32.mrf.mxu0
        %v2192 = vadd.f32 0.0, %v2191
        %2193 = vmatmul.f32.gmra.mxu0 %v2155
        %v2194 = vpop.f32.mrf.mxu0
        %v2195 = vadd.f32 0.0, %v2194
        %2196 = vmatmul.f32.gmra.mxu0 %v2157
        %v2197 = vpop.f32.mrf.mxu0
        %v2198 = vadd.f32 0.0, %v2197
        %2199 = vdwg.mxu0
        %vm2200 = vcmask 523648
        %v2201 = vsel %vm2200, %v1617, -inf
        %2202 = vmax.xlane.f32.xlu0 %v2201
        %v2203 = vpop.xlane.xlu0 %2202
        %v2204 = vsel %vm2200, %v1618, -inf
        %2205 = vmax.xlane.f32.xlu0 %v2204
        %v2206 = vpop.xlane.xlu0 %2205
        %v2207 = vsel %vm2200, %v1619, -inf
        %2208 = vmax.xlane.f32.xlu0 %v2207
        %v2209 = vpop.xlane.xlu0 %2208
        %v2210 = vsel %vm2200, %v1620, -inf
        %2211 = vmax.xlane.f32.xlu0 %v2210
        %v2212 = vpop.xlane.xlu0 %2211
        %v2213 = vsel %vm2200, %v1621, -inf
        %2214 = vmax.xlane.f32.xlu0 %v2213
        %v2215 = vpop.xlane.xlu0 %2214
        %v2216 = vsel %vm2200, %v1622, -inf
        %2217 = vmax.xlane.f32.xlu0 %v2216
        %v2218 = vpop.xlane.xlu0 %2217
        %v2219 = vsel %vm2200, %v1623, -inf
        %2220 = vmax.xlane.f32.xlu0 %v2219
        %v2221 = vpop.xlane.xlu0 %2220
        %v2222 = vsel %vm2200, %v1624, -inf
        %2223 = vmax.xlane.f32.xlu0 %v2222
        %v2224 = vpop.xlane.xlu0 %2223
        %v2225 = vsub.f32 %v1617, %v2203
        %v2226 = vsub.f32 %v1618, %v2206
        %v2227 = vsub.f32 %v1619, %v2209
        %v2228 = vsub.f32 %v1620, %v2212
        %v2229 = vsub.f32 %v1621, %v2215
        %v2230 = vsub.f32 %v1622, %v2218
        %v2231 = vsub.f32 %v1623, %v2221
        %v2232 = vsub.f32 %v1624, %v2224
        %v2233 = vmul.f32 %v2225, 1.442695
        %v2234 = vpow.pop %v2233
        %v2235 = vmul.f32 %v2226, 1.442695
        %v2236 = vpow.pop %v2235
        %v2237 = vmul.f32 %v2227, 1.442695
        %v2238 = vpow.pop %v2237
        %v2239 = vmul.f32 %v2228, 1.442695
        %v2240 = vpow.pop %v2239
        %v2241 = vmul.f32 %v2229, 1.442695
        %v2242 = vpow.pop %v2241
        %v2243 = vmul.f32 %v2230, 1.442695
        %v2244 = vpow.pop %v2243
        %v2245 = vmul.f32 %v2231, 1.442695
        %v2246 = vpow.pop %v2245
        %v2247 = vmul.f32 %v2232, 1.442695
        %v2248 = vpow.pop %v2247
        %2257 = vrot.lane.b32.xlu0 %v2234, 80
        %v2258 = vpop.permute.xlu0 %2257
        %2259 = vrot.lane.b32.xlu0 %v2236, 80
        %v2260 = vpop.permute.xlu0 %2259
        %2261 = vrot.lane.b32.xlu0 %v2238, 80
        %v2262 = vpop.permute.xlu0 %2261
        %2263 = vrot.lane.b32.xlu0 %v2240, 80
        %v2264 = vpop.permute.xlu0 %2263
        %2265 = vrot.lane.b32.xlu0 %v2242, 80
        %v2266 = vpop.permute.xlu0 %2265
        %2267 = vrot.lane.b32.xlu0 %v2244, 80
        %v2268 = vpop.permute.xlu0 %2267
        %2269 = vrot.lane.b32.xlu0 %v2246, 80
        %v2270 = vpop.permute.xlu0 %2269
        %2271 = vrot.lane.b32.xlu0 %v2248, 80
        %v2272 = vpop.permute.xlu0 %2271
        %v2281 = vsel %vm1019, %v2258, 0.0
        %2282 = vadd.xlane.f32.xlu0 %v2281
        %v2283 = vpop.xlane.xlu0 %2282
        %v2284 = vsel %vm1019, %v2260, 0.0
        %2285 = vadd.xlane.f32.xlu0 %v2284
        %v2286 = vpop.xlane.xlu0 %2285
        %v2287 = vsel %vm1019, %v2262, 0.0
        %2288 = vadd.xlane.f32.xlu0 %v2287
        %v2289 = vpop.xlane.xlu0 %2288
        %v2290 = vsel %vm1019, %v2264, 0.0
        %2291 = vadd.xlane.f32.xlu0 %v2290
        %v2292 = vpop.xlane.xlu0 %2291
        %v2293 = vsel %vm1019, %v2266, 0.0
        %2294 = vadd.xlane.f32.xlu0 %v2293
        %v2295 = vpop.xlane.xlu0 %2294
        %v2296 = vsel %vm1019, %v2268, 0.0
        %2297 = vadd.xlane.f32.xlu0 %v2296
        %v2298 = vpop.xlane.xlu0 %2297
        %v2299 = vsel %vm1019, %v2270, 0.0
        %2300 = vadd.xlane.f32.xlu0 %v2299
        %v2301 = vpop.xlane.xlu0 %2300
        %v2302 = vsel %vm1019, %v2272, 0.0
        %2303 = vadd.xlane.f32.xlu0 %v2302
        %v2304 = vpop.xlane.xlu0 %2303
        %v2305 = vrcp.pop %v2283
        %v2306 = vrcp.pop %v2286
        %v2307 = vrcp.pop %v2289
        %v2308 = vrcp.pop %v2292
        %v2309 = vrcp.pop %v2295
        %v2310 = vrcp.pop %v2298
        %v2311 = vrcp.pop %v2301
        %v2312 = vrcp.pop %v2304
        %v2313 = vmul.f32 %v2234, %v2305
        %v2314 = vmul.f32 %v2236, %v2306
        %v2315 = vmul.f32 %v2238, %v2307
        %v2316 = vmul.f32 %v2240, %v2308
        %v2317 = vmul.f32 %v2242, %v2309
        %v2318 = vmul.f32 %v2244, %v2310
        %v2319 = vmul.f32 %v2246, %v2311
        %v2320 = vmul.f32 %v2248, %v2312
        %2329 = vrot.lane.b32.xlu0 %v2313, 80
        %v2330 = vpop.permute.xlu0 %2329
        %2331 = vrot.lane.b32.xlu0 %v2314, 80
        %v2332 = vpop.permute.xlu0 %2331
        %2333 = vrot.lane.b32.xlu0 %v2315, 80
        %v2334 = vpop.permute.xlu0 %2333
        %2335 = vrot.lane.b32.xlu0 %v2316, 80
        %v2336 = vpop.permute.xlu0 %2335
        %2337 = vrot.lane.b32.xlu0 %v2317, 80
        %v2338 = vpop.permute.xlu0 %2337
        %2339 = vrot.lane.b32.xlu0 %v2318, 80
        %v2340 = vpop.permute.xlu0 %2339
        %2341 = vrot.lane.b32.xlu0 %v2319, 80
        %v2342 = vpop.permute.xlu0 %2341
        %2343 = vrot.lane.b32.xlu0 %v2320, 80
        %v2344 = vpop.permute.xlu0 %2343
        %2345 = vrot.lane.b32.xlu0 %v1515, 112
        %v2346 = vpop.permute.xlu0 %2345
        %2347 = vrot.lane.b32.xlu0 %v1518, 112
        %v2348 = vpop.permute.xlu0 %2347
        %v2351 = vsel %vm1019, %v2330, 0
        %v2353 = vsel %vm1019, %v2332, 0
        %v2355 = vsel %vm1019, %v2334, 0
        %v2357 = vsel %vm1019, %v2336, 0
        %v2359 = vsel %vm1019, %v2338, 0
        %v2361 = vsel %vm1019, %v2340, 0
        %v2363 = vsel %vm1019, %v2342, 0
        %v2365 = vsel %vm1019, %v2344, 0
        %2367 = vmatpush.msra.mxu0 0.0
        %2368 = vmatpush.msra.mxu0 0.0
        %2369 = vmatpush.msra.mxu0 0.0
        %2370 = vmatpush.msra.mxu0 0.0
        %2371 = vmatpush.msra.mxu0 0.0
        %2372 = vmatpush.msra.mxu0 0.0
        %2373 = vmatpush.msra.mxu0 0.0
        %2374 = vmatpush.msra.mxu0 0.0
        %2375 = vmatpush.msra.mxu0 0.0
        %2376 = vmatpush.msra.mxu0 0.0
        %2377 = vmatpush.msra.mxu0 0.0
        %2378 = vmatpush.msra.mxu0 0.0
        %2379 = vmatpush.msra.mxu0 0.0
        %2380 = vmatpush.msra.mxu0 0.0
        %2381 = vmatpush.msra.mxu0 %v2348
        %2382 = vmatpush.msra.mxu0 %v2346
        %2383 = vmatmul.f32.gmra.mxu0 %v2351
        %v2384 = vpop.f32.mrf.mxu0
        %v2385 = vadd.f32 0.0, %v2384
        %2386 = vmatmul.f32.gmra.mxu0 %v2353
        %v2387 = vpop.f32.mrf.mxu0
        %v2388 = vadd.f32 0.0, %v2387
        %2389 = vmatmul.f32.gmra.mxu0 %v2355
        %v2390 = vpop.f32.mrf.mxu0
        %v2391 = vadd.f32 0.0, %v2390
        %2392 = vmatmul.f32.gmra.mxu0 %v2357
        %v2393 = vpop.f32.mrf.mxu0
        %v2394 = vadd.f32 0.0, %v2393
        %2395 = vmatmul.f32.gmra.mxu0 %v2359
        %v2396 = vpop.f32.mrf.mxu0
        %v2397 = vadd.f32 0.0, %v2396
        %2398 = vmatmul.f32.gmra.mxu0 %v2361
        %v2399 = vpop.f32.mrf.mxu0
        %v2400 = vadd.f32 0.0, %v2399
        %2401 = vmatmul.f32.gmra.mxu0 %v2363
        %v2402 = vpop.f32.mrf.mxu0
        %v2403 = vadd.f32 0.0, %v2402
        %2404 = vmatmul.f32.gmra.mxu0 %v2365
        %v2405 = vpop.f32.mrf.mxu0
        %v2406 = vadd.f32 0.0, %v2405
        %2407 = vdwg.mxu0
        %v2408 = vld [vmem:[%s23] sm:$0xff]
        %v2409 = vld [vmem:[%s23 + $0x8] sm:$0xff]
        %v2410 = vld [vmem:[%s25] sm:$0x1]
        %v2412 = vperm.slane %v2410, 0
        %v2415 = vsel %vm1019, %v1761, 0
        %v2418 = vsel %vm1019, %v1764, 0
        %v2421 = vsel %vm1019, %v1767, 0
        %v2424 = vsel %vm1019, %v1770, 0
        %v2427 = vsel %vm1019, %v1773, 0
        %v2430 = vsel %vm1019, %v1776, 0
        %v2433 = vsel %vm1019, %v1779, 0
        %v2436 = vsel %vm1019, %v1782, 0
        %v2439 = vsel %vm1019, %v1969, 0
        %v2442 = vsel %vm1019, %v1972, 0
        %v2445 = vsel %vm1019, %v1975, 0
        %v2448 = vsel %vm1019, %v1978, 0
        %v2451 = vsel %vm1019, %v1981, 0
        %v2454 = vsel %vm1019, %v1984, 0
        %v2457 = vsel %vm1019, %v1987, 0
        %v2460 = vsel %vm1019, %v1990, 0
        %v2463 = vsel %vm1019, %v2177, 0
        %v2466 = vsel %vm1019, %v2180, 0
        %v2469 = vsel %vm1019, %v2183, 0
        %v2472 = vsel %vm1019, %v2186, 0
        %v2475 = vsel %vm1019, %v2189, 0
        %v2478 = vsel %vm1019, %v2192, 0
        %v2481 = vsel %vm1019, %v2195, 0
        %v2484 = vsel %vm1019, %v2198, 0
        %v2487 = vsel %vm1019, %v2385, 0
        %v2490 = vsel %vm1019, %v2388, 0
        %v2493 = vsel %vm1019, %v2391, 0
        %v2496 = vsel %vm1019, %v2394, 0
        %v2499 = vsel %vm1019, %v2397, 0
        %v2502 = vsel %vm1019, %v2400, 0
        %v2505 = vsel %vm1019, %v2403, 0
        %v2508 = vsel %vm1019, %v2406, 0
        %2510 = vmatpush.msra.mxu0 0.0
        %2511 = vmatpush.msra.mxu0 0.0
        %2512 = vmatpush.msra.mxu0 0.0
        %2513 = vmatpush.msra.mxu0 0.0
        %2514 = vmatpush.msra.mxu0 0.0
        %2515 = vmatpush.msra.mxu0 0.0
        %2516 = vmatpush.msra.mxu0 0.0
        %2517 = vmatpush.msra.mxu0 0.0
        %2518 = vmatpush.msra.mxu0 0.0
        %2519 = vmatpush.msra.mxu0 0.0
        %2520 = vmatpush.msra.mxu0 0.0
        %2521 = vmatpush.msra.mxu0 0.0
        %2522 = vmatpush.msra.mxu0 0.0
        %2523 = vmatpush.msra.mxu0 0.0
        %2524 = vmatpush.msra.mxu0 %v2409
        %2525 = vmatpush.msra.mxu0 %v2408
        %2526 = vmatmul.f32.gmra.mxu0 %v2415
        %v2527 = vpop.f32.mrf.mxu0
        %v2528 = vadd.f32 %v2412, %v2527
        %2529 = vmatmul.f32.gmra.mxu0 %v2418
        %v2530 = vpop.f32.mrf.mxu0
        %v2531 = vadd.f32 %v2412, %v2530
        %2532 = vmatmul.f32.gmra.mxu0 %v2421
        %v2533 = vpop.f32.mrf.mxu0
        %v2534 = vadd.f32 %v2412, %v2533
        %2535 = vmatmul.f32.gmra.mxu0 %v2424
        %v2536 = vpop.f32.mrf.mxu0
        %v2537 = vadd.f32 %v2412, %v2536
        %2538 = vmatmul.f32.gmra.mxu0 %v2427
        %v2539 = vpop.f32.mrf.mxu0
        %v2540 = vadd.f32 %v2412, %v2539
        %2541 = vmatmul.f32.gmra.mxu0 %v2430
        %v2542 = vpop.f32.mrf.mxu0
        %v2543 = vadd.f32 %v2412, %v2542
        %2544 = vmatmul.f32.gmra.mxu0 %v2433
        %v2545 = vpop.f32.mrf.mxu0
        %v2546 = vadd.f32 %v2412, %v2545
        %2547 = vmatmul.f32.gmra.mxu0 %v2436
        %v2548 = vpop.f32.mrf.mxu0
        %v2549 = vadd.f32 %v2412, %v2548
        %2550 = vmatmul.f32.gmra.mxu0 %v2439
        %v2551 = vpop.f32.mrf.mxu0
        %v2552 = vadd.f32 %v2412, %v2551
        %2553 = vmatmul.f32.gmra.mxu0 %v2442
        %v2554 = vpop.f32.mrf.mxu0
        %v2555 = vadd.f32 %v2412, %v2554
        %2556 = vmatmul.f32.gmra.mxu0 %v2445
        %v2557 = vpop.f32.mrf.mxu0
        %v2558 = vadd.f32 %v2412, %v2557
        %2559 = vmatmul.f32.gmra.mxu0 %v2448
        %v2560 = vpop.f32.mrf.mxu0
        %v2561 = vadd.f32 %v2412, %v2560
        %2562 = vmatmul.f32.gmra.mxu0 %v2451
        %v2563 = vpop.f32.mrf.mxu0
        %v2564 = vadd.f32 %v2412, %v2563
        %2565 = vmatmul.f32.gmra.mxu0 %v2454
        %v2566 = vpop.f32.mrf.mxu0
        %v2567 = vadd.f32 %v2412, %v2566
        %2568 = vmatmul.f32.gmra.mxu0 %v2457
        %v2569 = vpop.f32.mrf.mxu0
        %v2570 = vadd.f32 %v2412, %v2569
        %2571 = vmatmul.f32.gmra.mxu0 %v2460
        %v2572 = vpop.f32.mrf.mxu0
        %v2573 = vadd.f32 %v2412, %v2572
        %2574 = vmatmul.f32.gmra.mxu0 %v2463
        %v2575 = vpop.f32.mrf.mxu0
        %v2576 = vadd.f32 %v2412, %v2575
        %2577 = vmatmul.f32.gmra.mxu0 %v2466
        %v2578 = vpop.f32.mrf.mxu0
        %v2579 = vadd.f32 %v2412, %v2578
        %2580 = vmatmul.f32.gmra.mxu0 %v2469
        %v2581 = vpop.f32.mrf.mxu0
        %v2582 = vadd.f32 %v2412, %v2581
        %2583 = vmatmul.f32.gmra.mxu0 %v2472
        %v2584 = vpop.f32.mrf.mxu0
        %v2585 = vadd.f32 %v2412, %v2584
        %2586 = vmatmul.f32.gmra.mxu0 %v2475
        %v2587 = vpop.f32.mrf.mxu0
        %v2588 = vadd.f32 %v2412, %v2587
        %2589 = vmatmul.f32.gmra.mxu0 %v2478
        %v2590 = vpop.f32.mrf.mxu0
        %v2591 = vadd.f32 %v2412, %v2590
        %2592 = vmatmul.f32.gmra.mxu0 %v2481
        %v2593 = vpop.f32.mrf.mxu0
        %v2594 = vadd.f32 %v2412, %v2593
        %2595 = vmatmul.f32.gmra.mxu0 %v2484
        %v2596 = vpop.f32.mrf.mxu0
        %v2597 = vadd.f32 %v2412, %v2596
        %2598 = vmatmul.f32.gmra.mxu0 %v2487
        %v2599 = vpop.f32.mrf.mxu0
        %v2600 = vadd.f32 %v2412, %v2599
        %2601 = vmatmul.f32.gmra.mxu0 %v2490
        %v2602 = vpop.f32.mrf.mxu0
        %v2603 = vadd.f32 %v2412, %v2602
        %2604 = vmatmul.f32.gmra.mxu0 %v2493
        %v2605 = vpop.f32.mrf.mxu0
        %v2606 = vadd.f32 %v2412, %v2605
        %2607 = vmatmul.f32.gmra.mxu0 %v2496
        %v2608 = vpop.f32.mrf.mxu0
        %v2609 = vadd.f32 %v2412, %v2608
        %2610 = vmatmul.f32.gmra.mxu0 %v2499
        %v2611 = vpop.f32.mrf.mxu0
        %v2612 = vadd.f32 %v2412, %v2611
        %2613 = vmatmul.f32.gmra.mxu0 %v2502
        %v2614 = vpop.f32.mrf.mxu0
        %v2615 = vadd.f32 %v2412, %v2614
        %2616 = vmatmul.f32.gmra.mxu0 %v2505
        %v2617 = vpop.f32.mrf.mxu0
        %v2618 = vadd.f32 %v2412, %v2617
        %2619 = vmatmul.f32.gmra.mxu0 %v2508
        %v2620 = vpop.f32.mrf.mxu0
        %v2621 = vadd.f32 %v2412, %v2620
        %2622 = vdwg.mxu0
        %v2623 = vsel %vm1019, %v2528, 0.0
        %v2624 = vsel %vm1019, %v2531, 0.0
        %v2625 = vadd.f32 %v2623, %v2624
        %v2626 = vrot.slane %v2625, 4
        %v2627 = vadd.f32 %v2625, %v2626
        %v2628 = vrot.slane %v2627, 2
        %v2629 = vadd.f32 %v2627, %v2628
        %v2630 = vrot.slane %v2629, 1
        %v2631 = vadd.f32 %v2629, %v2630
        %v2632 = vsel %vm1019, %v2534, 0.0
        %v2633 = vsel %vm1019, %v2537, 0.0
        %v2634 = vadd.f32 %v2632, %v2633
        %v2635 = vrot.slane %v2634, 4
        %v2636 = vadd.f32 %v2634, %v2635
        %v2637 = vrot.slane %v2636, 2
        %v2638 = vadd.f32 %v2636, %v2637
        %v2639 = vrot.slane %v2638, 1
        %v2640 = vadd.f32 %v2638, %v2639
        %v2641 = vsel %vm1019, %v2540, 0.0
        %v2642 = vsel %vm1019, %v2543, 0.0
        %v2643 = vadd.f32 %v2641, %v2642
        %v2644 = vrot.slane %v2643, 4
        %v2645 = vadd.f32 %v2643, %v2644
        %v2646 = vrot.slane %v2645, 2
        %v2647 = vadd.f32 %v2645, %v2646
        %v2648 = vrot.slane %v2647, 1
        %v2649 = vadd.f32 %v2647, %v2648
        %v2650 = vsel %vm1019, %v2546, 0.0
        %v2651 = vsel %vm1019, %v2549, 0.0
        %v2652 = vadd.f32 %v2650, %v2651
        %v2653 = vrot.slane %v2652, 4
        %v2654 = vadd.f32 %v2652, %v2653
        %v2655 = vrot.slane %v2654, 2
        %v2656 = vadd.f32 %v2654, %v2655
        %v2657 = vrot.slane %v2656, 1
        %v2658 = vadd.f32 %v2656, %v2657
        %v2659 = vsel %vm1019, %v2552, 0.0
        %v2660 = vsel %vm1019, %v2555, 0.0
        %v2661 = vadd.f32 %v2659, %v2660
        %v2662 = vrot.slane %v2661, 4
        %v2663 = vadd.f32 %v2661, %v2662
        %v2664 = vrot.slane %v2663, 2
        %v2665 = vadd.f32 %v2663, %v2664
        %v2666 = vrot.slane %v2665, 1
        %v2667 = vadd.f32 %v2665, %v2666
        %v2668 = vsel %vm1019, %v2558, 0.0
        %v2669 = vsel %vm1019, %v2561, 0.0
        %v2670 = vadd.f32 %v2668, %v2669
        %v2671 = vrot.slane %v2670, 4
        %v2672 = vadd.f32 %v2670, %v2671
        %v2673 = vrot.slane %v2672, 2
        %v2674 = vadd.f32 %v2672, %v2673
        %v2675 = vrot.slane %v2674, 1
        %v2676 = vadd.f32 %v2674, %v2675
        %v2677 = vsel %vm1019, %v2564, 0.0
        %v2678 = vsel %vm1019, %v2567, 0.0
        %v2679 = vadd.f32 %v2677, %v2678
        %v2680 = vrot.slane %v2679, 4
        %v2681 = vadd.f32 %v2679, %v2680
        %v2682 = vrot.slane %v2681, 2
        %v2683 = vadd.f32 %v2681, %v2682
        %v2684 = vrot.slane %v2683, 1
        %v2685 = vadd.f32 %v2683, %v2684
        %v2686 = vsel %vm1019, %v2570, 0.0
        %v2687 = vsel %vm1019, %v2573, 0.0
        %v2688 = vadd.f32 %v2686, %v2687
        %v2689 = vrot.slane %v2688, 4
        %v2690 = vadd.f32 %v2688, %v2689
        %v2691 = vrot.slane %v2690, 2
        %v2692 = vadd.f32 %v2690, %v2691
        %v2693 = vrot.slane %v2692, 1
        %v2694 = vadd.f32 %v2692, %v2693
        %v2695 = vsel %vm1019, %v2576, 0.0
        %v2696 = vsel %vm1019, %v2579, 0.0
        %v2697 = vadd.f32 %v2695, %v2696
        %v2698 = vrot.slane %v2697, 4
        %v2699 = vadd.f32 %v2697, %v2698
        %v2700 = vrot.slane %v2699, 2
        %v2701 = vadd.f32 %v2699, %v2700
        %v2702 = vrot.slane %v2701, 1
        %v2703 = vadd.f32 %v2701, %v2702
        %v2704 = vsel %vm1019, %v2582, 0.0
        %v2705 = vsel %vm1019, %v2585, 0.0
        %v2706 = vadd.f32 %v2704, %v2705
        %v2707 = vrot.slane %v2706, 4
        %v2708 = vadd.f32 %v2706, %v2707
        %v2709 = vrot.slane %v2708, 2
        %v2710 = vadd.f32 %v2708, %v2709
        %v2711 = vrot.slane %v2710, 1
        %v2712 = vadd.f32 %v2710, %v2711
        %v2713 = vsel %vm1019, %v2588, 0.0
        %v2714 = vsel %vm1019, %v2591, 0.0
        %v2715 = vadd.f32 %v2713, %v2714
        %v2716 = vrot.slane %v2715, 4
        %v2717 = vadd.f32 %v2715, %v2716
        %v2718 = vrot.slane %v2717, 2
        %v2719 = vadd.f32 %v2717, %v2718
        %v2720 = vrot.slane %v2719, 1
        %v2721 = vadd.f32 %v2719, %v2720
        %v2722 = vsel %vm1019, %v2594, 0.0
        %v2723 = vsel %vm1019, %v2597, 0.0
        %v2724 = vadd.f32 %v2722, %v2723
        %v2725 = vrot.slane %v2724, 4
        %v2726 = vadd.f32 %v2724, %v2725
        %v2727 = vrot.slane %v2726, 2
        %v2728 = vadd.f32 %v2726, %v2727
        %v2729 = vrot.slane %v2728, 1
        %v2730 = vadd.f32 %v2728, %v2729
        %v2731 = vsel %vm1019, %v2600, 0.0
        %v2732 = vsel %vm1019, %v2603, 0.0
        %v2733 = vadd.f32 %v2731, %v2732
        %v2734 = vrot.slane %v2733, 4
        %v2735 = vadd.f32 %v2733, %v2734
        %v2736 = vrot.slane %v2735, 2
        %v2737 = vadd.f32 %v2735, %v2736
        %v2738 = vrot.slane %v2737, 1
        %v2739 = vadd.f32 %v2737, %v2738
        %v2740 = vsel %vm1019, %v2606, 0.0
        %v2741 = vsel %vm1019, %v2609, 0.0
        %v2742 = vadd.f32 %v2740, %v2741
        %v2743 = vrot.slane %v2742, 4
        %v2744 = vadd.f32 %v2742, %v2743
        %v2745 = vrot.slane %v2744, 2
        %v2746 = vadd.f32 %v2744, %v2745
        %v2747 = vrot.slane %v2746, 1
        %v2748 = vadd.f32 %v2746, %v2747
        %v2749 = vsel %vm1019, %v2612, 0.0
        %v2750 = vsel %vm1019, %v2615, 0.0
        %v2751 = vadd.f32 %v2749, %v2750
        %v2752 = vrot.slane %v2751, 4
        %v2753 = vadd.f32 %v2751, %v2752
        %v2754 = vrot.slane %v2753, 2
        %v2755 = vadd.f32 %v2753, %v2754
        %v2756 = vrot.slane %v2755, 1
        %v2757 = vadd.f32 %v2755, %v2756
        %v2758 = vsel %vm1019, %v2618, 0.0
        %v2759 = vsel %vm1019, %v2621, 0.0
        %v2760 = vadd.f32 %v2758, %v2759
        %v2761 = vrot.slane %v2760, 4
        %v2762 = vadd.f32 %v2760, %v2761
        %v2763 = vrot.slane %v2762, 2
        %v2764 = vadd.f32 %v2762, %v2763
        %v2765 = vrot.slane %v2764, 1
        %v2766 = vadd.f32 %v2764, %v2765
        %v2767 = vmul.f32 %v2631, %v1113
        %v2768 = vmul.f32 %v2640, %v1113
        %v2769 = vmul.f32 %v2649, %v1113
        %v2770 = vmul.f32 %v2658, %v1113
        %v2771 = vmul.f32 %v2667, %v1113
        %v2772 = vmul.f32 %v2676, %v1113
        %v2773 = vmul.f32 %v2685, %v1113
        %v2774 = vmul.f32 %v2694, %v1113
        %v2775 = vmul.f32 %v2703, %v1113
        %v2776 = vmul.f32 %v2712, %v1113
        %v2777 = vmul.f32 %v2721, %v1113
        %v2778 = vmul.f32 %v2730, %v1113
        %v2779 = vmul.f32 %v2739, %v1113
        %v2780 = vmul.f32 %v2748, %v1113
        %v2781 = vmul.f32 %v2757, %v1113
        %v2782 = vmul.f32 %v2766, %v1113
        %v2783 = vld [vmem:[%s27] sm:$0xff]
        %v2784 = vld [vmem:[%s27 + $0x8] sm:$0xff]
        %v2787 = vrot.slane %v2783, 1
        %v2788 = vrot.slane %v2783, 2
        %v2789 = vrot.slane %v2783, 3
        %v2790 = vrot.slane %v2783, 4
        %v2791 = vrot.slane %v2783, 5
        %v2792 = vrot.slane %v2783, 6
        %v2793 = vrot.slane %v2783, 7
        %v2794 = vrot.slane %v2784, 1
        %v2795 = vrot.slane %v2784, 2
        %v2796 = vrot.slane %v2784, 3
        %v2797 = vrot.slane %v2784, 4
        %v2798 = vrot.slane %v2784, 5
        %v2799 = vrot.slane %v2784, 6
        %v2800 = vrot.slane %v2784, 7
        %v2817 = vmul.f32 %v2767, %v2783
        %v2818 = vmul.f32 %v2768, %v2787
        %v2819 = vmul.f32 %v2769, %v2788
        %v2820 = vmul.f32 %v2770, %v2789
        %v2821 = vmul.f32 %v2771, %v2790
        %v2822 = vmul.f32 %v2772, %v2791
        %v2823 = vmul.f32 %v2773, %v2792
        %v2824 = vmul.f32 %v2774, %v2793
        %v2825 = vmul.f32 %v2775, %v2784
        %v2826 = vmul.f32 %v2776, %v2794
        %v2827 = vmul.f32 %v2777, %v2795
        %v2828 = vmul.f32 %v2778, %v2796
        %v2829 = vmul.f32 %v2779, %v2797
        %v2830 = vmul.f32 %v2780, %v2798
        %v2831 = vmul.f32 %v2781, %v2799
        %v2832 = vmul.f32 %v2782, %v2800
        %v2833 = vld [vmem:[%s29] sm:$0xff]
        %v2834 = vld [vmem:[%s29 + $0x8] sm:$0xff]
        %v2837 = vrot.slane %v2833, 1
        %v2838 = vrot.slane %v2833, 2
        %v2839 = vrot.slane %v2833, 3
        %v2840 = vrot.slane %v2833, 4
        %v2841 = vrot.slane %v2833, 5
        %v2842 = vrot.slane %v2833, 6
        %v2843 = vrot.slane %v2833, 7
        %v2844 = vrot.slane %v2834, 1
        %v2845 = vrot.slane %v2834, 2
        %v2846 = vrot.slane %v2834, 3
        %v2847 = vrot.slane %v2834, 4
        %v2848 = vrot.slane %v2834, 5
        %v2849 = vrot.slane %v2834, 6
        %v2850 = vrot.slane %v2834, 7
        %v2867 = vadd.f32 %v2817, %v2833
        %v2868 = vadd.f32 %v2818, %v2837
        %v2869 = vadd.f32 %v2819, %v2838
        %v2870 = vadd.f32 %v2820, %v2839
        %v2871 = vadd.f32 %v2821, %v2840
        %v2872 = vadd.f32 %v2822, %v2841
        %v2873 = vadd.f32 %v2823, %v2842
        %v2874 = vadd.f32 %v2824, %v2843
        %v2875 = vadd.f32 %v2825, %v2834
        %v2876 = vadd.f32 %v2826, %v2844
        %v2877 = vadd.f32 %v2827, %v2845
        %v2878 = vadd.f32 %v2828, %v2846
        %v2879 = vadd.f32 %v2829, %v2847
        %v2880 = vadd.f32 %v2830, %v2848
        %v2881 = vadd.f32 %v2831, %v2849
        %v2882 = vadd.f32 %v2832, %v2850
        %v2883 = vld [vmem:[%s31] sm:$0xff]
        %v2884 = vld [vmem:[%s31 + $0x8] sm:$0xff]
        %vm2889 = vcmask 1041409
        %v2890 = vsel %vm2889, %v1115, %v1114
        %vm2891 = vcmask 1042434
        %v2892 = vsel %vm2891, %v1116, %v2890
        %vm2893 = vcmask 1043459
        %v2894 = vsel %vm2893, %v1117, %v2892
        %v2895 = vsel %vm1019, %v2894, 0
        %2897 = vmatpush.msra.mxu0 0.0
        %2898 = vmatpush.msra.mxu0 0.0
        %2899 = vmatpush.msra.mxu0 0.0
        %2900 = vmatpush.msra.mxu0 0.0
        %2901 = vmatpush.msra.mxu0 0.0
        %2902 = vmatpush.msra.mxu0 0.0
        %2903 = vmatpush.msra.mxu0 0.0
        %2904 = vmatpush.msra.mxu0 0.0
        %2905 = vmatpush.msra.mxu0 0.0
        %2906 = vmatpush.msra.mxu0 0.0
        %2907 = vmatpush.msra.mxu0 0.0
        %2908 = vmatpush.msra.mxu0 0.0
        %2909 = vmatpush.msra.mxu0 0.0
        %2910 = vmatpush.msra.mxu0 0.0
        %2911 = vmatpush.msra.mxu0 %v2884
        %2912 = vmatpush.msra.mxu0 %v2883
        %2913 = vmatmul.f32.gmra.mxu0 %v2895
        %v2914 = vpop.f32.mrf.mxu0
        %v2915 = vadd.f32 0.0, %v2914
        %2916 = vdwg.mxu0
        %v2917 = vld [vmem:[%s33] sm:$0xff]
        %v2918 = vld [vmem:[%s33 + $0x8] sm:$0xff]
        %v2935 = vrot.slane %v2868, 7
        %v2936 = vsel %vm2889, %v2935, %v2867
        %v2937 = vrot.slane %v2869, 6
        %v2938 = vsel %vm2891, %v2937, %v2936
        %v2939 = vrot.slane %v2870, 5
        %v2940 = vsel %vm2893, %v2939, %v2938
        %v2941 = vrot.slane %v2871, 4
        %vm2942 = vcmask 1044484
        %v2943 = vsel %vm2942, %v2941, %v2940
        %v2944 = vrot.slane %v2872, 3
        %vm2945 = vcmask 1045509
        %v2946 = vsel %vm2945, %v2944, %v2943
        %v2947 = vrot.slane %v2873, 2
        %vm2948 = vcmask 1046534
        %v2949 = vsel %vm2948, %v2947, %v2946
        %v2950 = vrot.slane %v2874, 1
        %vm2951 = vcmask 1047559
        %v2952 = vsel %vm2951, %v2950, %v2949
        %v2953 = vrot.slane %v2876, 7
        %v2954 = vsel %vm2889, %v2953, %v2875
        %v2955 = vrot.slane %v2877, 6
        %v2956 = vsel %vm2891, %v2955, %v2954
        %v2957 = vrot.slane %v2878, 5
        %v2958 = vsel %vm2893, %v2957, %v2956
        %v2959 = vrot.slane %v2879, 4
        %v2960 = vsel %vm2942, %v2959, %v2958
        %v2961 = vrot.slane %v2880, 3
        %v2962 = vsel %vm2945, %v2961, %v2960
        %v2963 = vrot.slane %v2881, 2
        %v2964 = vsel %vm2948, %v2963, %v2962
        %v2965 = vrot.slane %v2882, 1
        %v2966 = vsel %vm2951, %v2965, %v2964
        %v2967 = vsel %vm1019, %v2952, 0
        %v2969 = vsel %vm1019, %v2966, 0
        %2971 = vmatpush.msra.mxu0 0.0
        %2972 = vmatpush.msra.mxu0 0.0
        %2973 = vmatpush.msra.mxu0 0.0
        %2974 = vmatpush.msra.mxu0 0.0
        %2975 = vmatpush.msra.mxu0 0.0
        %2976 = vmatpush.msra.mxu0 0.0
        %2977 = vmatpush.msra.mxu0 0.0
        %2978 = vmatpush.msra.mxu0 0.0
        %2979 = vmatpush.msra.mxu0 0.0
        %2980 = vmatpush.msra.mxu0 0.0
        %2981 = vmatpush.msra.mxu0 0.0
        %2982 = vmatpush.msra.mxu0 0.0
        %2983 = vmatpush.msra.mxu0 0.0
        %2984 = vmatpush.msra.mxu0 0.0
        %2985 = vmatpush.msra.mxu0 %v2918
        %2986 = vmatpush.msra.mxu0 %v2917
        %2987 = vmatmul.f32.gmra.mxu0 %v2967
        %v2988 = vpop.f32.mrf.mxu0
        %v2989 = vadd.f32 0.0, %v2988
        %2990 = vmatmul.f32.gmra.mxu0 %v2969
        %v2991 = vpop.f32.mrf.mxu0
        %v2992 = vadd.f32 0.0, %v2991
        %2993 = vdwg.mxu0
        %v2995 = vrot.slane %v2915, 1
        %v2996 = vrot.slane %v2915, 2
        %v2997 = vrot.slane %v2915, 3
        %v2998 = vperm.slane %v2915, 0
        %v2999 = vperm.slane %v2995, 0
        %v3000 = vperm.slane %v2996, 0
        %v3001 = vperm.slane %v2997, 0
        %3006 = vrot.lane.b32.xlu0 %v2915, 112
        %v3007 = vpop.permute.xlu0 %3006
        %v3009 = vadd.f32 %v2998, %v3007
        %v3010 = vadd.f32 %v2999, %v3007
        %v3011 = vadd.f32 %v3000, %v3007
        %v3012 = vadd.f32 %v3001, %v3007
        %v3015 = vrot.slane %v2989, 4
        %v3016 = vrot.slane %v2992, 4
        %v3019 = vadd.f32 %v3009, %v2989
        %v3020 = vadd.f32 %v3010, %v3015
        %v3021 = vadd.f32 %v3011, %v2992
        %v3022 = vadd.f32 %v3012, %v3016
        %v3023 = vld [vmem:[%s35] sm:$0xff]
        %v3024 = vld [vmem:[%s35 + $0x8] sm:$0xff]
        %v3027 = vrot.slane %v3023, 4
        %v3028 = vrot.slane %v3024, 4
        %v3031 = vmul.f32 %v3019, %v3023
        %v3032 = vmul.f32 %v3020, %v3027
        %v3033 = vmul.f32 %v3021, %v3024
        %v3034 = vmul.f32 %v3022, %v3028
        %v3035 = vld [vmem:[%s37] sm:$0xff]
        %v3036 = vld [vmem:[%s37 + $0x8] sm:$0xff]
        %v3039 = vrot.slane %v3035, 4
        %v3040 = vrot.slane %v3036, 4
        %v3043 = vadd.f32 %v3031, %v3035
        %v3044 = vadd.f32 %v3032, %v3039
        %v3045 = vadd.f32 %v3033, %v3036
        %v3046 = vadd.f32 %v3034, %v3040
        %v3047 = vmax.f32 %v3043, 0.0
        %v3048 = vmax.f32 %v3044, 0.0
        %v3049 = vmax.f32 %v3045, 0.0
        %v3050 = vmax.f32 %v3046, 0.0
        %3055 = vst [vmem:[#allocation1] ss:$2 sm:$0xff] %v3047
        %s3056 = scalar_lea.vmem [#allocation1], 1
        %3057 = vst [vmem:[%s3056] ss:$2 sm:$0xff] %v3048
        %s3058 = scalar_lea.vmem [#allocation1], 16
        %3059 = vst [vmem:[%s3058] ss:$2 sm:$0xff] %v3049
        %s3060 = scalar_lea.vmem [#allocation1], 17
        %3061 = vst [vmem:[%s3060] ss:$2 sm:$0xff] %v3050
        %v3062 = vld.sshfl [vmem:[#allocation1] sm:$0xff pattern:$0x75316420]
        %v3063 = vld.sshfl [vmem:[#allocation1 + $0x10] sm:$0xff pattern:$0x75316420]
        %v3064 = vrot.slane %v3062, 1
        %v3065 = vrot.slane %v3062, 2
        %v3066 = vrot.slane %v3062, 3
        %v3067 = vrot.slane %v3062, 4
        %v3068 = vrot.slane %v3062, 5
        %v3069 = vrot.slane %v3062, 6
        %v3070 = vrot.slane %v3062, 7
        %v3071 = vrot.slane %v3063, 1
        %v3072 = vrot.slane %v3063, 2
        %v3073 = vrot.slane %v3063, 3
        %v3074 = vrot.slane %v3063, 4
        %v3075 = vrot.slane %v3063, 5
        %v3076 = vrot.slane %v3063, 6
        %v3077 = vrot.slane %v3063, 7
        %v3094 = vadd.f32 %v2867, %v3062
        %v3095 = vadd.f32 %v2868, %v3064
        %v3096 = vadd.f32 %v2869, %v3065
        %v3097 = vadd.f32 %v2870, %v3066
        %v3098 = vadd.f32 %v2871, %v3067
        %v3099 = vadd.f32 %v2872, %v3068
        %v3100 = vadd.f32 %v2873, %v3069
        %v3101 = vadd.f32 %v2874, %v3070
        %v3102 = vadd.f32 %v2875, %v3063
        %v3103 = vadd.f32 %v2876, %v3071
        %v3104 = vadd.f32 %v2877, %v3072
        %v3105 = vadd.f32 %v2878, %v3073
        %v3106 = vadd.f32 %v2879, %v3074
        %v3107 = vadd.f32 %v2880, %v3075
        %v3108 = vadd.f32 %v2881, %v3076
        %v3109 = vadd.f32 %v2882, %v3077
        %v3110 = vxor.u32 %v3094, 2147483648
        %v3111 = vxor.u32 %v3095, 2147483648
        %v3112 = vxor.u32 %v3096, 2147483648
        %v3113 = vxor.u32 %v3097, 2147483648
        %v3114 = vxor.u32 %v3098, 2147483648
        %v3115 = vxor.u32 %v3099, 2147483648
        %v3116 = vxor.u32 %v3100, 2147483648
        %v3117 = vxor.u32 %v3101, 2147483648
        %v3118 = vxor.u32 %v3102, 2147483648
        %v3119 = vxor.u32 %v3103, 2147483648
        %v3120 = vxor.u32 %v3104, 2147483648
        %v3121 = vxor.u32 %v3105, 2147483648
        %v3122 = vxor.u32 %v3106, 2147483648
        %v3123 = vxor.u32 %v3107, 2147483648
        %v3124 = vxor.u32 %v3108, 2147483648
        %v3125 = vxor.u32 %v3109, 2147483648
        %v3126 = vmul.f32 %v3110, 1.442695
        %v3127 = vpow.pop %v3126
        %v3128 = vmul.f32 %v3111, 1.442695
        %v3129 = vpow.pop %v3128
        %v3130 = vmul.f32 %v3112, 1.442695
        %v3131 = vpow.pop %v3130
        %v3132 = vmul.f32 %v3113, 1.442695
        %v3133 = vpow.pop %v3132
        %v3134 = vmul.f32 %v3114, 1.442695
        %v3135 = vpow.pop %v3134
        %v3136 = vmul.f32 %v3115, 1.442695
        %v3137 = vpow.pop %v3136
        %v3138 = vmul.f32 %v3116, 1.442695
        %v3139 = vpow.pop %v3138
        %v3140 = vmul.f32 %v3117, 1.442695
        %v3141 = vpow.pop %v3140
        %v3142 = vmul.f32 %v3118, 1.442695
        %v3143 = vpow.pop %v3142
        %v3144 = vmul.f32 %v3119, 1.442695
        %v3145 = vpow.pop %v3144
        %v3146 = vmul.f32 %v3120, 1.442695
        %v3147 = vpow.pop %v3146
        %v3148 = vmul.f32 %v3121, 1.442695
        %v3149 = vpow.pop %v3148
        %v3150 = vmul.f32 %v3122, 1.442695
        %v3151 = vpow.pop %v3150
        %v3152 = vmul.f32 %v3123, 1.442695
        %v3153 = vpow.pop %v3152
        %v3154 = vmul.f32 %v3124, 1.442695
        %v3155 = vpow.pop %v3154
        %v3156 = vmul.f32 %v3125, 1.442695
        %v3157 = vpow.pop %v3156
        %v3158 = vadd.f32 %v3127, 1.0
        %v3159 = vadd.f32 %v3129, 1.0
        %v3160 = vadd.f32 %v3131, 1.0
        %v3161 = vadd.f32 %v3133, 1.0
        %v3162 = vadd.f32 %v3135, 1.0
        %v3163 = vadd.f32 %v3137, 1.0
        %v3164 = vadd.f32 %v3139, 1.0
        %v3165 = vadd.f32 %v3141, 1.0
        %v3166 = vadd.f32 %v3143, 1.0
        %v3167 = vadd.f32 %v3145, 1.0
        %v3168 = vadd.f32 %v3147, 1.0
        %v3169 = vadd.f32 %v3149, 1.0
        %v3170 = vadd.f32 %v3151, 1.0
        %v3171 = vadd.f32 %v3153, 1.0
        %v3172 = vadd.f32 %v3155, 1.0
        %v3173 = vadd.f32 %v3157, 1.0
        %v3174 = vrcp.pop %v3158
        %v3175 = vmul.f32 %v3158, %v3174
        %v3176 = vsub.f32 1.0, %v3175
        %v3177 = vmul.f32 %v3174, %v3176
        %v3178 = vadd.f32 %v3174, %v3177
        %vm3179 = vweird.f32 %v3158
        %vm3180 = vweird.f32 %v3174
        %vm3181 = vmor %vm3179, %vm3180
        %v3182 = vsel %vm3181, %v3174, %v3178
        %v3183 = vand.u32 2147483647, %v3158
        %vm3184 = vcmp.eq.f32.partialorder %v3183, 8.507059e+37
        %v3185 = vand.u32 %v3158, 2147483648
        %v3186 = vor.u32 1.1754944e-38, %v3185
        %v3187 = vsel %vm3184, %v3186, %v3182
        %v3188 = vmul.f32 1.0, %v3187
        %v3189 = vrcp.pop %v3159
        %v3190 = vmul.f32 %v3159, %v3189
        %v3191 = vsub.f32 1.0, %v3190
        %v3192 = vmul.f32 %v3189, %v3191
        %v3193 = vadd.f32 %v3189, %v3192
        %vm3194 = vweird.f32 %v3159
        %vm3195 = vweird.f32 %v3189
        %vm3196 = vmor %vm3194, %vm3195
        %v3197 = vsel %vm3196, %v3189, %v3193
        %v3198 = vand.u32 2147483647, %v3159
        %vm3199 = vcmp.eq.f32.partialorder %v3198, 8.507059e+37
        %v3200 = vand.u32 %v3159, 2147483648
        %v3201 = vor.u32 1.1754944e-38, %v3200
        %v3202 = vsel %vm3199, %v3201, %v3197
        %v3203 = vmul.f32 1.0, %v3202
        %v3204 = vrcp.pop %v3160
        %v3205 = vmul.f32 %v3160, %v3204
        %v3206 = vsub.f32 1.0, %v3205
        %v3207 = vmul.f32 %v3204, %v3206
        %v3208 = vadd.f32 %v3204, %v3207
        %vm3209 = vweird.f32 %v3160
        %vm3210 = vweird.f32 %v3204
        %vm3211 = vmor %vm3209, %vm3210
        %v3212 = vsel %vm3211, %v3204, %v3208
        %v3213 = vand.u32 2147483647, %v3160
        %vm3214 = vcmp.eq.f32.partialorder %v3213, 8.507059e+37
        %v3215 = vand.u32 %v3160, 2147483648
        %v3216 = vor.u32 1.1754944e-38, %v3215
        %v3217 = vsel %vm3214, %v3216, %v3212
        %v3218 = vmul.f32 1.0, %v3217
        %v3219 = vrcp.pop %v3161
        %v3220 = vmul.f32 %v3161, %v3219
        %v3221 = vsub.f32 1.0, %v3220
        %v3222 = vmul.f32 %v3219, %v3221
        %v3223 = vadd.f32 %v3219, %v3222
        %vm3224 = vweird.f32 %v3161
        %vm3225 = vweird.f32 %v3219
        %vm3226 = vmor %vm3224, %vm3225
        %v3227 = vsel %vm3226, %v3219, %v3223
        %v3228 = vand.u32 2147483647, %v3161
        %vm3229 = vcmp.eq.f32.partialorder %v3228, 8.507059e+37
        %v3230 = vand.u32 %v3161, 2147483648
        %v3231 = vor.u32 1.1754944e-38, %v3230
        %v3232 = vsel %vm3229, %v3231, %v3227
        %v3233 = vmul.f32 1.0, %v3232
        %v3234 = vrcp.pop %v3162
        %v3235 = vmul.f32 %v3162, %v3234
        %v3236 = vsub.f32 1.0, %v3235
        %v3237 = vmul.f32 %v3234, %v3236
        %v3238 = vadd.f32 %v3234, %v3237
        %vm3239 = vweird.f32 %v3162
        %vm3240 = vweird.f32 %v3234
        %vm3241 = vmor %vm3239, %vm3240
        %v3242 = vsel %vm3241, %v3234, %v3238
        %v3243 = vand.u32 2147483647, %v3162
        %vm3244 = vcmp.eq.f32.partialorder %v3243, 8.507059e+37
        %v3245 = vand.u32 %v3162, 2147483648
        %v3246 = vor.u32 1.1754944e-38, %v3245
        %v3247 = vsel %vm3244, %v3246, %v3242
        %v3248 = vmul.f32 1.0, %v3247
        %v3249 = vrcp.pop %v3163
        %v3250 = vmul.f32 %v3163, %v3249
        %v3251 = vsub.f32 1.0, %v3250
        %v3252 = vmul.f32 %v3249, %v3251
        %v3253 = vadd.f32 %v3249, %v3252
        %vm3254 = vweird.f32 %v3163
        %vm3255 = vweird.f32 %v3249
        %vm3256 = vmor %vm3254, %vm3255
        %v3257 = vsel %vm3256, %v3249, %v3253
        %v3258 = vand.u32 2147483647, %v3163
        %vm3259 = vcmp.eq.f32.partialorder %v3258, 8.507059e+37
        %v3260 = vand.u32 %v3163, 2147483648
        %v3261 = vor.u32 1.1754944e-38, %v3260
        %v3262 = vsel %vm3259, %v3261, %v3257
        %v3263 = vmul.f32 1.0, %v3262
        %v3264 = vrcp.pop %v3164
        %v3265 = vmul.f32 %v3164, %v3264
        %v3266 = vsub.f32 1.0, %v3265
        %v3267 = vmul.f32 %v3264, %v3266
        %v3268 = vadd.f32 %v3264, %v3267
        %vm3269 = vweird.f32 %v3164
        %vm3270 = vweird.f32 %v3264
        %vm3271 = vmor %vm3269, %vm3270
        %v3272 = vsel %vm3271, %v3264, %v3268
        %v3273 = vand.u32 2147483647, %v3164
        %vm3274 = vcmp.eq.f32.partialorder %v3273, 8.507059e+37
        %v3275 = vand.u32 %v3164, 2147483648
        %v3276 = vor.u32 1.1754944e-38, %v3275
        %v3277 = vsel %vm3274, %v3276, %v3272
        %v3278 = vmul.f32 1.0, %v3277
        %v3279 = vrcp.pop %v3165
        %v3280 = vmul.f32 %v3165, %v3279
        %v3281 = vsub.f32 1.0, %v3280
        %v3282 = vmul.f32 %v3279, %v3281
        %v3283 = vadd.f32 %v3279, %v3282
        %vm3284 = vweird.f32 %v3165
        %vm3285 = vweird.f32 %v3279
        %vm3286 = vmor %vm3284, %vm3285
        %v3287 = vsel %vm3286, %v3279, %v3283
        %v3288 = vand.u32 2147483647, %v3165
        %vm3289 = vcmp.eq.f32.partialorder %v3288, 8.507059e+37
        %v3290 = vand.u32 %v3165, 2147483648
        %v3291 = vor.u32 1.1754944e-38, %v3290
        %v3292 = vsel %vm3289, %v3291, %v3287
        %v3293 = vmul.f32 1.0, %v3292
        %v3294 = vrcp.pop %v3166
        %v3295 = vmul.f32 %v3166, %v3294
        %v3296 = vsub.f32 1.0, %v3295
        %v3297 = vmul.f32 %v3294, %v3296
        %v3298 = vadd.f32 %v3294, %v3297
        %vm3299 = vweird.f32 %v3166
        %vm3300 = vweird.f32 %v3294
        %vm3301 = vmor %vm3299, %vm3300
        %v3302 = vsel %vm3301, %v3294, %v3298
        %v3303 = vand.u32 2147483647, %v3166
        %vm3304 = vcmp.eq.f32.partialorder %v3303, 8.507059e+37
        %v3305 = vand.u32 %v3166, 2147483648
        %v3306 = vor.u32 1.1754944e-38, %v3305
        %v3307 = vsel %vm3304, %v3306, %v3302
        %v3308 = vmul.f32 1.0, %v3307
        %v3309 = vrcp.pop %v3167
        %v3310 = vmul.f32 %v3167, %v3309
        %v3311 = vsub.f32 1.0, %v3310
        %v3312 = vmul.f32 %v3309, %v3311
        %v3313 = vadd.f32 %v3309, %v3312
        %vm3314 = vweird.f32 %v3167
        %vm3315 = vweird.f32 %v3309
        %vm3316 = vmor %vm3314, %vm3315
        %v3317 = vsel %vm3316, %v3309, %v3313
        %v3318 = vand.u32 2147483647, %v3167
        %vm3319 = vcmp.eq.f32.partialorder %v3318, 8.507059e+37
        %v3320 = vand.u32 %v3167, 2147483648
        %v3321 = vor.u32 1.1754944e-38, %v3320
        %v3322 = vsel %vm3319, %v3321, %v3317
        %v3323 = vmul.f32 1.0, %v3322
        %v3324 = vrcp.pop %v3168
        %v3325 = vmul.f32 %v3168, %v3324
        %v3326 = vsub.f32 1.0, %v3325
        %v3327 = vmul.f32 %v3324, %v3326
        %v3328 = vadd.f32 %v3324, %v3327
        %vm3329 = vweird.f32 %v3168
        %vm3330 = vweird.f32 %v3324
        %vm3331 = vmor %vm3329, %vm3330
        %v3332 = vsel %vm3331, %v3324, %v3328
        %v3333 = vand.u32 2147483647, %v3168
        %vm3334 = vcmp.eq.f32.partialorder %v3333, 8.507059e+37
        %v3335 = vand.u32 %v3168, 2147483648
        %v3336 = vor.u32 1.1754944e-38, %v3335
        %v3337 = vsel %vm3334, %v3336, %v3332
        %v3338 = vmul.f32 1.0, %v3337
        %v3339 = vrcp.pop %v3169
        %v3340 = vmul.f32 %v3169, %v3339
        %v3341 = vsub.f32 1.0, %v3340
        %v3342 = vmul.f32 %v3339, %v3341
        %v3343 = vadd.f32 %v3339, %v3342
        %vm3344 = vweird.f32 %v3169
        %vm3345 = vweird.f32 %v3339
        %vm3346 = vmor %vm3344, %vm3345
        %v3347 = vsel %vm3346, %v3339, %v3343
        %v3348 = vand.u32 2147483647, %v3169
        %vm3349 = vcmp.eq.f32.partialorder %v3348, 8.507059e+37
        %v3350 = vand.u32 %v3169, 2147483648
        %v3351 = vor.u32 1.1754944e-38, %v3350
        %v3352 = vsel %vm3349, %v3351, %v3347
        %v3353 = vmul.f32 1.0, %v3352
        %v3354 = vrcp.pop %v3170
        %v3355 = vmul.f32 %v3170, %v3354
        %v3356 = vsub.f32 1.0, %v3355
        %v3357 = vmul.f32 %v3354, %v3356
        %v3358 = vadd.f32 %v3354, %v3357
        %vm3359 = vweird.f32 %v3170
        %vm3360 = vweird.f32 %v3354
        %vm3361 = vmor %vm3359, %vm3360
        %v3362 = vsel %vm3361, %v3354, %v3358
        %v3363 = vand.u32 2147483647, %v3170
        %vm3364 = vcmp.eq.f32.partialorder %v3363, 8.507059e+37
        %v3365 = vand.u32 %v3170, 2147483648
        %v3366 = vor.u32 1.1754944e-38, %v3365
        %v3367 = vsel %vm3364, %v3366, %v3362
        %v3368 = vmul.f32 1.0, %v3367
        %v3369 = vrcp.pop %v3171
        %v3370 = vmul.f32 %v3171, %v3369
        %v3371 = vsub.f32 1.0, %v3370
        %v3372 = vmul.f32 %v3369, %v3371
        %v3373 = vadd.f32 %v3369, %v3372
        %vm3374 = vweird.f32 %v3171
        %vm3375 = vweird.f32 %v3369
        %vm3376 = vmor %vm3374, %vm3375
        %v3377 = vsel %vm3376, %v3369, %v3373
        %v3378 = vand.u32 2147483647, %v3171
        %vm3379 = vcmp.eq.f32.partialorder %v3378, 8.507059e+37
        %v3380 = vand.u32 %v3171, 2147483648
        %v3381 = vor.u32 1.1754944e-38, %v3380
        %v3382 = vsel %vm3379, %v3381, %v3377
        %v3383 = vmul.f32 1.0, %v3382
        %v3384 = vrcp.pop %v3172
        %v3385 = vmul.f32 %v3172, %v3384
        %v3386 = vsub.f32 1.0, %v3385
        %v3387 = vmul.f32 %v3384, %v3386
        %v3388 = vadd.f32 %v3384, %v3387
        %vm3389 = vweird.f32 %v3172
        %vm3390 = vweird.f32 %v3384
        %vm3391 = vmor %vm3389, %vm3390
        %v3392 = vsel %vm3391, %v3384, %v3388
        %v3393 = vand.u32 2147483647, %v3172
        %vm3394 = vcmp.eq.f32.partialorder %v3393, 8.507059e+37
        %v3395 = vand.u32 %v3172, 2147483648
        %v3396 = vor.u32 1.1754944e-38, %v3395
        %v3397 = vsel %vm3394, %v3396, %v3392
        %v3398 = vmul.f32 1.0, %v3397
        %v3399 = vrcp.pop %v3173
        %v3400 = vmul.f32 %v3173, %v3399
        %v3401 = vsub.f32 1.0, %v3400
        %v3402 = vmul.f32 %v3399, %v3401
        %v3403 = vadd.f32 %v3399, %v3402
        %vm3404 = vweird.f32 %v3173
        %vm3405 = vweird.f32 %v3399
        %vm3406 = vmor %vm3404, %vm3405
        %v3407 = vsel %vm3406, %v3399, %v3403
        %v3408 = vand.u32 2147483647, %v3173
        %vm3409 = vcmp.eq.f32.partialorder %v3408, 8.507059e+37
        %v3410 = vand.u32 %v3173, 2147483648
        %v3411 = vor.u32 1.1754944e-38, %v3410
        %v3412 = vsel %vm3409, %v3411, %v3407
        %v3413 = vmul.f32 1.0, %v3412
        %v3414 = vmul.f32 %v3188, 1.442695
        %v3415 = vpow.pop %v3414
        %v3416 = vmul.f32 %v3203, 1.442695
        %v3417 = vpow.pop %v3416
        %v3418 = vmul.f32 %v3218, 1.442695
        %v3419 = vpow.pop %v3418
        %v3420 = vmul.f32 %v3233, 1.442695
        %v3421 = vpow.pop %v3420
        %v3422 = vmul.f32 %v3248, 1.442695
        %v3423 = vpow.pop %v3422
        %v3424 = vmul.f32 %v3263, 1.442695
        %v3425 = vpow.pop %v3424
        %v3426 = vmul.f32 %v3278, 1.442695
        %v3427 = vpow.pop %v3426
        %v3428 = vmul.f32 %v3293, 1.442695
        %v3429 = vpow.pop %v3428
        %v3430 = vmul.f32 %v3308, 1.442695
        %v3431 = vpow.pop %v3430
        %v3432 = vmul.f32 %v3323, 1.442695
        %v3433 = vpow.pop %v3432
        %v3434 = vmul.f32 %v3338, 1.442695
        %v3435 = vpow.pop %v3434
        %v3436 = vmul.f32 %v3353, 1.442695
        %v3437 = vpow.pop %v3436
        %v3438 = vmul.f32 %v3368, 1.442695
        %v3439 = vpow.pop %v3438
        %v3440 = vmul.f32 %v3383, 1.442695
        %v3441 = vpow.pop %v3440
        %v3442 = vmul.f32 %v3398, 1.442695
        %v3443 = vpow.pop %v3442
        %v3444 = vmul.f32 %v3413, 1.442695
        %v3445 = vpow.pop %v3444
        %v3462 = vrot.slane %v3417, 7
        %v3463 = vsel %vm2889, %v3462, %v3415
        %v3464 = vrot.slane %v3419, 6
        %v3465 = vsel %vm2891, %v3464, %v3463
        %v3466 = vrot.slane %v3421, 5
        %v3467 = vsel %vm2893, %v3466, %v3465
        %v3468 = vrot.slane %v3425, 7
        %v3469 = vsel %vm2889, %v3468, %v3423
        %v3470 = vrot.slane %v3427, 6
        %v3471 = vsel %vm2891, %v3470, %v3469
        %v3472 = vrot.slane %v3429, 5
        %v3473 = vsel %vm2893, %v3472, %v3471
        %v3474 = vrot.slane %v3433, 7
        %v3475 = vsel %vm2889, %v3474, %v3431
        %v3476 = vrot.slane %v3435, 6
        %v3477 = vsel %vm2891, %v3476, %v3475
        %v3478 = vrot.slane %v3437, 5
        %v3479 = vsel %vm2893, %v3478, %v3477
        %v3480 = vrot.slane %v3441, 7
        %v3481 = vsel %vm2889, %v3480, %v3439
        %v3482 = vrot.slane %v3443, 6
        %v3483 = vsel %vm2891, %v3482, %v3481
        %v3484 = vrot.slane %v3445, 5
        %v3485 = vsel %vm2893, %v3484, %v3483
        %vm3490 = vcmask 125952
        %v3491 = vsel %vm3490, %v3467, 0.0
        %v3492 = vrot.slane %v3491, 4
        %v3493 = vadd.f32 %v3491, %v3492
        %v3494 = vrot.slane %v3493, 2
        %v3495 = vadd.f32 %v3493, %v3494
        %v3496 = vrot.slane %v3495, 1
        %v3497 = vadd.f32 %v3495, %v3496
        %v3498 = vsel %vm3490, %v3473, 0.0
        %v3499 = vrot.slane %v3498, 4
        %v3500 = vadd.f32 %v3498, %v3499
        %v3501 = vrot.slane %v3500, 2
        %v3502 = vadd.f32 %v3500, %v3501
        %v3503 = vrot.slane %v3502, 1
        %v3504 = vadd.f32 %v3502, %v3503
        %v3505 = vsel %vm3490, %v3479, 0.0
        %v3506 = vrot.slane %v3505, 4
        %v3507 = vadd.f32 %v3505, %v3506
        %v3508 = vrot.slane %v3507, 2
        %v3509 = vadd.f32 %v3507, %v3508
        %v3510 = vrot.slane %v3509, 1
        %v3511 = vadd.f32 %v3509, %v3510
        %v3512 = vsel %vm3490, %v3485, 0.0
        %v3513 = vrot.slane %v3512, 4
        %v3514 = vadd.f32 %v3512, %v3513
        %v3515 = vrot.slane %v3514, 2
        %v3516 = vadd.f32 %v3514, %v3515
        %v3517 = vrot.slane %v3516, 1
        %v3518 = vadd.f32 %v3516, %v3517
        %v3519 = vrcp.pop %v3497
        %v3520 = vrcp.pop %v3504
        %v3521 = vrcp.pop %v3511
        %v3522 = vrcp.pop %v3518
        %v3523 = vperm.slane %v3519, 0
        %v3524 = vperm.slane %v3520, 0
        %v3525 = vperm.slane %v3521, 0
        %v3526 = vperm.slane %v3522, 0
        %v3527 = vmul.f32 %v3415, %v3523
        %v3528 = vmul.f32 %v3417, %v3523
        %v3529 = vmul.f32 %v3419, %v3523
        %v3530 = vmul.f32 %v3421, %v3523
        %v3531 = vmul.f32 %v3423, %v3524
        %v3532 = vmul.f32 %v3425, %v3524
        %v3533 = vmul.f32 %v3427, %v3524
        %v3534 = vmul.f32 %v3429, %v3524
        %v3535 = vmul.f32 %v3431, %v3525
        %v3536 = vmul.f32 %v3433, %v3525
        %v3537 = vmul.f32 %v3435, %v3525
        %v3538 = vmul.f32 %v3437, %v3525
        %v3539 = vmul.f32 %v3439, %v3526
        %v3540 = vmul.f32 %v3441, %v3526
        %v3541 = vmul.f32 %v3443, %v3526
        %v3542 = vmul.f32 %v3445, %v3526
        %3543 = vrot.lane.b32.xlu0 %v2915, 96
        %v3544 = vpop.permute.xlu0 %3543
        %3545 = vrot.lane.b32.xlu0 %v2995, 96
        %v3546 = vpop.permute.xlu0 %3545
        %3547 = vrot.lane.b32.xlu0 %v2996, 96
        %v3548 = vpop.permute.xlu0 %3547
        %3549 = vrot.lane.b32.xlu0 %v2997, 96
        %v3550 = vpop.permute.xlu0 %3549
        %v3555 = vmul.f32 %v3527, %v3544
        %v3556 = vmul.f32 %v3528, %v3546
        %v3557 = vmul.f32 %v3529, %v3548
        %v3558 = vmul.f32 %v3530, %v3550
        %v3559 = vmul.f32 %v3531, %v3544
        %v3560 = vmul.f32 %v3532, %v3546
        %v3561 = vmul.f32 %v3533, %v3548
        %v3562 = vmul.f32 %v3534, %v3550
        %v3563 = vmul.f32 %v3535, %v3544
        %v3564 = vmul.f32 %v3536, %v3546
        %v3565 = vmul.f32 %v3537, %v3548
        %v3566 = vmul.f32 %v3538, %v3550
        %v3567 = vmul.f32 %v3539, %v3544
        %v3568 = vmul.f32 %v3540, %v3546
        %v3569 = vmul.f32 %v3541, %v3548
        %v3570 = vmul.f32 %v3542, %v3550
        %v3587 = vrot.slane %v3556, 7
        %v3588 = vsel %vm2889, %v3587, %v3555
        %v3589 = vrot.slane %v3557, 6
        %v3590 = vsel %vm2891, %v3589, %v3588
        %v3591 = vrot.slane %v3558, 5
        %v3592 = vsel %vm2893, %v3591, %v3590
        %v3593 = vrot.slane %v3560, 7
        %v3594 = vsel %vm2889, %v3593, %v3559
        %v3595 = vrot.slane %v3561, 6
        %v3596 = vsel %vm2891, %v3595, %v3594
        %v3597 = vrot.slane %v3562, 5
        %v3598 = vsel %vm2893, %v3597, %v3596
        %v3599 = vrot.slane %v3564, 7
        %v3600 = vsel %vm2889, %v3599, %v3563
        %v3601 = vrot.slane %v3565, 6
        %v3602 = vsel %vm2891, %v3601, %v3600
        %v3603 = vrot.slane %v3566, 5
        %v3604 = vsel %vm2893, %v3603, %v3602
        %v3605 = vrot.slane %v3568, 7
        %v3606 = vsel %vm2889, %v3605, %v3567
        %v3607 = vrot.slane %v3569, 6
        %v3608 = vsel %vm2891, %v3607, %v3606
        %v3609 = vrot.slane %v3570, 5
        %v3610 = vsel %vm2893, %v3609, %v3608
        %v3615 = vsel %vm3490, %v3592, 0.0
        %v3616 = vrot.slane %v3615, 4
        %v3617 = vadd.f32 %v3615, %v3616
        %v3618 = vrot.slane %v3617, 2
        %v3619 = vadd.f32 %v3617, %v3618
        %v3620 = vrot.slane %v3619, 1
        %v3621 = vadd.f32 %v3619, %v3620
        %v3622 = vsel %vm3490, %v3598, 0.0
        %v3623 = vrot.slane %v3622, 4
        %v3624 = vadd.f32 %v3622, %v3623
        %v3625 = vrot.slane %v3624, 2
        %v3626 = vadd.f32 %v3624, %v3625
        %v3627 = vrot.slane %v3626, 1
        %v3628 = vadd.f32 %v3626, %v3627
        %v3629 = vsel %vm3490, %v3604, 0.0
        %v3630 = vrot.slane %v3629, 4
        %v3631 = vadd.f32 %v3629, %v3630
        %v3632 = vrot.slane %v3631, 2
        %v3633 = vadd.f32 %v3631, %v3632
        %v3634 = vrot.slane %v3633, 1
        %v3635 = vadd.f32 %v3633, %v3634
        %v3636 = vsel %vm3490, %v3610, 0.0
        %v3637 = vrot.slane %v3636, 4
        %v3638 = vadd.f32 %v3636, %v3637
        %v3639 = vrot.slane %v3638, 2
        %v3640 = vadd.f32 %v3638, %v3639
        %v3641 = vrot.slane %v3640, 1
        %v3642 = vadd.f32 %v3640, %v3641
        %v3643 = vmul.f32 %v3621, 0.25
        %v3644 = vmul.f32 %v3628, 0.25
        %v3645 = vmul.f32 %v3635, 0.25
        %v3646 = vmul.f32 %v3642, 0.25
        %v3651 = vrot.slane %v3644, 7
        %v3652 = vsel %vm2889, %v3651, %v3643
        %v3653 = vrot.slane %v3645, 6
        %v3654 = vsel %vm2891, %v3653, %v3652
        %v3655 = vrot.slane %v3646, 5
        %v3656 = vsel %vm2893, %v3655, %v3654
        %3657 = vrot.lane.b32.xlu0 %v3656, 48
        %v3658 = vpop.permute.xlu0 %3657
        %v3660 = vadd.f32 %v2915, %v3658
        %v3661 = vld [vmem:[%s39] sm:$0xf]
        %3663 = vrot.lane.b32.xlu0 %v3661, 48
        %v3664 = vpop.permute.xlu0 %3663
        %v3666 = vmul.f32 %v3660, %v3664
        %v3668 = vrot.slane %v3666, 1
        %v3669 = vrot.slane %v3666, 2
        %v3670 = vrot.slane %v3666, 3
        %3671 = vrot.lane.b32.xlu0 %v3666, 80
        %v3672 = vpop.permute.xlu0 %3671
        %3673 = vrot.lane.b32.xlu0 %v3668, 80
        %v3674 = vpop.permute.xlu0 %3673
        %3675 = vrot.lane.b32.xlu0 %v3669, 80
        %v3676 = vpop.permute.xlu0 %3675
        %3677 = vrot.lane.b32.xlu0 %v3670, 80
        %v3678 = vpop.permute.xlu0 %3677
        %v3683 = vadd.f32 %v1114, %v3672
        %v3684 = vadd.f32 %v1115, %v3674
        %v3685 = vadd.f32 %v1116, %v3676
        %v3686 = vadd.f32 %v1117, %v3678
        %v3687 = vld [vmem:[%s41] sm:$0xf]
        %v3689 = vrot.slane %v3687, 1
        %v3690 = vrot.slane %v3687, 2
        %v3691 = vrot.slane %v3687, 3
        %v3696 = vadd.f32 %v3683, %v3687
        %v3697 = vadd.f32 %v3684, %v3689
        %v3698 = vadd.f32 %v3685, %v3690
        %v3699 = vadd.f32 %v3686, %v3691
        %v3700 = vmax.f32 %v3696, 0.0
        %v3701 = vmax.f32 %v3697, 0.0
        %v3702 = vmax.f32 %v3698, 0.0
        %v3703 = vmax.f32 %v3699, 0.0
        %v3704 = vld [vmem:[%s43] sm:$0xff]
        %v3705 = vld [vmem:[%s43 + $0x8] sm:$0xff]
        %v3710 = vrot.slane %v3701, 7
        %v3711 = vsel %vm2889, %v3710, %v3700
        %v3712 = vrot.slane %v3702, 6
        %v3713 = vsel %vm2891, %v3712, %v3711
        %v3714 = vrot.slane %v3703, 5
        %v3715 = vsel %vm2893, %v3714, %v3713
        %v3716 = vsel %vm1019, %v3715, 0
        %3718 = vmatpush.msra.mxu0 0.0
        %3719 = vmatpush.msra.mxu0 0.0
        %3720 = vmatpush.msra.mxu0 0.0
        %3721 = vmatpush.msra.mxu0 0.0
        %3722 = vmatpush.msra.mxu0 0.0
        %3723 = vmatpush.msra.mxu0 0.0
        %3724 = vmatpush.msra.mxu0 0.0
        %3725 = vmatpush.msra.mxu0 0.0
        %3726 = vmatpush.msra.mxu0 0.0
        %3727 = vmatpush.msra.mxu0 0.0
        %3728 = vmatpush.msra.mxu0 0.0
        %3729 = vmatpush.msra.mxu0 0.0
        %3730 = vmatpush.msra.mxu0 0.0
        %3731 = vmatpush.msra.mxu0 0.0
        %3732 = vmatpush.msra.mxu0 %v3705
        %3733 = vmatpush.msra.mxu0 %v3704
        %3734 = vmatmul.f32.gmra.mxu0 %v3716
        %v3735 = vpop.f32.mrf.mxu0
        %v3736 = vadd.f32 0.0, %v3735
        %3737 = vdwg.mxu0
        %v3738 = vld [vmem:[%s45] sm:$0xff]
        %v3739 = vld [vmem:[%s45 + $0x8] sm:$0xff]
        %v3756 = vrot.slane %v3095, 7
        %v3757 = vsel %vm2889, %v3756, %v3094
        %v3758 = vrot.slane %v3096, 6
        %v3759 = vsel %vm2891, %v3758, %v3757
        %v3760 = vrot.slane %v3097, 5
        %v3761 = vsel %vm2893, %v3760, %v3759
        %v3762 = vrot.slane %v3098, 4
        %v3763 = vsel %vm2942, %v3762, %v3761
        %v3764 = vrot.slane %v3099, 3
        %v3765 = vsel %vm2945, %v3764, %v3763
        %v3766 = vrot.slane %v3100, 2
        %v3767 = vsel %vm2948, %v3766, %v3765
        %v3768 = vrot.slane %v3101, 1
        %v3769 = vsel %vm2951, %v3768, %v3767
        %v3770 = vrot.slane %v3103, 7
        %v3771 = vsel %vm2889, %v3770, %v3102
        %v3772 = vrot.slane %v3104, 6
        %v3773 = vsel %vm2891, %v3772, %v3771
        %v3774 = vrot.slane %v3105, 5
        %v3775 = vsel %vm2893, %v3774, %v3773
        %v3776 = vrot.slane %v3106, 4
        %v3777 = vsel %vm2942, %v3776, %v3775
        %v3778 = vrot.slane %v3107, 3
        %v3779 = vsel %vm2945, %v3778, %v3777
        %v3780 = vrot.slane %v3108, 2
        %v3781 = vsel %vm2948, %v3780, %v3779
        %v3782 = vrot.slane %v3109, 1
        %v3783 = vsel %vm2951, %v3782, %v3781
        %v3784 = vsel %vm1019, %v3769, 0
        %v3786 = vsel %vm1019, %v3783, 0
        %3788 = vmatpush.msra.mxu0 0.0
        %3789 = vmatpush.msra.mxu0 0.0
        %3790 = vmatpush.msra.mxu0 0.0
        %3791 = vmatpush.msra.mxu0 0.0
        %3792 = vmatpush.msra.mxu0 0.0
        %3793 = vmatpush.msra.mxu0 0.0
        %3794 = vmatpush.msra.mxu0 0.0
        %3795 = vmatpush.msra.mxu0 0.0
        %3796 = vmatpush.msra.mxu0 0.0
        %3797 = vmatpush.msra.mxu0 0.0
        %3798 = vmatpush.msra.mxu0 0.0
        %3799 = vmatpush.msra.mxu0 0.0
        %3800 = vmatpush.msra.mxu0 0.0
        %3801 = vmatpush.msra.mxu0 0.0
        %3802 = vmatpush.msra.mxu0 %v3739
        %3803 = vmatpush.msra.mxu0 %v3738
        %3804 = vmatmul.f32.gmra.mxu0 %v3784
        %v3805 = vpop.f32.mrf.mxu0
        %v3806 = vadd.f32 0.0, %v3805
        %3807 = vmatmul.f32.gmra.mxu0 %v3786
        %v3808 = vpop.f32.mrf.mxu0
        %v3809 = vadd.f32 0.0, %v3808
        %3810 = vdwg.mxu0
        %v3812 = vrot.slane %v3736, 1
        %v3813 = vrot.slane %v3736, 2
        %v3814 = vrot.slane %v3736, 3
        %v3815 = vperm.slane %v3736, 0
        %v3816 = vperm.slane %v3812, 0
        %v3817 = vperm.slane %v3813, 0
        %v3818 = vperm.slane %v3814, 0
        %3823 = vrot.lane.b32.xlu0 %v3736, 112
        %v3824 = vpop.permute.xlu0 %3823
        %v3826 = vadd.f32 %v3815, %v3824
        %v3827 = vadd.f32 %v3816, %v3824
        %v3828 = vadd.f32 %v3817, %v3824
        %v3829 = vadd.f32 %v3818, %v3824
        %v3832 = vrot.slane %v3806, 4
        %v3833 = vrot.slane %v3809, 4
        %v3836 = vadd.f32 %v3826, %v3806
        %v3837 = vadd.f32 %v3827, %v3832
        %v3838 = vadd.f32 %v3828, %v3809
        %v3839 = vadd.f32 %v3829, %v3833
        %v3840 = vld [vmem:[%s47] sm:$0xff]
        %v3841 = vld [vmem:[%s47 + $0x8] sm:$0xff]
        %v3844 = vrot.slane %v3840, 4
        %v3845 = vrot.slane %v3841, 4
        %v3848 = vmul.f32 %v3836, %v3840
        %v3849 = vmul.f32 %v3837, %v3844
        %v3850 = vmul.f32 %v3838, %v3841
        %v3851 = vmul.f32 %v3839, %v3845
        %v3852 = vld [vmem:[%s49] sm:$0xff]
        %v3853 = vld [vmem:[%s49 + $0x8] sm:$0xff]
        %v3856 = vrot.slane %v3852, 4
        %v3857 = vrot.slane %v3853, 4
        %v3860 = vadd.f32 %v3848, %v3852
        %v3861 = vadd.f32 %v3849, %v3856
        %v3862 = vadd.f32 %v3850, %v3853
        %v3863 = vadd.f32 %v3851, %v3857
        %v3864 = vmax.f32 %v3860, 0.0
        %v3865 = vmax.f32 %v3861, 0.0
        %v3866 = vmax.f32 %v3862, 0.0
        %v3867 = vmax.f32 %v3863, 0.0
        %3872 = vst [vmem:[#allocation1] ss:$2 sm:$0xff] %v3864
        %s3873 = scalar_lea.vmem [#allocation1], 1
        %3874 = vst [vmem:[%s3873] ss:$2 sm:$0xff] %v3865
        %s3875 = scalar_lea.vmem [#allocation1], 16
        %3876 = vst [vmem:[%s3875] ss:$2 sm:$0xff] %v3866
        %s3877 = scalar_lea.vmem [#allocation1], 17
        %3878 = vst [vmem:[%s3877] ss:$2 sm:$0xff] %v3867
        %v3879 = vld.sshfl [vmem:[#allocation1] sm:$0xff pattern:$0x75316420]
        %v3880 = vld.sshfl [vmem:[#allocation1 + $0x10] sm:$0xff pattern:$0x75316420]
        %v3881 = vrot.slane %v3879, 1
        %v3882 = vrot.slane %v3879, 2
        %v3883 = vrot.slane %v3879, 3
        %v3884 = vrot.slane %v3879, 4
        %v3885 = vrot.slane %v3879, 5
        %v3886 = vrot.slane %v3879, 6
        %v3887 = vrot.slane %v3879, 7
        %v3888 = vrot.slane %v3880, 1
        %v3889 = vrot.slane %v3880, 2
        %v3890 = vrot.slane %v3880, 3
        %v3891 = vrot.slane %v3880, 4
        %v3892 = vrot.slane %v3880, 5
        %v3893 = vrot.slane %v3880, 6
        %v3894 = vrot.slane %v3880, 7
        %v3911 = vadd.f32 %v3094, %v3879
        %v3912 = vadd.f32 %v3095, %v3881
        %v3913 = vadd.f32 %v3096, %v3882
        %v3914 = vadd.f32 %v3097, %v3883
        %v3915 = vadd.f32 %v3098, %v3884
        %v3916 = vadd.f32 %v3099, %v3885
        %v3917 = vadd.f32 %v3100, %v3886
        %v3918 = vadd.f32 %v3101, %v3887
        %v3919 = vadd.f32 %v3102, %v3880
        %v3920 = vadd.f32 %v3103, %v3888
        %v3921 = vadd.f32 %v3104, %v3889
        %v3922 = vadd.f32 %v3105, %v3890
        %v3923 = vadd.f32 %v3106, %v3891
        %v3924 = vadd.f32 %v3107, %v3892
        %v3925 = vadd.f32 %v3108, %v3893
        %v3926 = vadd.f32 %v3109, %v3894
        %v3927 = vxor.u32 %v3911, 2147483648
        %v3928 = vxor.u32 %v3912, 2147483648
        %v3929 = vxor.u32 %v3913, 2147483648
        %v3930 = vxor.u32 %v3914, 2147483648
        %v3931 = vxor.u32 %v3915, 2147483648
        %v3932 = vxor.u32 %v3916, 2147483648
        %v3933 = vxor.u32 %v3917, 2147483648
        %v3934 = vxor.u32 %v3918, 2147483648
        %v3935 = vxor.u32 %v3919, 2147483648
        %v3936 = vxor.u32 %v3920, 2147483648
        %v3937 = vxor.u32 %v3921, 2147483648
        %v3938 = vxor.u32 %v3922, 2147483648
        %v3939 = vxor.u32 %v3923, 2147483648
        %v3940 = vxor.u32 %v3924, 2147483648
        %v3941 = vxor.u32 %v3925, 2147483648
        %v3942 = vxor.u32 %v3926, 2147483648
        %v3943 = vmul.f32 %v3927, 1.442695
        %v3944 = vpow.pop %v3943
        %v3945 = vmul.f32 %v3928, 1.442695
        %v3946 = vpow.pop %v3945
        %v3947 = vmul.f32 %v3929, 1.442695
        %v3948 = vpow.pop %v3947
        %v3949 = vmul.f32 %v3930, 1.442695
        %v3950 = vpow.pop %v3949
        %v3951 = vmul.f32 %v3931, 1.442695
        %v3952 = vpow.pop %v3951
        %v3953 = vmul.f32 %v3932, 1.442695
        %v3954 = vpow.pop %v3953
        %v3955 = vmul.f32 %v3933, 1.442695
        %v3956 = vpow.pop %v3955
        %v3957 = vmul.f32 %v3934, 1.442695
        %v3958 = vpow.pop %v3957
        %v3959 = vmul.f32 %v3935, 1.442695
        %v3960 = vpow.pop %v3959
        %v3961 = vmul.f32 %v3936, 1.442695
        %v3962 = vpow.pop %v3961
        %v3963 = vmul.f32 %v3937, 1.442695
        %v3964 = vpow.pop %v3963
        %v3965 = vmul.f32 %v3938, 1.442695
        %v3966 = vpow.pop %v3965
        %v3967 = vmul.f32 %v3939, 1.442695
        %v3968 = vpow.pop %v3967
        %v3969 = vmul.f32 %v3940, 1.442695
        %v3970 = vpow.pop %v3969
        %v3971 = vmul.f32 %v3941, 1.442695
        %v3972 = vpow.pop %v3971
        %v3973 = vmul.f32 %v3942, 1.442695
        %v3974 = vpow.pop %v3973
        %v3975 = vadd.f32 %v3944, 1.0
        %v3976 = vadd.f32 %v3946, 1.0
        %v3977 = vadd.f32 %v3948, 1.0
        %v3978 = vadd.f32 %v3950, 1.0
        %v3979 = vadd.f32 %v3952, 1.0
        %v3980 = vadd.f32 %v3954, 1.0
        %v3981 = vadd.f32 %v3956, 1.0
        %v3982 = vadd.f32 %v3958, 1.0
        %v3983 = vadd.f32 %v3960, 1.0
        %v3984 = vadd.f32 %v3962, 1.0
        %v3985 = vadd.f32 %v3964, 1.0
        %v3986 = vadd.f32 %v3966, 1.0
        %v3987 = vadd.f32 %v3968, 1.0
        %v3988 = vadd.f32 %v3970, 1.0
        %v3989 = vadd.f32 %v3972, 1.0
        %v3990 = vadd.f32 %v3974, 1.0
        %v3991 = vrcp.pop %v3975
        %v3992 = vmul.f32 %v3975, %v3991
        %v3993 = vsub.f32 1.0, %v3992
        %v3994 = vmul.f32 %v3991, %v3993
        %v3995 = vadd.f32 %v3991, %v3994
        %vm3996 = vweird.f32 %v3975
        %vm3997 = vweird.f32 %v3991
        %vm3998 = vmor %vm3996, %vm3997
        %v3999 = vsel %vm3998, %v3991, %v3995
        %v4000 = vand.u32 2147483647, %v3975
        %vm4001 = vcmp.eq.f32.partialorder %v4000, 8.507059e+37
        %v4002 = vand.u32 %v3975, 2147483648
        %v4003 = vor.u32 1.1754944e-38, %v4002
        %v4004 = vsel %vm4001, %v4003, %v3999
        %v4005 = vmul.f32 1.0, %v4004
        %v4006 = vrcp.pop %v3976
        %v4007 = vmul.f32 %v3976, %v4006
        %v4008 = vsub.f32 1.0, %v4007
        %v4009 = vmul.f32 %v4006, %v4008
        %v4010 = vadd.f32 %v4006, %v4009
        %vm4011 = vweird.f32 %v3976
        %vm4012 = vweird.f32 %v4006
        %vm4013 = vmor %vm4011, %vm4012
        %v4014 = vsel %vm4013, %v4006, %v4010
        %v4015 = vand.u32 2147483647, %v3976
        %vm4016 = vcmp.eq.f32.partialorder %v4015, 8.507059e+37
        %v4017 = vand.u32 %v3976, 2147483648
        %v4018 = vor.u32 1.1754944e-38, %v4017
        %v4019 = vsel %vm4016, %v4018, %v4014
        %v4020 = vmul.f32 1.0, %v4019
        %v4021 = vrcp.pop %v3977
        %v4022 = vmul.f32 %v3977, %v4021
        %v4023 = vsub.f32 1.0, %v4022
        %v4024 = vmul.f32 %v4021, %v4023
        %v4025 = vadd.f32 %v4021, %v4024
        %vm4026 = vweird.f32 %v3977
        %vm4027 = vweird.f32 %v4021
        %vm4028 = vmor %vm4026, %vm4027
        %v4029 = vsel %vm4028, %v4021, %v4025
        %v4030 = vand.u32 2147483647, %v3977
        %vm4031 = vcmp.eq.f32.partialorder %v4030, 8.507059e+37
        %v4032 = vand.u32 %v3977, 2147483648
        %v4033 = vor.u32 1.1754944e-38, %v4032
        %v4034 = vsel %vm4031, %v4033, %v4029
        %v4035 = vmul.f32 1.0, %v4034
        %v4036 = vrcp.pop %v3978
        %v4037 = vmul.f32 %v3978, %v4036
        %v4038 = vsub.f32 1.0, %v4037
        %v4039 = vmul.f32 %v4036, %v4038
        %v4040 = vadd.f32 %v4036, %v4039
        %vm4041 = vweird.f32 %v3978
        %vm4042 = vweird.f32 %v4036
        %vm4043 = vmor %vm4041, %vm4042
        %v4044 = vsel %vm4043, %v4036, %v4040
        %v4045 = vand.u32 2147483647, %v3978
        %vm4046 = vcmp.eq.f32.partialorder %v4045, 8.507059e+37
        %v4047 = vand.u32 %v3978, 2147483648
        %v4048 = vor.u32 1.1754944e-38, %v4047
        %v4049 = vsel %vm4046, %v4048, %v4044
        %v4050 = vmul.f32 1.0, %v4049
        %v4051 = vrcp.pop %v3979
        %v4052 = vmul.f32 %v3979, %v4051
        %v4053 = vsub.f32 1.0, %v4052
        %v4054 = vmul.f32 %v4051, %v4053
        %v4055 = vadd.f32 %v4051, %v4054
        %vm4056 = vweird.f32 %v3979
        %vm4057 = vweird.f32 %v4051
        %vm4058 = vmor %vm4056, %vm4057
        %v4059 = vsel %vm4058, %v4051, %v4055
        %v4060 = vand.u32 2147483647, %v3979
        %vm4061 = vcmp.eq.f32.partialorder %v4060, 8.507059e+37
        %v4062 = vand.u32 %v3979, 2147483648
        %v4063 = vor.u32 1.1754944e-38, %v4062
        %v4064 = vsel %vm4061, %v4063, %v4059
        %v4065 = vmul.f32 1.0, %v4064
        %v4066 = vrcp.pop %v3980
        %v4067 = vmul.f32 %v3980, %v4066
        %v4068 = vsub.f32 1.0, %v4067
        %v4069 = vmul.f32 %v4066, %v4068
        %v4070 = vadd.f32 %v4066, %v4069
        %vm4071 = vweird.f32 %v3980
        %vm4072 = vweird.f32 %v4066
        %vm4073 = vmor %vm4071, %vm4072
        %v4074 = vsel %vm4073, %v4066, %v4070
        %v4075 = vand.u32 2147483647, %v3980
        %vm4076 = vcmp.eq.f32.partialorder %v4075, 8.507059e+37
        %v4077 = vand.u32 %v3980, 2147483648
        %v4078 = vor.u32 1.1754944e-38, %v4077
        %v4079 = vsel %vm4076, %v4078, %v4074
        %v4080 = vmul.f32 1.0, %v4079
        %v4081 = vrcp.pop %v3981
        %v4082 = vmul.f32 %v3981, %v4081
        %v4083 = vsub.f32 1.0, %v4082
        %v4084 = vmul.f32 %v4081, %v4083
        %v4085 = vadd.f32 %v4081, %v4084
        %vm4086 = vweird.f32 %v3981
        %vm4087 = vweird.f32 %v4081
        %vm4088 = vmor %vm4086, %vm4087
        %v4089 = vsel %vm4088, %v4081, %v4085
        %v4090 = vand.u32 2147483647, %v3981
        %vm4091 = vcmp.eq.f32.partialorder %v4090, 8.507059e+37
        %v4092 = vand.u32 %v3981, 2147483648
        %v4093 = vor.u32 1.1754944e-38, %v4092
        %v4094 = vsel %vm4091, %v4093, %v4089
        %v4095 = vmul.f32 1.0, %v4094
        %v4096 = vrcp.pop %v3982
        %v4097 = vmul.f32 %v3982, %v4096
        %v4098 = vsub.f32 1.0, %v4097
        %v4099 = vmul.f32 %v4096, %v4098
        %v4100 = vadd.f32 %v4096, %v4099
        %vm4101 = vweird.f32 %v3982
        %vm4102 = vweird.f32 %v4096
        %vm4103 = vmor %vm4101, %vm4102
        %v4104 = vsel %vm4103, %v4096, %v4100
        %v4105 = vand.u32 2147483647, %v3982
        %vm4106 = vcmp.eq.f32.partialorder %v4105, 8.507059e+37
        %v4107 = vand.u32 %v3982, 2147483648
        %v4108 = vor.u32 1.1754944e-38, %v4107
        %v4109 = vsel %vm4106, %v4108, %v4104
        %v4110 = vmul.f32 1.0, %v4109
        %v4111 = vrcp.pop %v3983
        %v4112 = vmul.f32 %v3983, %v4111
        %v4113 = vsub.f32 1.0, %v4112
        %v4114 = vmul.f32 %v4111, %v4113
        %v4115 = vadd.f32 %v4111, %v4114
        %vm4116 = vweird.f32 %v3983
        %vm4117 = vweird.f32 %v4111
        %vm4118 = vmor %vm4116, %vm4117
        %v4119 = vsel %vm4118, %v4111, %v4115
        %v4120 = vand.u32 2147483647, %v3983
        %vm4121 = vcmp.eq.f32.partialorder %v4120, 8.507059e+37
        %v4122 = vand.u32 %v3983, 2147483648
        %v4123 = vor.u32 1.1754944e-38, %v4122
        %v4124 = vsel %vm4121, %v4123, %v4119
        %v4125 = vmul.f32 1.0, %v4124
        %v4126 = vrcp.pop %v3984
        %v4127 = vmul.f32 %v3984, %v4126
        %v4128 = vsub.f32 1.0, %v4127
        %v4129 = vmul.f32 %v4126, %v4128
        %v4130 = vadd.f32 %v4126, %v4129
        %vm4131 = vweird.f32 %v3984
        %vm4132 = vweird.f32 %v4126
        %vm4133 = vmor %vm4131, %vm4132
        %v4134 = vsel %vm4133, %v4126, %v4130
        %v4135 = vand.u32 2147483647, %v3984
        %vm4136 = vcmp.eq.f32.partialorder %v4135, 8.507059e+37
        %v4137 = vand.u32 %v3984, 2147483648
        %v4138 = vor.u32 1.1754944e-38, %v4137
        %v4139 = vsel %vm4136, %v4138, %v4134
        %v4140 = vmul.f32 1.0, %v4139
        %v4141 = vrcp.pop %v3985
        %v4142 = vmul.f32 %v3985, %v4141
        %v4143 = vsub.f32 1.0, %v4142
        %v4144 = vmul.f32 %v4141, %v4143
        %v4145 = vadd.f32 %v4141, %v4144
        %vm4146 = vweird.f32 %v3985
        %vm4147 = vweird.f32 %v4141
        %vm4148 = vmor %vm4146, %vm4147
        %v4149 = vsel %vm4148, %v4141, %v4145
        %v4150 = vand.u32 2147483647, %v3985
        %vm4151 = vcmp.eq.f32.partialorder %v4150, 8.507059e+37
        %v4152 = vand.u32 %v3985, 2147483648
        %v4153 = vor.u32 1.1754944e-38, %v4152
        %v4154 = vsel %vm4151, %v4153, %v4149
        %v4155 = vmul.f32 1.0, %v4154
        %v4156 = vrcp.pop %v3986
        %v4157 = vmul.f32 %v3986, %v4156
        %v4158 = vsub.f32 1.0, %v4157
        %v4159 = vmul.f32 %v4156, %v4158
        %v4160 = vadd.f32 %v4156, %v4159
        %vm4161 = vweird.f32 %v3986
        %vm4162 = vweird.f32 %v4156
        %vm4163 = vmor %vm4161, %vm4162
        %v4164 = vsel %vm4163, %v4156, %v4160
        %v4165 = vand.u32 2147483647, %v3986
        %vm4166 = vcmp.eq.f32.partialorder %v4165, 8.507059e+37
        %v4167 = vand.u32 %v3986, 2147483648
        %v4168 = vor.u32 1.1754944e-38, %v4167
        %v4169 = vsel %vm4166, %v4168, %v4164
        %v4170 = vmul.f32 1.0, %v4169
        %v4171 = vrcp.pop %v3987
        %v4172 = vmul.f32 %v3987, %v4171
        %v4173 = vsub.f32 1.0, %v4172
        %v4174 = vmul.f32 %v4171, %v4173
        %v4175 = vadd.f32 %v4171, %v4174
        %vm4176 = vweird.f32 %v3987
        %vm4177 = vweird.f32 %v4171
        %vm4178 = vmor %vm4176, %vm4177
        %v4179 = vsel %vm4178, %v4171, %v4175
        %v4180 = vand.u32 2147483647, %v3987
        %vm4181 = vcmp.eq.f32.partialorder %v4180, 8.507059e+37
        %v4182 = vand.u32 %v3987, 2147483648
        %v4183 = vor.u32 1.1754944e-38, %v4182
        %v4184 = vsel %vm4181, %v4183, %v4179
        %v4185 = vmul.f32 1.0, %v4184
        %v4186 = vrcp.pop %v3988
        %v4187 = vmul.f32 %v3988, %v4186
        %v4188 = vsub.f32 1.0, %v4187
        %v4189 = vmul.f32 %v4186, %v4188
        %v4190 = vadd.f32 %v4186, %v4189
        %vm4191 = vweird.f32 %v3988
        %vm4192 = vweird.f32 %v4186
        %vm4193 = vmor %vm4191, %vm4192
        %v4194 = vsel %vm4193, %v4186, %v4190
        %v4195 = vand.u32 2147483647, %v3988
        %vm4196 = vcmp.eq.f32.partialorder %v4195, 8.507059e+37
        %v4197 = vand.u32 %v3988, 2147483648
        %v4198 = vor.u32 1.1754944e-38, %v4197
        %v4199 = vsel %vm4196, %v4198, %v4194
        %v4200 = vmul.f32 1.0, %v4199
        %v4201 = vrcp.pop %v3989
        %v4202 = vmul.f32 %v3989, %v4201
        %v4203 = vsub.f32 1.0, %v4202
        %v4204 = vmul.f32 %v4201, %v4203
        %v4205 = vadd.f32 %v4201, %v4204
        %vm4206 = vweird.f32 %v3989
        %vm4207 = vweird.f32 %v4201
        %vm4208 = vmor %vm4206, %vm4207
        %v4209 = vsel %vm4208, %v4201, %v4205
        %v4210 = vand.u32 2147483647, %v3989
        %vm4211 = vcmp.eq.f32.partialorder %v4210, 8.507059e+37
        %v4212 = vand.u32 %v3989, 2147483648
        %v4213 = vor.u32 1.1754944e-38, %v4212
        %v4214 = vsel %vm4211, %v4213, %v4209
        %v4215 = vmul.f32 1.0, %v4214
        %v4216 = vrcp.pop %v3990
        %v4217 = vmul.f32 %v3990, %v4216
        %v4218 = vsub.f32 1.0, %v4217
        %v4219 = vmul.f32 %v4216, %v4218
        %v4220 = vadd.f32 %v4216, %v4219
        %vm4221 = vweird.f32 %v3990
        %vm4222 = vweird.f32 %v4216
        %vm4223 = vmor %vm4221, %vm4222
        %v4224 = vsel %vm4223, %v4216, %v4220
        %v4225 = vand.u32 2147483647, %v3990
        %vm4226 = vcmp.eq.f32.partialorder %v4225, 8.507059e+37
        %v4227 = vand.u32 %v3990, 2147483648
        %v4228 = vor.u32 1.1754944e-38, %v4227
        %v4229 = vsel %vm4226, %v4228, %v4224
        %v4230 = vmul.f32 1.0, %v4229
        %v4231 = vmul.f32 %v4005, 1.442695
        %v4232 = vpow.pop %v4231
        %v4233 = vmul.f32 %v4020, 1.442695
        %v4234 = vpow.pop %v4233
        %v4235 = vmul.f32 %v4035, 1.442695
        %v4236 = vpow.pop %v4235
        %v4237 = vmul.f32 %v4050, 1.442695
        %v4238 = vpow.pop %v4237
        %v4239 = vmul.f32 %v4065, 1.442695
        %v4240 = vpow.pop %v4239
        %v4241 = vmul.f32 %v4080, 1.442695
        %v4242 = vpow.pop %v4241
        %v4243 = vmul.f32 %v4095, 1.442695
        %v4244 = vpow.pop %v4243
        %v4245 = vmul.f32 %v4110, 1.442695
        %v4246 = vpow.pop %v4245
        %v4247 = vmul.f32 %v4125, 1.442695
        %v4248 = vpow.pop %v4247
        %v4249 = vmul.f32 %v4140, 1.442695
        %v4250 = vpow.pop %v4249
        %v4251 = vmul.f32 %v4155, 1.442695
        %v4252 = vpow.pop %v4251
        %v4253 = vmul.f32 %v4170, 1.442695
        %v4254 = vpow.pop %v4253
        %v4255 = vmul.f32 %v4185, 1.442695
        %v4256 = vpow.pop %v4255
        %v4257 = vmul.f32 %v4200, 1.442695
        %v4258 = vpow.pop %v4257
        %v4259 = vmul.f32 %v4215, 1.442695
        %v4260 = vpow.pop %v4259
        %v4261 = vmul.f32 %v4230, 1.442695
        %v4262 = vpow.pop %v4261
        %v4279 = vrot.slane %v4234, 7
        %v4280 = vsel %vm2889, %v4279, %v4232
        %v4281 = vrot.slane %v4236, 6
        %v4282 = vsel %vm2891, %v4281, %v4280
        %v4283 = vrot.slane %v4238, 5
        %v4284 = vsel %vm2893, %v4283, %v4282
        %v4285 = vrot.slane %v4242, 7
        %v4286 = vsel %vm2889, %v4285, %v4240
        %v4287 = vrot.slane %v4244, 6
        %v4288 = vsel %vm2891, %v4287, %v4286
        %v4289 = vrot.slane %v4246, 5
        %v4290 = vsel %vm2893, %v4289, %v4288
        %v4291 = vrot.slane %v4250, 7
        %v4292 = vsel %vm2889, %v4291, %v4248
        %v4293 = vrot.slane %v4252, 6
        %v4294 = vsel %vm2891, %v4293, %v4292
        %v4295 = vrot.slane %v4254, 5
        %v4296 = vsel %vm2893, %v4295, %v4294
        %v4297 = vrot.slane %v4258, 7
        %v4298 = vsel %vm2889, %v4297, %v4256
        %v4299 = vrot.slane %v4260, 6
        %v4300 = vsel %vm2891, %v4299, %v4298
        %v4301 = vrot.slane %v4262, 5
        %v4302 = vsel %vm2893, %v4301, %v4300
        %v4307 = vsel %vm3490, %v4284, 0.0
        %v4308 = vrot.slane %v4307, 4
        %v4309 = vadd.f32 %v4307, %v4308
        %v4310 = vrot.slane %v4309, 2
        %v4311 = vadd.f32 %v4309, %v4310
        %v4312 = vrot.slane %v4311, 1
        %v4313 = vadd.f32 %v4311, %v4312
        %v4314 = vsel %vm3490, %v4290, 0.0
        %v4315 = vrot.slane %v4314, 4
        %v4316 = vadd.f32 %v4314, %v4315
        %v4317 = vrot.slane %v4316, 2
        %v4318 = vadd.f32 %v4316, %v4317
        %v4319 = vrot.slane %v4318, 1
        %v4320 = vadd.f32 %v4318, %v4319
        %v4321 = vsel %vm3490, %v4296, 0.0
        %v4322 = vrot.slane %v4321, 4
        %v4323 = vadd.f32 %v4321, %v4322
        %v4324 = vrot.slane %v4323, 2
        %v4325 = vadd.f32 %v4323, %v4324
        %v4326 = vrot.slane %v4325, 1
        %v4327 = vadd.f32 %v4325, %v4326
        %v4328 = vsel %vm3490, %v4302, 0.0
        %v4329 = vrot.slane %v4328, 4
        %v4330 = vadd.f32 %v4328, %v4329
        %v4331 = vrot.slane %v4330, 2
        %v4332 = vadd.f32 %v4330, %v4331
        %v4333 = vrot.slane %v4332, 1
        %v4334 = vadd.f32 %v4332, %v4333
        %v4335 = vrcp.pop %v4313
        %v4336 = vrcp.pop %v4320
        %v4337 = vrcp.pop %v4327
        %v4338 = vrcp.pop %v4334
        %v4339 = vperm.slane %v4335, 0
        %v4340 = vperm.slane %v4336, 0
        %v4341 = vperm.slane %v4337, 0
        %v4342 = vperm.slane %v4338, 0
        %v4343 = vmul.f32 %v4232, %v4339
        %v4344 = vmul.f32 %v4234, %v4339
        %v4345 = vmul.f32 %v4236, %v4339
        %v4346 = vmul.f32 %v4238, %v4339
        %v4347 = vmul.f32 %v4240, %v4340
        %v4348 = vmul.f32 %v4242, %v4340
        %v4349 = vmul.f32 %v4244, %v4340
        %v4350 = vmul.f32 %v4246, %v4340
        %v4351 = vmul.f32 %v4248, %v4341
        %v4352 = vmul.f32 %v4250, %v4341
        %v4353 = vmul.f32 %v4252, %v4341
        %v4354 = vmul.f32 %v4254, %v4341
        %v4355 = vmul.f32 %v4256, %v4342
        %v4356 = vmul.f32 %v4258, %v4342
        %v4357 = vmul.f32 %v4260, %v4342
        %v4358 = vmul.f32 %v4262, %v4342
        %4359 = vrot.lane.b32.xlu0 %v3736, 96
        %v4360 = vpop.permute.xlu0 %4359
        %4361 = vrot.lane.b32.xlu0 %v3812, 96
        %v4362 = vpop.permute.xlu0 %4361
        %4363 = vrot.lane.b32.xlu0 %v3813, 96
        %v4364 = vpop.permute.xlu0 %4363
        %4365 = vrot.lane.b32.xlu0 %v3814, 96
        %v4366 = vpop.permute.xlu0 %4365
        %v4371 = vmul.f32 %v4343, %v4360
        %v4372 = vmul.f32 %v4344, %v4362
        %v4373 = vmul.f32 %v4345, %v4364
        %v4374 = vmul.f32 %v4346, %v4366
        %v4375 = vmul.f32 %v4347, %v4360
        %v4376 = vmul.f32 %v4348, %v4362
        %v4377 = vmul.f32 %v4349, %v4364
        %v4378 = vmul.f32 %v4350, %v4366
        %v4379 = vmul.f32 %v4351, %v4360
        %v4380 = vmul.f32 %v4352, %v4362
        %v4381 = vmul.f32 %v4353, %v4364
        %v4382 = vmul.f32 %v4354, %v4366
        %v4383 = vmul.f32 %v4355, %v4360
        %v4384 = vmul.f32 %v4356, %v4362
        %v4385 = vmul.f32 %v4357, %v4364
        %v4386 = vmul.f32 %v4358, %v4366
        %v4403 = vrot.slane %v4372, 7
        %v4404 = vsel %vm2889, %v4403, %v4371
        %v4405 = vrot.slane %v4373, 6
        %v4406 = vsel %vm2891, %v4405, %v4404
        %v4407 = vrot.slane %v4374, 5
        %v4408 = vsel %vm2893, %v4407, %v4406
        %v4409 = vrot.slane %v4376, 7
        %v4410 = vsel %vm2889, %v4409, %v4375
        %v4411 = vrot.slane %v4377, 6
        %v4412 = vsel %vm2891, %v4411, %v4410
        %v4413 = vrot.slane %v4378, 5
        %v4414 = vsel %vm2893, %v4413, %v4412
        %v4415 = vrot.slane %v4380, 7
        %v4416 = vsel %vm2889, %v4415, %v4379
        %v4417 = vrot.slane %v4381, 6
        %v4418 = vsel %vm2891, %v4417, %v4416
        %v4419 = vrot.slane %v4382, 5
        %v4420 = vsel %vm2893, %v4419, %v4418
        %v4421 = vrot.slane %v4384, 7
        %v4422 = vsel %vm2889, %v4421, %v4383
        %v4423 = vrot.slane %v4385, 6
        %v4424 = vsel %vm2891, %v4423, %v4422
        %v4425 = vrot.slane %v4386, 5
        %v4426 = vsel %vm2893, %v4425, %v4424
        %v4431 = vsel %vm3490, %v4408, 0.0
        %v4432 = vrot.slane %v4431, 4
        %v4433 = vadd.f32 %v4431, %v4432
        %v4434 = vrot.slane %v4433, 2
        %v4435 = vadd.f32 %v4433, %v4434
        %v4436 = vrot.slane %v4435, 1
        %v4437 = vadd.f32 %v4435, %v4436
        %v4438 = vsel %vm3490, %v4414, 0.0
        %v4439 = vrot.slane %v4438, 4
        %v4440 = vadd.f32 %v4438, %v4439
        %v4441 = vrot.slane %v4440, 2
        %v4442 = vadd.f32 %v4440, %v4441
        %v4443 = vrot.slane %v4442, 1
        %v4444 = vadd.f32 %v4442, %v4443
        %v4445 = vsel %vm3490, %v4420, 0.0
        %v4446 = vrot.slane %v4445, 4
        %v4447 = vadd.f32 %v4445, %v4446
        %v4448 = vrot.slane %v4447, 2
        %v4449 = vadd.f32 %v4447, %v4448
        %v4450 = vrot.slane %v4449, 1
        %v4451 = vadd.f32 %v4449, %v4450
        %v4452 = vsel %vm3490, %v4426, 0.0
        %v4453 = vrot.slane %v4452, 4
        %v4454 = vadd.f32 %v4452, %v4453
        %v4455 = vrot.slane %v4454, 2
        %v4456 = vadd.f32 %v4454, %v4455
        %v4457 = vrot.slane %v4456, 1
        %v4458 = vadd.f32 %v4456, %v4457
        %v4459 = vmul.f32 %v4437, 0.25
        %v4460 = vmul.f32 %v4444, 0.25
        %v4461 = vmul.f32 %v4451, 0.25
        %v4462 = vmul.f32 %v4458, 0.25
        %v4467 = vrot.slane %v4460, 7
        %v4468 = vsel %vm2889, %v4467, %v4459
        %v4469 = vrot.slane %v4461, 6
        %v4470 = vsel %vm2891, %v4469, %v4468
        %v4471 = vrot.slane %v4462, 5
        %v4472 = vsel %vm2893, %v4471, %v4470
        %4473 = vrot.lane.b32.xlu0 %v4472, 48
        %v4474 = vpop.permute.xlu0 %4473
        %v4476 = vadd.f32 %v3736, %v4474
        %v4477 = vld [vmem:[%s51] sm:$0xf]
        %4479 = vrot.lane.b32.xlu0 %v4477, 48
        %v4480 = vpop.permute.xlu0 %4479
        %v4482 = vmul.f32 %v4476, %v4480
        %v4484 = vrot.slane %v4482, 1
        %v4485 = vrot.slane %v4482, 2
        %v4486 = vrot.slane %v4482, 3
        %4487 = vrot.lane.b32.xlu0 %v4482, 80
        %v4488 = vpop.permute.xlu0 %4487
        %4489 = vrot.lane.b32.xlu0 %v4484, 80
        %v4490 = vpop.permute.xlu0 %4489
        %4491 = vrot.lane.b32.xlu0 %v4485, 80
        %v4492 = vpop.permute.xlu0 %4491
        %4493 = vrot.lane.b32.xlu0 %v4486, 80
        %v4494 = vpop.permute.xlu0 %4493
        %v4499 = vadd.f32 %v3700, %v4488
        %v4500 = vadd.f32 %v3701, %v4490
        %v4501 = vadd.f32 %v3702, %v4492
        %v4502 = vadd.f32 %v3703, %v4494
        %v4503 = vld [vmem:[%s53] sm:$0xf]
        %v4505 = vrot.slane %v4503, 1
        %v4506 = vrot.slane %v4503, 2
        %v4507 = vrot.slane %v4503, 3
        %v4512 = vadd.f32 %v4499, %v4503
        %v4513 = vadd.f32 %v4500, %v4505
        %v4514 = vadd.f32 %v4501, %v4506
        %v4515 = vadd.f32 %v4502, %v4507
        %v4516 = vmax.f32 %v4512, 0.0
        %v4517 = vmax.f32 %v4513, 0.0
        %v4518 = vmax.f32 %v4514, 0.0
        %v4519 = vmax.f32 %v4515, 0.0
        %v4520 = vld [vmem:[%s55] sm:$0xf]
        %v4521 = vmax.f32 %v4520, 0.0
        %v4522 = vmul.f32 %v4521, %v4521
        %v4523 = vsel %vm3490, %v4522, 0.0
        %4524 = vadd.xlane.f32.xlu0 %v4523
        %v4525 = vpop.xlane.xlu0 %4524
        %v4526 = vadd.f32 %v4525, 1e-24
        %v4527 = vrsqrt.pop %v4526
        %v4528 = vmul.f32 %v4527, %v4526
        %v4529 = vmul.f32 %v4528, %v4527
        %v4530 = vmul.f32 0.5, %v4529
        %v4531 = vsub.f32 1.5, %v4530
        %v4532 = vmul.f32 %v4527, %v4531
        %vm4533 = vweird.f32 %v4526
        %vm4534 = vweird.f32 %v4527
        %vm4535 = vmor %vm4533, %vm4534
        %v4536 = vsel %vm4535, %v4527, %v4532
        %v4537 = vmul.f32 %v4521, %v4536
        %v4538 = vmul.f32 %v4516, %v4516
        %v4539 = vmul.f32 %v4517, %v4517
        %v4540 = vmul.f32 %v4518, %v4518
        %v4541 = vmul.f32 %v4519, %v4519
        %v4546 = vrot.slane %v4539, 7
        %v4547 = vsel %vm2889, %v4546, %v4538
        %v4548 = vrot.slane %v4540, 6
        %v4549 = vsel %vm2891, %v4548, %v4547
        %v4550 = vrot.slane %v4541, 5
        %v4551 = vsel %vm2893, %v4550, %v4549
        %v4553 = vsel %vm3490, %v4551, 0.0
        %4554 = vadd.xlane.f32.xlu0 %v4553
        %v4555 = vpop.xlane.xlu0 %4554
        %v4556 = vadd.f32 %v4555, 1e-24
        %v4557 = vrsqrt.pop %v4556
        %v4558 = vmul.f32 %v4557, %v4556
        %v4559 = vmul.f32 %v4558, %v4557
        %v4560 = vmul.f32 0.5, %v4559
        %v4561 = vsub.f32 1.5, %v4560
        %v4562 = vmul.f32 %v4557, %v4561
        %vm4563 = vweird.f32 %v4556
        %vm4564 = vweird.f32 %v4557
        %vm4565 = vmor %vm4563, %vm4564
        %v4566 = vsel %vm4565, %v4557, %v4562
        %v4568 = vrot.slane %v4566, 1
        %v4569 = vrot.slane %v4566, 2
        %v4570 = vrot.slane %v4566, 3
        %v4575 = vmul.f32 %v4516, %v4566
        %v4576 = vmul.f32 %v4517, %v4568
        %v4577 = vmul.f32 %v4518, %v4569
        %v4578 = vmul.f32 %v4519, %v4570
        %v4580 = vrot.slane %v4537, 1
        %v4581 = vrot.slane %v4537, 2
        %v4582 = vrot.slane %v4537, 3
        %v4587 = vmul.f32 %v4575, %v4537
        %v4588 = vmul.f32 %v4576, %v4580
        %v4589 = vmul.f32 %v4577, %v4581
        %v4590 = vmul.f32 %v4578, %v4582
        %v4595 = vrot.slane %v4588, 7
        %v4596 = vsel %vm2889, %v4595, %v4587
        %v4597 = vrot.slane %v4589, 6
        %v4598 = vsel %vm2891, %v4597, %v4596
        %v4599 = vrot.slane %v4590, 5
        %v4600 = vsel %vm2893, %v4599, %v4598
        %v4602 = vsel %vm3490, %v4600, 0.0
        %4603 = vadd.xlane.f32.xlu0 %v4602
        %v4604 = vpop.xlane.xlu0 %4603
        %v4606 = vlaneseq
        %v4607 = vand.u32 %v4606, 127
        %v4608 = vperm.slane %v4604, %v4607
        %vm4610 = vcmask 24576
        %4611 = vst.msk [vmem:[%s951] sm:$0x1] %vm4610, %v4608
        %v4612 = vld [vmem:[%s57] sm:$0xff]
        %v4613 = vld [vmem:[%s57 + $0x8] sm:$0xff]
        %v4614 = vld [vmem:[%s59] sm:$0x1]
        %v4616 = vperm.slane %v4614, 0
        %v4634 = vrot.slane %v3912, 7
        %v4635 = vsel %vm2889, %v4634, %v3911
        %v4636 = vrot.slane %v3913, 6
        %v4637 = vsel %vm2891, %v4636, %v4635
        %v4638 = vrot.slane %v3914, 5
        %v4639 = vsel %vm2893, %v4638, %v4637
        %v4640 = vrot.slane %v3915, 4
        %v4641 = vsel %vm2942, %v4640, %v4639
        %v4642 = vrot.slane %v3916, 3
        %v4643 = vsel %vm2945, %v4642, %v4641
        %v4644 = vrot.slane %v3917, 2
        %v4645 = vsel %vm2948, %v4644, %v4643
        %v4646 = vrot.slane %v3918, 1
        %v4647 = vsel %vm2951, %v4646, %v4645
        %v4648 = vrot.slane %v3920, 7
        %v4649 = vsel %vm2889, %v4648, %v3919
        %v4650 = vrot.slane %v3921, 6
        %v4651 = vsel %vm2891, %v4650, %v4649
        %v4652 = vrot.slane %v3922, 5
        %v4653 = vsel %vm2893, %v4652, %v4651
        %v4654 = vrot.slane %v3923, 4
        %v4655 = vsel %vm2942, %v4654, %v4653
        %v4656 = vrot.slane %v3924, 3
        %v4657 = vsel %vm2945, %v4656, %v4655
        %v4658 = vrot.slane %v3925, 2
        %v4659 = vsel %vm2948, %v4658, %v4657
        %v4660 = vrot.slane %v3926, 1
        %v4661 = vsel %vm2951, %v4660, %v4659
        %v4662 = vsel %vm1019, %v4647, 0
        %v4664 = vsel %vm1019, %v4661, 0
        %4666 = vmatpush.msra.mxu0 0.0
        %4667 = vmatpush.msra.mxu0 0.0
        %4668 = vmatpush.msra.mxu0 0.0
        %4669 = vmatpush.msra.mxu0 0.0
        %4670 = vmatpush.msra.mxu0 0.0
        %4671 = vmatpush.msra.mxu0 0.0
        %4672 = vmatpush.msra.mxu0 0.0
        %4673 = vmatpush.msra.mxu0 0.0
        %4674 = vmatpush.msra.mxu0 0.0
        %4675 = vmatpush.msra.mxu0 0.0
        %4676 = vmatpush.msra.mxu0 0.0
        %4677 = vmatpush.msra.mxu0 0.0
        %4678 = vmatpush.msra.mxu0 0.0
        %4679 = vmatpush.msra.mxu0 0.0
        %4680 = vmatpush.msra.mxu0 %v4613
        %4681 = vmatpush.msra.mxu0 %v4612
        %4682 = vmatmul.f32.gmra.mxu0 %v4662
        %v4683 = vpop.f32.mrf.mxu0
        %v4684 = vadd.f32 %v4616, %v4683
        %4685 = vmatmul.f32.gmra.mxu0 %v4664
        %v4686 = vpop.f32.mrf.mxu0
        %v4687 = vadd.f32 %v4616, %v4686
        %4688 = vdwg.mxu0
        %vm4689 = vcmask 31744
        %4690 = vst.msk [vmem:[%s968] sm:$0xff] %vm4689, %v4684
        %4691 = vst.msk [vmem:[%s968 + $0x8] sm:$0xff] %vm4689, %v4687
        %s4692 = sand.u32 %s721, 1
        %s4693 = scalar_lea.sflag [#allocation3], %s4692
        %s4694 = sand.u32 %s721, 1
        %s4695 = scalar_lea.vmem [#allocation2], %s4694
        %p4696 = scmp.lt.s32.totalorder %s78, 1
        %s4697 = scalar_select %p4696, %s78, 1
        %s4698 = smul.addr %s4697, 2
        %s4699 = smul.addr %s4698, 8
        %s4700 = scalar_lea.vmem %s63, %s4699
        // Predicated region
        $region141: #{mefarg_forward.1} parent=139 // pred_check
          %p4701 = pneg %p731
        $region142: #{mefarg_forward.1} parent=139 // pred_check_branch
          %4703 = sbr.rel (%p4701) target = $region144
        $region143: #{mefarg_forward.1} parent=139 // pred_region
          %4705 = vsyncadd %s4693, 0
          %s4706 = scalar_lea.hbm %s61, %s78
          %s4708 = sshll.u32 %s4695, 4
          %s4709 = int_to_ptr.vmem [resolvable:$true] %s4708
          %s4710 = sshll.u32 %s4706, 4
          %s4711 = int_to_ptr.hbm [resolvable:$true] %s4710
          %4713 = dma.vmem_to_hbm [thread:$0]  %s4709, 16, %s4711, %s4693
        $region144: #{mefarg_forward.1} parent=139 // pred_fallthru
          _
        // Predicated region
        $region145: #{mefarg_forward.1} parent=139 // pred_check
          %p4714 = pneg %p757
        $region146: #{mefarg_forward.1} parent=139 // pred_check_branch
          %4716 = sbr.rel (%p4714) target = $region148
        $region147: #{mefarg_forward.1} parent=139 // pred_region
          _
        $region148: #{mefarg_forward.1} parent=139 // pred_fallthru
          _
      $region140: #{mefarg_forward.1} parent=5 // pred_fallthru
        _
      %p4717 = scmp.le.s32.totalorder 2, %s73
      // Predicated region
      $region149: #{mefarg_forward.1} parent=5 // pred_check
        %p4718 = pneg %p4717
      $region150: #{mefarg_forward.1} parent=5 // pred_check_branch
        %4720 = sbr.rel (%p4718) target = $region152
      $region151: #{mefarg_forward.1} parent=5 // pred_region
        %s4721 = ssub.s32 %s73, 2
        // Predicated region
        $region153: #{mefarg_forward.1} parent=151 // pred_check
          %p4722 = pneg %p737
        $region154: #{mefarg_forward.1} parent=151 // pred_check_branch
          %4724 = sbr.rel (%p4722) target = $region156
        $region155: #{mefarg_forward.1} parent=151 // pred_region
          %s4725 = sand.u32 %s722, 1
          %s4726 = scalar_lea.sflag [#allocation3], %s4725
          %s4727 = sand.u32 %s722, 1
          %s4728 = scalar_lea.vmem [#allocation2], %s4727
          %4730 = dma.done %s4726, 16
        $region156: #{mefarg_forward.1} parent=151 // pred_fallthru
          _
        // Predicated region
        $region157: #{mefarg_forward.1} parent=151 // pred_check
          %p4731 = pneg %p763
        $region158: #{mefarg_forward.1} parent=151 // pred_check_branch
          %4733 = sbr.rel (%p4731) target = $region160
        $region159: #{mefarg_forward.1} parent=151 // pred_region
          %p4734 = scmp.lt.s32.totalorder %s79, 1
          %s4735 = scalar_select %p4734, %s79, 1
          %s4736 = smul.addr %s4735, 2
          %s4737 = smul.addr %s4736, 8
          %s4738 = scalar_lea.vmem %s63, %s4737
        $region160: #{mefarg_forward.1} parent=151 // pred_fallthru
          _
      $region152: #{mefarg_forward.1} parent=5 // pred_fallthru
        _
    $region6: #{mefarg_forward.1} parent=1 // loop_footer
      %s77 = sadd.s32 1, %s73
    $region7: #{mefarg_forward.1} parent=1 // loop_footer_branch
      %72 = sbr.rel target = $region3
    $region8: #{mefarg_forward.1} parent=1 // loop_exit
      _
    %4739 = vsyncpa [#allocation3], 1
    %s4740 = scalar_lea.sflag [#allocation3], 1
    %4741 = vsyncpa %s4740, 1

</llo_original>
